<compile_context>
chip_gen: v5e
topology: v5e:2x2
jax: 0.10.0
libtpu: 0.0.40
codegen_flags: <defaults>
</compile_context>

<pallas_src>
import jax
import jax.numpy as jnp
from jax.experimental import pallas as pl
from jax.experimental.pallas import tpu as pltpu


def span_attention_kernel(a_ref, hw1_ref, se_ref, wproj_ref, o_ref):
    """One (batch b, span-tile n) grid step.

    a_ref    : (1, L)        f32  precomputed attention logits (h @ watt.T + b_att)
    hw1_ref  : (L, D)        bf16 precomputed h @ w1 for batch b (constant over n)
    se_ref   : (TILE_N, 2)   i32  packed [start, end] per span
    wproj_ref: (W, D)        f32  precomputed wemb_table @ w2 + downproject bias
    o_ref    : (TILE_N, D)   f32  output tile
    """
    a_row = a_ref[...]                                  # (1, L) f32
    hw1 = hw1_ref[...]                                  # (L, D) bf16
    se = se_ref[...]                                    # (TILE_N, 2) i32
    starts = se[:, 0:1]                                 # (TILE_N, 1)
    ends = se[:, 1:2]                                   # (TILE_N, 1)
    tile_n = se.shape[0]
    L = hw1.shape[0]
    D = hw1.shape[1]
    max_width = wproj_ref.shape[0]

    # --- span membership mask over sequence positions ----------------------
    pos = jax.lax.broadcasted_iota(jnp.int32, (tile_n, L), 1)
    maskf = jnp.where((pos >= starts) & (pos <= ends), 1.0, 0.0)         # (TILE_N, L) f32

    # --- AllenNLP masked_softmax (memory_efficient=False), folded ----------
    #   p = (e*m) / (Sum(e*m) + 1e-13 * Sum(e)),  e = exp(a*m - max(a*m))
    # Sum(e) reconstructed analytically: each masked-out position contributes
    # exp(-v_max), so Sum(e) = Sum(e*m) + num_masked * exp(-v_max)  (one lane
    # reduction instead of two, and no separate full-width `e` pass).
    v = a_row * maskf                                                    # (TILE_N, L)
    v_max = jnp.max(v, axis=-1, keepdims=True)                           # (TILE_N, 1)
    em = maskf * jnp.exp(v - v_max)                                      # (TILE_N, L)
    sem_sum = jnp.sum(em, axis=-1, keepdims=True)                        # (TILE_N, 1)
    end_c = jnp.minimum(ends, L - 1)
    start_c = jnp.maximum(starts, 0)
    span_len = jnp.maximum(end_c - start_c + 1, 0).astype(jnp.float32)   # (TILE_N, 1)
    num_masked = jnp.float32(L) - span_len
    denom = sem_sum + 1e-13 * (sem_sum + num_masked * jnp.exp(-v_max))
    inv = pl.reciprocal(denom, approx=True)                              # EUP slot, ~free
    p = em * inv                                                         # (TILE_N, L) f32

    # --- attended span rep, downproject reassociated: p @ (h @ w1) ---------
    # bf16 MXU inputs, f32 accumulation.
    attended = jnp.dot(p.astype(jnp.bfloat16), hw1,
                       preferred_element_type=jnp.float32)               # (TILE_N, D) f32

    # --- span-width contribution (+ folded bias): VPU select-accumulate ----
    widths = jnp.clip(ends - starts, 0, max_width - 1)                   # (TILE_N, 1)
    wtab = wproj_ref[...]                                                # (W, D) f32
    wcontrib = jnp.zeros((tile_n, D), dtype=jnp.float32)
    for i in range(max_width):                                           # max_width tiny & static
        sel = jnp.where(widths == i, 1.0, 0.0)                           # (TILE_N, 1)
        wcontrib = wcontrib + sel * wtab[i:i + 1, :]                     # (1, D) row broadcast

    # --- ReLU + lane-dense store --------------------------------------------
    o_ref[...] = jnp.maximum(attended + wcontrib, 0.0)


def span_attention(h, span_idx, params, *, tile_n=512):
    """Pallas implementation of SpanAttention.forward."""
    watt, batt, wemb_table, w1, w2, bdp = params
    B, L, D = h.shape
    N = span_idx.shape[1]
    max_width = wemb_table.shape[0]

    # --- hoisted precompute (plain XLA, once per call) ----------------------
    a = (jnp.einsum('bld,od->bl', h, watt) + batt[0, 0])[:, None, :]     # (B, 1, L) f32 logits
    hw1 = jnp.einsum('bld,de->ble', h, w1).astype(jnp.bfloat16)          # (B, L, D): (p@h)@w1 == p@(h@w1)
    wproj = (wemb_table @ w2 + bdp).astype(jnp.float32)                  # (W, D), bias folded in
    spans = span_idx.astype(jnp.int32)                                   # (B, N, 2)

    # --- span-tile size (multiple of 8; keep grid non-degenerate for megacore) ---
    tile_n = max(8, min(tile_n, ((N + 7) // 8) * 8))
    tile_n = ((tile_n + 7) // 8) * 8
    if B == 1:
        # v7x has 2 TensorCores: keep >= 2 grid steps on the span axis when N allows.
        while tile_n > 8 and pl.cdiv(N, tile_n) < 2:
            tile_n = ((tile_n // 2 + 7) // 8) * 8
    n_tiles = pl.cdiv(N, tile_n)
    n_pad = n_tiles * tile_n
    if n_pad != N:
        spans = jnp.pad(spans, ((0, 0), (0, n_pad - N), (0, 0)))

    # --- VMEM budget: double-buffered blocks + softmax temporaries ----------
    vmem_bytes = (
        2 * (L * D * 2)                      # hw1 (bf16)
        + 2 * (8 * L * 4)                    # logits row (sublane-padded)
        + 2 * (tile_n * 128 * 4)             # packed spans (lane-padded 2 -> 128)
        + 2 * (max(max_width, 8) * D * 4)    # width table (+bias)
        + 2 * (tile_n * D * 4)               # output
        + 6 * (tile_n * L * 4)               # (TILE_N, L) softmax temporaries headroom
    )
    # TODO(synk): on v5e/v6e (128 MiB VMEM) this cap can be raised toward ~100 MiB for very
    # large L*D; on v7x additionally single-buffer hw1/a via pipeline_mode=pl.Buffered(1) and
    # tile L flash-style once 2*L*D*2 + tile_n*L temporaries approach tens of MiB.
    vmem_limit = int(min(max(vmem_bytes + (4 << 20), 16 << 20), 64 << 20))

    out = pl.pallas_call(
        span_attention_kernel,
        out_shape=jax.ShapeDtypeStruct((B, n_pad, D), jnp.float32),
        grid=(B, n_tiles),
        in_specs=[
            pl.BlockSpec((None, 1, L), lambda b, n: (b, 0, 0)),          # logits (per batch)
            pl.BlockSpec((None, L, D), lambda b, n: (b, 0, 0)),          # hw1 (per batch, bf16)
            pl.BlockSpec((None, tile_n, 2), lambda b, n: (b, n, 0)),     # packed spans
            pl.BlockSpec((max_width, D), lambda b, n: (0, 0)),           # width table (+bias)
        ],
        out_specs=pl.BlockSpec((None, tile_n, D), lambda b, n: (b, n, 0)),
        compiler_params=pltpu.CompilerParams(
            dimension_semantics=("parallel", "parallel"),
            vmem_limit_bytes=vmem_limit),
    )(a, hw1, spans, wproj)

    return out[:, :N, :].reshape(B, L, -1, D)


def span_attention_reference(h, span_idx, params):
    """Pure-JAX f32 reference mirroring the PyTorch / AllenNLP semantics."""
    watt, batt, wemb_table, w1, w2, bdp = params
    B, L, D = h.shape
    starts = span_idx[..., 0]
    ends = span_idx[..., 1]
    a = jnp.einsum('bld,od->bl', h, watt) + batt[0, 0]                   # (B, L)
    pos = jnp.arange(L)[None, None, :]
    mask = (pos >= starts[..., None]) & (pos <= ends[..., None])
    maskf = mask.astype(jnp.float32)
    v = a[:, None, :] * maskf
    sm = jax.nn.softmax(v, axis=-1)
    r = sm * maskf
    p = r / (r.sum(-1, keepdims=True) + 1e-13)
    attended = jnp.einsum('bnl,bld->bnd', p, h)
    we = wemb_table[ends - starts]                                       # (B, N, Wemb)
    out = jnp.maximum(attended @ w1 + we @ w2 + bdp, 0.0)
    return out.reshape(B, L, -1, D)


if __name__ == "__main__":
    # Lane-dense small demo: L and D multiples of 128.
    B, L, D = 2, 128, 128
    max_width = 4
    Wemb = 64
    N = L * max_width

    key = jax.random.PRNGKey(0)
    kh, k1, k2, k3, k4, k5, k6 = jax.random.split(key, 7)

    h = jax.random.normal(kh, (B, L, D), dtype=jnp.float32)

    # span_idx: for each start position i, spans of width 1..max_width (end clamped to L-1).
    spans = [[i, min(i + j, L - 1)] for i in range(L) for j in range(max_width)]
    span_idx = jnp.broadcast_to(jnp.asarray(spans, dtype=jnp.int32)[None], (B, N, 2))

    # Deterministic synthetic parameters (shapes from the module's __init__).
    watt = 0.1 * jax.random.normal(k1, (1, D), dtype=jnp.float32)           # Linear(D, 1) weight
    batt = 0.1 * jax.random.normal(k2, (1, 1), dtype=jnp.float32)           # Linear(D, 1) bias
    wemb_table = 0.1 * jax.random.normal(k3, (max_width, Wemb), dtype=jnp.float32)
    w1 = 0.1 * jax.random.normal(k4, (D, D), dtype=jnp.float32)             # downproject (hidden rows)
    w2 = 0.1 * jax.random.normal(k5, (Wemb, D), dtype=jnp.float32)          # downproject (width rows)
    bdp = 0.1 * jax.random.normal(k6, (1, D), dtype=jnp.float32)
    params = (watt, batt, wemb_table, w1, w2, bdp)

    out = jax.block_until_ready(span_attention(h, span_idx, params, tile_n=512))
    ref = jax.block_until_ready(span_attention_reference(h, span_idx, params))

    assert out.shape == (B, L, max_width, D), out.shape
    # bf16 MXU inputs + approx (EUP) reciprocal -> looser tolerance than a pure-f32 path.
    err = float(jnp.max(jnp.abs(out - ref)))
    assert jnp.allclose(out, ref, rtol=2e-2, atol=5e-2), err
    print("KERNEL_OK")
</pallas_src>

<mosaic_0001>
module attributes {stable_mosaic.version = 11 : i64} {
  func.func @span_attention_kernel(%arg0: i32, %arg1: i32, %arg2: memref<1x1x128xf32, #tpu.memory_space<vmem>>, %arg3: memref<1x128x128xbf16, #tpu.memory_space<vmem>>, %arg4: memref<1x512x2xi32, #tpu.memory_space<vmem>>, %arg5: memref<4x128xf32, #tpu.memory_space<vmem>>, %arg6: memref<1x512x128xf32, #tpu.memory_space<vmem>>) attributes {dimension_semantics = [#tpu.dimension_semantics<parallel>, #tpu.dimension_semantics<parallel>], iteration_bounds = array<i64: 2, 1>, scalar_prefetch = 0 : i64, scratch_operands = 0 : i64, tpu.core_type = #tpu.core_type<tc>, window_params = [{transform_indices = @transform_0, window_bounds = array<i64: 1, 1, 128>}, {transform_indices = @transform_1, window_bounds = array<i64: 1, 128, 128>}, {transform_indices = @transform_2, window_bounds = array<i64: 1, 512, 2>}, {pipeline_mode = #tpu.pipeline_mode<synchronous>, transform_indices = @transform_3, window_bounds = array<i64: 4, 128>}, {transform_indices = @transform_4, window_bounds = array<i64: 1, 512, 128>}]} {
    %c0 = arith.constant 0 : index
    %c0_0 = arith.constant 0 : index
    %c0_1 = arith.constant 0 : index
    %0 = vector.load %arg2[%c0, %c0_0, %c0_1] : memref<1x1x128xf32, #tpu.memory_space<vmem>>, vector<1x1x128xf32>
    %1 = vector.shape_cast %0 : vector<1x1x128xf32> to vector<1x128xf32>
    %c0_2 = arith.constant 0 : index
    %c0_3 = arith.constant 0 : index
    %c0_4 = arith.constant 0 : index
    %2 = vector.load %arg3[%c0_2, %c0_3, %c0_4] : memref<1x128x128xbf16, #tpu.memory_space<vmem>>, vector<1x128x128xbf16>
    %3 = vector.shape_cast %2 : vector<1x128x128xbf16> to vector<128x128xbf16>
    %c0_5 = arith.constant 0 : index
    %c0_6 = arith.constant 0 : index
    %c0_7 = arith.constant 0 : index
    %4 = vector.load %arg4[%c0_5, %c0_6, %c0_7] : memref<1x512x2xi32, #tpu.memory_space<vmem>>, vector<1x512x2xi32>
    %5 = vector.shape_cast %4 : vector<1x512x2xi32> to vector<512x2xi32>
    %6 = vector.extract_strided_slice %5 {offsets = [0, 0], sizes = [512, 1], strides = [1, 1]} : vector<512x2xi32> to vector<512x1xi32>
    %7 = vector.extract_strided_slice %5 {offsets = [0, 1], sizes = [512, 1], strides = [1, 1]} : vector<512x2xi32> to vector<512x1xi32>
    %8 = tpu.iota {dimensions = array<i32: 1>} : vector<512x128xi32>
    %9 = vector.broadcast %6 : vector<512x1xi32> to vector<512x128xi32>
    %10 = arith.cmpi sge, %8, %9 : vector<512x128xi32>
    %11 = vector.broadcast %7 : vector<512x1xi32> to vector<512x128xi32>
    %12 = arith.cmpi sle, %8, %11 : vector<512x128xi32>
    %13 = arith.andi %10, %12 : vector<512x128xi1>
    %cst = arith.constant 1.000000e+00 : f32
    %cst_8 = arith.constant 0.000000e+00 : f32
    %14 = vector.broadcast %cst : f32 to vector<512x128xf32>
    %15 = vector.broadcast %cst_8 : f32 to vector<512x128xf32>
    %16 = arith.select %13, %14, %15 : vector<512x128xi1>, vector<512x128xf32>
    %17 = vector.broadcast %1 : vector<1x128xf32> to vector<512x128xf32>
    %18 = arith.mulf %17, %16 : vector<512x128xf32>
    %cst_9 = arith.constant dense<0xFF800000> : vector<512xf32>
    %19 = vector.multi_reduction <maximumf>, %18, %cst_9 [1] : vector<512x128xf32> to vector<512xf32>
    %20 = vector.shape_cast %19 : vector<512xf32> to vector<512x1xf32>
    %21 = vector.broadcast %20 : vector<512x1xf32> to vector<512x128xf32>
    %22 = arith.subf %18, %21 : vector<512x128xf32>
    %23 = math.exp %22 : vector<512x128xf32>
    %24 = arith.mulf %16, %23 : vector<512x128xf32>
    %cst_10 = arith.constant dense<0.000000e+00> : vector<512xf32>
    %25 = vector.multi_reduction <add>, %24, %cst_10 [1] : vector<512x128xf32> to vector<512xf32>
    %26 = vector.shape_cast %25 : vector<512xf32> to vector<512x1xf32>
    %c127_i32 = arith.constant 127 : i32
    %27 = vector.broadcast %c127_i32 : i32 to vector<512x1xi32>
    %28 = arith.minsi %7, %27 : vector<512x1xi32>
    %c0_i32 = arith.constant 0 : i32
    %29 = vector.broadcast %c0_i32 : i32 to vector<512x1xi32>
    %30 = arith.maxsi %6, %29 : vector<512x1xi32>
    %31 = arith.subi %28, %30 : vector<512x1xi32>
    %c1_i32 = arith.constant 1 : i32
    %32 = vector.broadcast %c1_i32 : i32 to vector<512x1xi32>
    %33 = arith.addi %31, %32 : vector<512x1xi32>
    %c0_i32_11 = arith.constant 0 : i32
    %34 = vector.broadcast %c0_i32_11 : i32 to vector<512x1xi32>
    %35 = arith.maxsi %33, %34 : vector<512x1xi32>
    %36 = arith.sitofp %35 : vector<512x1xi32> to vector<512x1xf32>
    %cst_12 = arith.constant 1.280000e+02 : f32
    %37 = vector.broadcast %cst_12 : f32 to vector<512x1xf32>
    %38 = arith.subf %37, %36 : vector<512x1xf32>
    %cst_13 = arith.constant 0.000000e+00 : f32
    %39 = vector.broadcast %cst_13 : f32 to vector<512x1xf32>
    %40 = arith.subf %39, %20 : vector<512x1xf32>
    %41 = math.exp %40 : vector<512x1xf32>
    %42 = arith.mulf %38, %41 : vector<512x1xf32>
    %43 = arith.addf %26, %42 : vector<512x1xf32>
    %cst_14 = arith.constant 9.99999982E-14 : f32
    %44 = vector.broadcast %cst_14 : f32 to vector<512x1xf32>
    %45 = arith.mulf %44, %43 : vector<512x1xf32>
    %46 = arith.addf %26, %45 : vector<512x1xf32>
    %47 = tpu.reciprocal %46 {approx = true} : vector<512x1xf32> -> vector<512x1xf32>
    %48 = vector.broadcast %47 : vector<512x1xf32> to vector<512x128xf32>
    %49 = arith.mulf %24, %48 : vector<512x128xf32>
    %50 = arith.truncf %49 : vector<512x128xf32> to vector<512x128xbf16>
    %cst_15 = arith.constant dense<0.000000e+00> : vector<512x128xf32>
    %51 = tpu.matmul %50, %3, %cst_15 {dimension_numbers = #tpu.dot_dimension_numbers<[1], [0], [0], [1], [0, 0, 1, 1], [], []>} : vector<512x128xbf16>, vector<128x128xbf16>, vector<512x128xf32> -> vector<512x128xf32>
    %52 = arith.subi %7, %6 : vector<512x1xi32>
    %c0_i32_16 = arith.constant 0 : i32
    %c3_i32 = arith.constant 3 : i32
    %53 = vector.broadcast %c0_i32_16 : i32 to vector<512x1xi32>
    %54 = arith.maxsi %53, %52 : vector<512x1xi32>
    %55 = vector.broadcast %c3_i32 : i32 to vector<512x1xi32>
    %56 = arith.minsi %55, %54 : vector<512x1xi32>
    %c0_17 = arith.constant 0 : index
    %c0_18 = arith.constant 0 : index
    %57 = vector.load %arg5[%c0_17, %c0_18] : memref<4x128xf32, #tpu.memory_space<vmem>>, vector<4x128xf32>
    %cst_19 = arith.constant 0.000000e+00 : f32
    %58 = vector.broadcast %cst_19 : f32 to vector<512x128xf32>
    %c0_i32_20 = arith.constant 0 : i32
    %59 = vector.broadcast %c0_i32_20 : i32 to vector<512x1xi32>
    %60 = arith.cmpi eq, %56, %59 : vector<512x1xi32>
    %cst_21 = arith.constant 1.000000e+00 : f32
    %cst_22 = arith.constant 0.000000e+00 : f32
    %61 = vector.broadcast %cst_21 : f32 to vector<512x1xf32>
    %62 = vector.broadcast %cst_22 : f32 to vector<512x1xf32>
    %63 = arith.select %60, %61, %62 : vector<512x1xi1>, vector<512x1xf32>
    %64 = vector.extract_strided_slice %57 {offsets = [0, 0], sizes = [1, 128], strides = [1, 1]} : vector<4x128xf32> to vector<1x128xf32>
    %65 = vector.broadcast %63 : vector<512x1xf32> to vector<512x128xf32>
    %66 = vector.broadcast %64 : vector<1x128xf32> to vector<512x128xf32>
    %67 = arith.mulf %65, %66 : vector<512x128xf32>
    %68 = arith.addf %58, %67 : vector<512x128xf32>
    %c1_i32_23 = arith.constant 1 : i32
    %69 = vector.broadcast %c1_i32_23 : i32 to vector<512x1xi32>
    %70 = arith.cmpi eq, %56, %69 : vector<512x1xi32>
    %cst_24 = arith.constant 1.000000e+00 : f32
    %cst_25 = arith.constant 0.000000e+00 : f32
    %71 = vector.broadcast %cst_24 : f32 to vector<512x1xf32>
    %72 = vector.broadcast %cst_25 : f32 to vector<512x1xf32>
    %73 = arith.select %70, %71, %72 : vector<512x1xi1>, vector<512x1xf32>
    %74 = vector.extract_strided_slice %57 {offsets = [1, 0], sizes = [1, 128], strides = [1, 1]} : vector<4x128xf32> to vector<1x128xf32>
    %75 = vector.broadcast %73 : vector<512x1xf32> to vector<512x128xf32>
    %76 = vector.broadcast %74 : vector<1x128xf32> to vector<512x128xf32>
    %77 = arith.mulf %75, %76 : vector<512x128xf32>
    %78 = arith.addf %68, %77 : vector<512x128xf32>
    %c2_i32 = arith.constant 2 : i32
    %79 = vector.broadcast %c2_i32 : i32 to vector<512x1xi32>
    %80 = arith.cmpi eq, %56, %79 : vector<512x1xi32>
    %cst_26 = arith.constant 1.000000e+00 : f32
    %cst_27 = arith.constant 0.000000e+00 : f32
    %81 = vector.broadcast %cst_26 : f32 to vector<512x1xf32>
    %82 = vector.broadcast %cst_27 : f32 to vector<512x1xf32>
    %83 = arith.select %80, %81, %82 : vector<512x1xi1>, vector<512x1xf32>
    %84 = vector.extract_strided_slice %57 {offsets = [2, 0], sizes = [1, 128], strides = [1, 1]} : vector<4x128xf32> to vector<1x128xf32>
    %85 = vector.broadcast %83 : vector<512x1xf32> to vector<512x128xf32>
    %86 = vector.broadcast %84 : vector<1x128xf32> to vector<512x128xf32>
    %87 = arith.mulf %85, %86 : vector<512x128xf32>
    %88 = arith.addf %78, %87 : vector<512x128xf32>
    %c3_i32_28 = arith.constant 3 : i32
    %89 = vector.broadcast %c3_i32_28 : i32 to vector<512x1xi32>
    %90 = arith.cmpi eq, %56, %89 : vector<512x1xi32>
    %cst_29 = arith.constant 1.000000e+00 : f32
    %cst_30 = arith.constant 0.000000e+00 : f32
    %91 = vector.broadcast %cst_29 : f32 to vector<512x1xf32>
    %92 = vector.broadcast %cst_30 : f32 to vector<512x1xf32>
    %93 = arith.select %90, %91, %92 : vector<512x1xi1>, vector<512x1xf32>
    %94 = vector.extract_strided_slice %57 {offsets = [3, 0], sizes = [1, 128], strides = [1, 1]} : vector<4x128xf32> to vector<1x128xf32>
    %95 = vector.broadcast %93 : vector<512x1xf32> to vector<512x128xf32>
    %96 = vector.broadcast %94 : vector<1x128xf32> to vector<512x128xf32>
    %97 = arith.mulf %95, %96 : vector<512x128xf32>
    %98 = arith.addf %88, %97 : vector<512x128xf32>
    %99 = arith.addf %51, %98 : vector<512x128xf32>
    %cst_31 = arith.constant 0.000000e+00 : f32
    %100 = vector.broadcast %cst_31 : f32 to vector<512x128xf32>
    %101 = arith.maximumf %99, %100 : vector<512x128xf32>
    %c0_32 = arith.constant 0 : index
    %c0_33 = arith.constant 0 : index
    %c0_34 = arith.constant 0 : index
    %102 = vector.load %arg6[%c0_32, %c0_33, %c0_34] : memref<1x512x128xf32, #tpu.memory_space<vmem>>, vector<1x512x128xf32>
    %103 = vector.shape_cast %102 : vector<1x512x128xf32> to vector<512x128xf32>
    %104 = vector.shape_cast %101 : vector<512x128xf32> to vector<1x512x128xf32>
    tpu.vector_store %arg6[%c0_32, %c0_33, %c0_34], %104 {strides = array<i32>} : memref<1x512x128xf32, #tpu.memory_space<vmem>>, vector<1x512x128xf32>,
    return
  }
  func.func @transform_0(%arg0: i32, %arg1: i32) -> (i32, i32, i32) {
    %c0_i32 = arith.constant 0 : i32
    %c0_i32_0 = arith.constant 0 : i32
    %c0_i32_1 = arith.constant 0 : i32
    return %arg0, %c0_i32, %c0_i32_0 : i32, i32, i32
  }
  func.func @transform_1(%arg0: i32, %arg1: i32) -> (i32, i32, i32) {
    %c0_i32 = arith.constant 0 : i32
    %c0_i32_0 = arith.constant 0 : i32
    %c0_i32_1 = arith.constant 0 : i32
    return %arg0, %c0_i32, %c0_i32_0 : i32, i32, i32
  }
  func.func @transform_2(%arg0: i32, %arg1: i32) -> (i32, i32, i32) {
    %c0_i32 = arith.constant 0 : i32
    %c0_i32_0 = arith.constant 0 : i32
    return %arg0, %arg1, %c0_i32 : i32, i32, i32
  }
  func.func @transform_3(%arg0: i32, %arg1: i32) -> (i32, i32) {
    %c0_i32 = arith.constant 0 : i32
    %c0_i32_0 = arith.constant 0 : i32
    %c0_i32_1 = arith.constant 0 : i32
    return %c0_i32, %c0_i32_0 : i32, i32
  }
  func.func @transform_4(%arg0: i32, %arg1: i32) -> (i32, i32, i32) {
    %c0_i32 = arith.constant 0 : i32
    %c0_i32_0 = arith.constant 0 : i32
    return %arg0, %arg1, %c0_i32 : i32, i32, i32
  }
}

</mosaic_0001>

<llo_original>
// kernel: tpu_custom_call.1
$region0: #{tpu_custom_call.1}
  #allocation0 [shape = 'u32[]', space=smem, size = 0x4, offset = 0x4, fixed_abs, tag = 'smem constant byte address 0x4 - core index']
  #allocation1 [shape = 'u32[72,128]{1,0:T(1,128)}', space=vmem, size = 0x9000, scoped, tag = 'internal scratch']
  %s0 = inlined_call_operand.vmem [shape: f32[2,1,128], index: 0, kind: input, shape index: {}]
  %s1 = inlined_call_operand.vmem [shape: bf16[2,128,128], index: 1, kind: input, shape index: {}]
  %s2 = inlined_call_operand.vmem [shape: s32[2,512,2], index: 2, kind: input, shape index: {}]
  %s3 = inlined_call_operand.vmem [shape: f32[4,128], index: 3, kind: input, shape index: {}]
  %s4 = inlined_call_operand.hbm [shape: f32[2,512,128], index: 4, kind: output, shape index: {}]
  %s5 = sld [smem:[#allocation0]]
  $region49: #{tpu_custom_call.1} parent=0
    _
  %s7 = ssub.s32 1, %s5
  %s8 = scalar_select 0, %s7, %s5
  $region1: #{tpu_custom_call.1} parent=0
    #allocation2 [shape = 'u8[524288]{0}', space=vmem, size = 0x80000, scoped, tag = 'output window, operand 0']
    #allocation3 [shape = 's32[2]{0}', space=sflag, size = 0x8, scoped, tag = 'scoped memory for tpu_custom_call.1']
    %9 = vsyncpa [#allocation3], 0
    %s10 = scalar_lea.sflag [#allocation3], 1
    %11 = vsyncpa %s10, 0
    loop: start=0, step=1, limit=4
    $region2: #{tpu_custom_call.1} parent=1 // loop_pre_header
      _
    $region3: #{tpu_custom_call.1} parent=1 // loop_header
      %s13 = sphi 0, %s17
      %p14 = scmp.ge.s32.totalorder %s13, 4
      %s20 = sphi 0, %s32
      %s21 = sphi 0, %s28
      %s22 = sphi 0, %s20
      %s23 = sphi 0, %s21
      %s24 = sphi 0, %s22
      %s25 = sphi 0, %s23
      %s35 = sphi 0, %s37
      %s38 = sphi 0, %s35
      %s39 = sphi 0, %s38
      %s55 = sphi 0, %s39
      %s61 = sphi 0, %s63
      %s64 = sphi 0, %s61
      %s65 = sphi 0, %s64
      %s81 = sphi 0, %s65
      %s89 = sphi 0, %s91
      %s92 = sphi 0, %s89
      %s93 = sphi 0, %s92
      %s109 = sphi 0, %s93
      %s113 = sphi 0, %s113
      %s115 = sphi 0, %s113
      %s116 = sphi 0, %s115
      %s130 = sphi 0, %s116
      %s138 = sphi 0, %s140
      %s141 = sphi 0, %s138
      %s142 = sphi 0, %s141
      %s158 = sphi 0, %s142
    $region4: #{tpu_custom_call.1} parent=1 // loop_header_branch
      %16 = sbr.rel (%p14) target = $region8
    $region5: #{tpu_custom_call.1} parent=1 // loop_body
      %s18 = ssub.s32 %s13, 1
      %s19 = ssub.s32 %s13, 2
      %s26 = sadd.s32 1, %s21
      %p27 = scmp.ge.s32.totalorder %s26, 1
      %s28 = scalar_select %p27, 0, %s26
      %s29 = sadd.s32 1, %s20
      %s30 = scalar_select %p27, %s29, %s20
      %p31 = scmp.ge.s32.totalorder %s30, 2
      %s32 = scalar_select %p31, 0, %s30
      %s33 = ssub.s32 %s20, %s32
      %p34 = scmp.eq.s32.totalorder %s33, 0
      %s36 = sadd.s32 %s35, 1
      %s37 = scalar_select %p34, %s35, %s36
      %p40 = pneg %p34
      %p41 = scmp.eq.s32.totalorder %s13, 1
      %p42 = por %p40, %p41
      %p43 = scmp.ne.s32.totalorder %s35, %s38
      %p44 = scmp.eq.s32.totalorder %s13, 0
      %p45 = por %p43, %p44
      %p46 = scmp.ne.s32.totalorder %s35, %s38
      %p47 = scmp.eq.s32.totalorder %s18, 1
      %p48 = por %p46, %p47
      %p49 = scmp.ne.s32.totalorder %s38, %s39
      %p50 = scmp.eq.s32.totalorder %s18, 0
      %p51 = por %p49, %p50
      %p52 = scmp.ne.s32.totalorder %s38, %s39
      %p53 = scmp.eq.s32.totalorder %s19, 1
      %p54 = por %p52, %p53
      %p56 = scmp.ne.s32.totalorder %s39, %s55
      %p57 = scmp.eq.s32.totalorder %s19, 0
      %p58 = por %p56, %p57
      %s59 = ssub.s32 %s20, %s32
      %p60 = scmp.eq.s32.totalorder %s59, 0
      %s62 = sadd.s32 %s61, 1
      %s63 = scalar_select %p60, %s61, %s62
      %p66 = pneg %p60
      %p67 = scmp.eq.s32.totalorder %s13, 1
      %p68 = por %p66, %p67
      %p69 = scmp.ne.s32.totalorder %s61, %s64
      %p70 = scmp.eq.s32.totalorder %s13, 0
      %p71 = por %p69, %p70
      %p72 = scmp.ne.s32.totalorder %s61, %s64
      %p73 = scmp.eq.s32.totalorder %s18, 1
      %p74 = por %p72, %p73
      %p75 = scmp.ne.s32.totalorder %s64, %s65
      %p76 = scmp.eq.s32.totalorder %s18, 0
      %p77 = por %p75, %p76
      %p78 = scmp.ne.s32.totalorder %s64, %s65
      %p79 = scmp.eq.s32.totalorder %s19, 1
      %p80 = por %p78, %p79
      %p82 = scmp.ne.s32.totalorder %s65, %s81
      %p83 = scmp.eq.s32.totalorder %s19, 0
      %p84 = por %p82, %p83
      %s85 = ssub.s32 %s20, %s32
      %s86 = ssub.s32 %s21, %s28
      %s87 = sor.u32 %s85, %s86
      %p88 = scmp.eq.s32.totalorder %s87, 0
      %s90 = sadd.s32 %s89, 1
      %s91 = scalar_select %p88, %s89, %s90
      %p94 = pneg %p88
      %p95 = scmp.eq.s32.totalorder %s13, 1
      %p96 = por %p94, %p95
      %p97 = scmp.ne.s32.totalorder %s89, %s92
      %p98 = scmp.eq.s32.totalorder %s13, 0
      %p99 = por %p97, %p98
      %p100 = scmp.ne.s32.totalorder %s89, %s92
      %p101 = scmp.eq.s32.totalorder %s18, 1
      %p102 = por %p100, %p101
      %p103 = scmp.ne.s32.totalorder %s92, %s93
      %p104 = scmp.eq.s32.totalorder %s18, 0
      %p105 = por %p103, %p104
      %p106 = scmp.ne.s32.totalorder %s92, %s93
      %p107 = scmp.eq.s32.totalorder %s19, 1
      %p108 = por %p106, %p107
      %p110 = scmp.ne.s32.totalorder %s93, %s109
      %p111 = scmp.eq.s32.totalorder %s19, 0
      %p112 = por %p110, %p111
      %s114 = sadd.s32 %s113, 1
      %p117 = scmp.eq.s32.totalorder %s13, 1
      %p118 = scmp.ne.s32.totalorder %s113, %s115
      %p119 = scmp.eq.s32.totalorder %s13, 0
      %p120 = por %p118, %p119
      %p121 = scmp.ne.s32.totalorder %s113, %s115
      %p122 = scmp.eq.s32.totalorder %s18, 1
      %p123 = por %p121, %p122
      %p124 = scmp.ne.s32.totalorder %s115, %s116
      %p125 = scmp.eq.s32.totalorder %s18, 0
      %p126 = por %p124, %p125
      %p127 = scmp.ne.s32.totalorder %s115, %s116
      %p128 = scmp.eq.s32.totalorder %s19, 1
      %p129 = por %p127, %p128
      %p131 = scmp.ne.s32.totalorder %s116, %s130
      %p132 = scmp.eq.s32.totalorder %s19, 0
      %p133 = por %p131, %p132
      %s134 = ssub.s32 %s20, %s32
      %s135 = ssub.s32 %s21, %s28
      %s136 = sor.u32 %s134, %s135
      %p137 = scmp.eq.s32.totalorder %s136, 0
      %s139 = sadd.s32 %s138, 1
      %s140 = scalar_select %p137, %s138, %s139
      %p143 = pneg %p137
      %p144 = scmp.eq.s32.totalorder %s13, 1
      %p145 = por %p143, %p144
      %p146 = scmp.ne.s32.totalorder %s138, %s141
      %p147 = scmp.eq.s32.totalorder %s13, 0
      %p148 = por %p146, %p147
      %p149 = scmp.ne.s32.totalorder %s138, %s141
      %p150 = scmp.eq.s32.totalorder %s18, 1
      %p151 = por %p149, %p150
      %p152 = scmp.ne.s32.totalorder %s141, %s142
      %p153 = scmp.eq.s32.totalorder %s18, 0
      %p154 = por %p152, %p153
      %p155 = scmp.ne.s32.totalorder %s141, %s142
      %p156 = scmp.eq.s32.totalorder %s19, 1
      %p157 = por %p155, %p156
      %p159 = scmp.ne.s32.totalorder %s142, %s158
      %p160 = scmp.eq.s32.totalorder %s19, 0
      %p161 = por %p159, %p160
      %p162 = scmp.le.s32.totalorder 1, %s13
      %p163 = scmp.lt.s32.totalorder %s13, 3
      %p164 = pnand %p162, %p163
      %p165 = pneg %p164
      // Predicated region
      $region9: #{tpu_custom_call.1} parent=5 // pred_check
        _
      $region10: #{tpu_custom_call.1} parent=5 // pred_check_branch
        %167 = sbr.rel (%p164) target = $region12
      $region11: #{tpu_custom_call.1} parent=5 // pred_region
        %s168 = ssub.s32 %s13, 1
        // Predicated region
        $region13: #{tpu_custom_call.1} parent=11 // pred_check
          %p169 = pneg %p126
        $region14: #{tpu_custom_call.1} parent=11 // pred_check_branch
          %171 = sbr.rel (%p169) target = $region16
        $region15: #{tpu_custom_call.1} parent=11 // pred_region
          _
        $region16: #{tpu_custom_call.1} parent=11 // pred_fallthru
          _
      $region12: #{tpu_custom_call.1} parent=5 // pred_fallthru
        _
      %p172 = scmp.lt.s32.totalorder %s13, 2
      // Predicated region
      $region17: #{tpu_custom_call.1} parent=5 // pred_check
        %p173 = pneg %p172
      $region18: #{tpu_custom_call.1} parent=5 // pred_check_branch
        %175 = sbr.rel (%p173) target = $region20
      $region19: #{tpu_custom_call.1} parent=5 // pred_region
        // Predicated region
        $region21: #{tpu_custom_call.1} parent=19 // pred_check
          %p176 = pneg %p45
        $region22: #{tpu_custom_call.1} parent=19 // pred_check_branch
          %178 = sbr.rel (%p176) target = $region24
        $region23: #{tpu_custom_call.1} parent=19 // pred_region
          %p179 = scmp.lt.s32.totalorder %s20, 1
          %s180 = scalar_select %p179, %s20, 1
          %s181 = scalar_lea.vmem %s0, %s180
        $region24: #{tpu_custom_call.1} parent=19 // pred_fallthru
          _
        // Predicated region
        $region25: #{tpu_custom_call.1} parent=19 // pred_check
          %p182 = pneg %p71
        $region26: #{tpu_custom_call.1} parent=19 // pred_check_branch
          %184 = sbr.rel (%p182) target = $region28
        $region27: #{tpu_custom_call.1} parent=19 // pred_region
          %p185 = scmp.lt.s32.totalorder %s20, 1
          %s186 = scalar_select %p185, %s20, 1
          %s187 = smul.addr %s186, 16
          %s188 = smul.addr %s187, 4
          %s189 = scalar_lea.vmem %s1, %s188
        $region28: #{tpu_custom_call.1} parent=19 // pred_fallthru
          _
        // Predicated region
        $region29: #{tpu_custom_call.1} parent=19 // pred_check
          %p190 = pneg %p99
        $region30: #{tpu_custom_call.1} parent=19 // pred_check_branch
          %192 = sbr.rel (%p190) target = $region32
        $region31: #{tpu_custom_call.1} parent=19 // pred_region
          %s193 = smul.u32 64, %s21
          %p194 = scmp.lt.s32.totalorder %s20, 1
          %s195 = scalar_select %p194, %s20, 1
          %p196 = scmp.lt.s32.totalorder %s193, 63
          %s197 = scalar_select %p196, %s193, 63
          %s198 = smul.addr %s195, 64
          %s199 = sadd.s32 %s197, %s198
          %s200 = smul.addr %s199, 8
          %s201 = scalar_lea.vmem %s2, %s200
          %s202 = smul.u32 64, %s21
        $region32: #{tpu_custom_call.1} parent=19 // pred_fallthru
          _
      $region20: #{tpu_custom_call.1} parent=5 // pred_fallthru
        _
      %p203 = scmp.le.s32.totalorder 1, %s13
      %p204 = scmp.lt.s32.totalorder %s13, 3
      %p205 = pnand %p203, %p204
      %p206 = pneg %p205
      // Predicated region
      $region33: #{tpu_custom_call.1} parent=5 // pred_check
        _
      $region34: #{tpu_custom_call.1} parent=5 // pred_check_branch
        %208 = sbr.rel (%p205) target = $region36
      $region35: #{tpu_custom_call.1} parent=5 // pred_region
        %s209 = ssub.s32 %s13, 1
        %p210 = scmp.lt.s32.totalorder %s22, 1
        %s211 = scalar_select %p210, %s22, 1
        %s212 = scalar_lea.vmem %s0, %s211
        %p213 = pneg %p51
        %p214 = pneg %p48
        %p215 = scmp.lt.s32.totalorder %s22, 1
        %s216 = scalar_select %p215, %s22, 1
        %s217 = smul.addr %s216, 16
        %s218 = smul.addr %s217, 4
        %s219 = scalar_lea.vmem %s1, %s218
        %p220 = pneg %p77
        %p221 = pneg %p74
        %s222 = smul.u32 64, %s23
        %p223 = scmp.lt.s32.totalorder %s22, 1
        %s224 = scalar_select %p223, %s22, 1
        %p225 = scmp.lt.s32.totalorder %s222, 63
        %s226 = scalar_select %p225, %s222, 63
        %s227 = smul.addr %s224, 64
        %s228 = sadd.s32 %s226, %s227
        %s229 = smul.addr %s228, 8
        %s230 = scalar_lea.vmem %s2, %s229
        %p231 = pneg %p105
        %p232 = pneg %p102
        %p233 = pneg %p126
        %p234 = pneg %p123
        %p235 = pneg %p154
        %p236 = pneg %p151
        %s237 = sand.u32 %s141, 1
        %s238 = scalar_lea.sflag [#allocation3], %s237
        %s239 = sand.u32 %s141, 1
        %s240 = smul.addr %s239, 512
        %s241 = scalar_lea.vmem [#allocation2], %s240
        %p242 = scmp.lt.s32.totalorder %s22, 1
        %s243 = scalar_select %p242, %s22, 1
        %s244 = scalar_lea.vmem %s0, %s243
        %p245 = scmp.lt.s32.totalorder %s22, 1
        %s246 = scalar_select %p245, %s22, 1
        %s247 = smul.addr %s246, 16
        %s248 = smul.addr %s247, 4
        %s249 = scalar_lea.vmem %s1, %s248
        %s250 = smul.u32 64, %s23
        %p251 = scmp.lt.s32.totalorder %s22, 1
        %s252 = scalar_select %p251, %s22, 1
        %p253 = scmp.lt.s32.totalorder %s250, 63
        %s254 = scalar_select %p253, %s250, 63
        %s255 = smul.addr %s252, 64
        %s256 = sadd.s32 %s254, %s255
        %s257 = smul.addr %s256, 8
        %s258 = scalar_lea.vmem %s2, %s257
        %s259 = smul.u32 64, %s23
        %s260 = smul.u32 64, %s23
        %v261 = vld [vmem:[%s244] sm:$0x1]
        %v262 = vld [vmem:[%s249] sm:$0xf]
        %v263 = vld [vmem:[%s249 + $0x4] sm:$0xf]
        %v264 = vld [vmem:[%s249 + $0x8] sm:$0xf]
        %v265 = vld [vmem:[%s249 + $0xc] sm:$0xf]
        %v266 = vld [vmem:[%s249 + $0x10] sm:$0xf]
        %v267 = vld [vmem:[%s249 + $0x14] sm:$0xf]
        %v268 = vld [vmem:[%s249 + $0x18] sm:$0xf]
        %v269 = vld [vmem:[%s249 + $0x1c] sm:$0xf]
        %v270 = vld [vmem:[%s249 + $0x20] sm:$0xf]
        %v271 = vld [vmem:[%s249 + $0x24] sm:$0xf]
        %v272 = vld [vmem:[%s249 + $0x28] sm:$0xf]
        %v273 = vld [vmem:[%s249 + $0x2c] sm:$0xf]
        %v274 = vld [vmem:[%s249 + $0x30] sm:$0xf]
        %v275 = vld [vmem:[%s249 + $0x34] sm:$0xf]
        %v276 = vld [vmem:[%s249 + $0x38] sm:$0xf]
        %v277 = vld [vmem:[%s249 + $0x3c] sm:$0xf]
        %v278 = vld [vmem:[%s258] sm:$0xff]
        %v279 = vld [vmem:[%s258 + $0x8] sm:$0xff]
        %v280 = vld [vmem:[%s258 + $0x10] sm:$0xff]
        %v281 = vld [vmem:[%s258 + $0x18] sm:$0xff]
        %v282 = vld [vmem:[%s258 + $0x20] sm:$0xff]
        %v283 = vld [vmem:[%s258 + $0x28] sm:$0xff]
        %v284 = vld [vmem:[%s258 + $0x30] sm:$0xff]
        %v285 = vld [vmem:[%s258 + $0x38] sm:$0xff]
        %v286 = vld [vmem:[%s258 + $0x40] sm:$0xff]
        %v287 = vld [vmem:[%s258 + $0x48] sm:$0xff]
        %v288 = vld [vmem:[%s258 + $0x50] sm:$0xff]
        %v289 = vld [vmem:[%s258 + $0x58] sm:$0xff]
        %v290 = vld [vmem:[%s258 + $0x60] sm:$0xff]
        %v291 = vld [vmem:[%s258 + $0x68] sm:$0xff]
        %v292 = vld [vmem:[%s258 + $0x70] sm:$0xff]
        %v293 = vld [vmem:[%s258 + $0x78] sm:$0xff]
        %v294 = vld [vmem:[%s258 + $0x80] sm:$0xff]
        %v295 = vld [vmem:[%s258 + $0x88] sm:$0xff]
        %v296 = vld [vmem:[%s258 + $0x90] sm:$0xff]
        %v297 = vld [vmem:[%s258 + $0x98] sm:$0xff]
        %v298 = vld [vmem:[%s258 + $0xa0] sm:$0xff]
        %v299 = vld [vmem:[%s258 + $0xa8] sm:$0xff]
        %v300 = vld [vmem:[%s258 + $0xb0] sm:$0xff]
        %v301 = vld [vmem:[%s258 + $0xb8] sm:$0xff]
        %v302 = vld [vmem:[%s258 + $0xc0] sm:$0xff]
        %v303 = vld [vmem:[%s258 + $0xc8] sm:$0xff]
        %v304 = vld [vmem:[%s258 + $0xd0] sm:$0xff]
        %v305 = vld [vmem:[%s258 + $0xd8] sm:$0xff]
        %v306 = vld [vmem:[%s258 + $0xe0] sm:$0xff]
        %v307 = vld [vmem:[%s258 + $0xe8] sm:$0xff]
        %v308 = vld [vmem:[%s258 + $0xf0] sm:$0xff]
        %v309 = vld [vmem:[%s258 + $0xf8] sm:$0xff]
        %v310 = vld [vmem:[%s258 + $0x100] sm:$0xff]
        %v311 = vld [vmem:[%s258 + $0x108] sm:$0xff]
        %v312 = vld [vmem:[%s258 + $0x110] sm:$0xff]
        %v313 = vld [vmem:[%s258 + $0x118] sm:$0xff]
        %v314 = vld [vmem:[%s258 + $0x120] sm:$0xff]
        %v315 = vld [vmem:[%s258 + $0x128] sm:$0xff]
        %v316 = vld [vmem:[%s258 + $0x130] sm:$0xff]
        %v317 = vld [vmem:[%s258 + $0x138] sm:$0xff]
        %v318 = vld [vmem:[%s258 + $0x140] sm:$0xff]
        %v319 = vld [vmem:[%s258 + $0x148] sm:$0xff]
        %v320 = vld [vmem:[%s258 + $0x150] sm:$0xff]
        %v321 = vld [vmem:[%s258 + $0x158] sm:$0xff]
        %v322 = vld [vmem:[%s258 + $0x160] sm:$0xff]
        %v323 = vld [vmem:[%s258 + $0x168] sm:$0xff]
        %v324 = vld [vmem:[%s258 + $0x170] sm:$0xff]
        %v325 = vld [vmem:[%s258 + $0x178] sm:$0xff]
        %v326 = vld [vmem:[%s258 + $0x180] sm:$0xff]
        %v327 = vld [vmem:[%s258 + $0x188] sm:$0xff]
        %v328 = vld [vmem:[%s258 + $0x190] sm:$0xff]
        %v329 = vld [vmem:[%s258 + $0x198] sm:$0xff]
        %v330 = vld [vmem:[%s258 + $0x1a0] sm:$0xff]
        %v331 = vld [vmem:[%s258 + $0x1a8] sm:$0xff]
        %v332 = vld [vmem:[%s258 + $0x1b0] sm:$0xff]
        %v333 = vld [vmem:[%s258 + $0x1b8] sm:$0xff]
        %v334 = vld [vmem:[%s258 + $0x1c0] sm:$0xff]
        %v335 = vld [vmem:[%s258 + $0x1c8] sm:$0xff]
        %v336 = vld [vmem:[%s258 + $0x1d0] sm:$0xff]
        %v337 = vld [vmem:[%s258 + $0x1d8] sm:$0xff]
        %v338 = vld [vmem:[%s258 + $0x1e0] sm:$0xff]
        %v339 = vld [vmem:[%s258 + $0x1e8] sm:$0xff]
        %v340 = vld [vmem:[%s258 + $0x1f0] sm:$0xff]
        %v341 = vld [vmem:[%s258 + $0x1f8] sm:$0xff]
        %v342 = vlaneseq
        %v343 = vand.u32 %v342, 127
        %344 = vset.pattern.permute.xlu0 0
        %345 = vperm.xlu0 %344, %v278
        %v346 = vpop.permute.xlu0 %345
        %347 = vset.pattern.permute.xlu0 0
        %348 = vperm.xlu0 %347, %v279
        %v349 = vpop.permute.xlu0 %348
        %350 = vset.pattern.permute.xlu0 0
        %351 = vperm.xlu0 %350, %v280
        %v352 = vpop.permute.xlu0 %351
        %353 = vset.pattern.permute.xlu0 0
        %354 = vperm.xlu0 %353, %v281
        %v355 = vpop.permute.xlu0 %354
        %356 = vset.pattern.permute.xlu0 0
        %357 = vperm.xlu0 %356, %v282
        %v358 = vpop.permute.xlu0 %357
        %359 = vset.pattern.permute.xlu0 0
        %360 = vperm.xlu0 %359, %v283
        %v361 = vpop.permute.xlu0 %360
        %362 = vset.pattern.permute.xlu0 0
        %363 = vperm.xlu0 %362, %v284
        %v364 = vpop.permute.xlu0 %363
        %365 = vset.pattern.permute.xlu0 0
        %366 = vperm.xlu0 %365, %v285
        %v367 = vpop.permute.xlu0 %366
        %368 = vset.pattern.permute.xlu0 0
        %369 = vperm.xlu0 %368, %v286
        %v370 = vpop.permute.xlu0 %369
        %371 = vset.pattern.permute.xlu0 0
        %372 = vperm.xlu0 %371, %v287
        %v373 = vpop.permute.xlu0 %372
        %374 = vset.pattern.permute.xlu0 0
        %375 = vperm.xlu0 %374, %v288
        %v376 = vpop.permute.xlu0 %375
        %377 = vset.pattern.permute.xlu0 0
        %378 = vperm.xlu0 %377, %v289
        %v379 = vpop.permute.xlu0 %378
        %380 = vset.pattern.permute.xlu0 0
        %381 = vperm.xlu0 %380, %v290
        %v382 = vpop.permute.xlu0 %381
        %383 = vset.pattern.permute.xlu0 0
        %384 = vperm.xlu0 %383, %v291
        %v385 = vpop.permute.xlu0 %384
        %386 = vset.pattern.permute.xlu0 0
        %387 = vperm.xlu0 %386, %v292
        %v388 = vpop.permute.xlu0 %387
        %389 = vset.pattern.permute.xlu0 0
        %390 = vperm.xlu0 %389, %v293
        %v391 = vpop.permute.xlu0 %390
        %392 = vset.pattern.permute.xlu0 0
        %393 = vperm.xlu0 %392, %v294
        %v394 = vpop.permute.xlu0 %393
        %395 = vset.pattern.permute.xlu0 0
        %396 = vperm.xlu0 %395, %v295
        %v397 = vpop.permute.xlu0 %396
        %398 = vset.pattern.permute.xlu0 0
        %399 = vperm.xlu0 %398, %v296
        %v400 = vpop.permute.xlu0 %399
        %401 = vset.pattern.permute.xlu0 0
        %402 = vperm.xlu0 %401, %v297
        %v403 = vpop.permute.xlu0 %402
        %404 = vset.pattern.permute.xlu0 0
        %405 = vperm.xlu0 %404, %v298
        %v406 = vpop.permute.xlu0 %405
        %407 = vset.pattern.permute.xlu0 0
        %408 = vperm.xlu0 %407, %v299
        %v409 = vpop.permute.xlu0 %408
        %410 = vset.pattern.permute.xlu0 0
        %411 = vperm.xlu0 %410, %v300
        %v412 = vpop.permute.xlu0 %411
        %413 = vset.pattern.permute.xlu0 0
        %414 = vperm.xlu0 %413, %v301
        %v415 = vpop.permute.xlu0 %414
        %416 = vset.pattern.permute.xlu0 0
        %417 = vperm.xlu0 %416, %v302
        %v418 = vpop.permute.xlu0 %417
        %419 = vset.pattern.permute.xlu0 0
        %420 = vperm.xlu0 %419, %v303
        %v421 = vpop.permute.xlu0 %420
        %422 = vset.pattern.permute.xlu0 0
        %423 = vperm.xlu0 %422, %v304
        %v424 = vpop.permute.xlu0 %423
        %425 = vset.pattern.permute.xlu0 0
        %426 = vperm.xlu0 %425, %v305
        %v427 = vpop.permute.xlu0 %426
        %428 = vset.pattern.permute.xlu0 0
        %429 = vperm.xlu0 %428, %v306
        %v430 = vpop.permute.xlu0 %429
        %431 = vset.pattern.permute.xlu0 0
        %432 = vperm.xlu0 %431, %v307
        %v433 = vpop.permute.xlu0 %432
        %434 = vset.pattern.permute.xlu0 0
        %435 = vperm.xlu0 %434, %v308
        %v436 = vpop.permute.xlu0 %435
        %437 = vset.pattern.permute.xlu0 0
        %438 = vperm.xlu0 %437, %v309
        %v439 = vpop.permute.xlu0 %438
        %440 = vset.pattern.permute.xlu0 0
        %441 = vperm.xlu0 %440, %v310
        %v442 = vpop.permute.xlu0 %441
        %443 = vset.pattern.permute.xlu0 0
        %444 = vperm.xlu0 %443, %v311
        %v445 = vpop.permute.xlu0 %444
        %446 = vset.pattern.permute.xlu0 0
        %447 = vperm.xlu0 %446, %v312
        %v448 = vpop.permute.xlu0 %447
        %449 = vset.pattern.permute.xlu0 0
        %450 = vperm.xlu0 %449, %v313
        %v451 = vpop.permute.xlu0 %450
        %452 = vset.pattern.permute.xlu0 0
        %453 = vperm.xlu0 %452, %v314
        %v454 = vpop.permute.xlu0 %453
        %455 = vset.pattern.permute.xlu0 0
        %456 = vperm.xlu0 %455, %v315
        %v457 = vpop.permute.xlu0 %456
        %458 = vset.pattern.permute.xlu0 0
        %459 = vperm.xlu0 %458, %v316
        %v460 = vpop.permute.xlu0 %459
        %461 = vset.pattern.permute.xlu0 0
        %462 = vperm.xlu0 %461, %v317
        %v463 = vpop.permute.xlu0 %462
        %464 = vset.pattern.permute.xlu0 0
        %465 = vperm.xlu0 %464, %v318
        %v466 = vpop.permute.xlu0 %465
        %467 = vset.pattern.permute.xlu0 0
        %468 = vperm.xlu0 %467, %v319
        %v469 = vpop.permute.xlu0 %468
        %470 = vset.pattern.permute.xlu0 0
        %471 = vperm.xlu0 %470, %v320
        %v472 = vpop.permute.xlu0 %471
        %473 = vset.pattern.permute.xlu0 0
        %474 = vperm.xlu0 %473, %v321
        %v475 = vpop.permute.xlu0 %474
        %476 = vset.pattern.permute.xlu0 0
        %477 = vperm.xlu0 %476, %v322
        %v478 = vpop.permute.xlu0 %477
        %479 = vset.pattern.permute.xlu0 0
        %480 = vperm.xlu0 %479, %v323
        %v481 = vpop.permute.xlu0 %480
        %482 = vset.pattern.permute.xlu0 0
        %483 = vperm.xlu0 %482, %v324
        %v484 = vpop.permute.xlu0 %483
        %485 = vset.pattern.permute.xlu0 0
        %486 = vperm.xlu0 %485, %v325
        %v487 = vpop.permute.xlu0 %486
        %488 = vset.pattern.permute.xlu0 0
        %489 = vperm.xlu0 %488, %v326
        %v490 = vpop.permute.xlu0 %489
        %491 = vset.pattern.permute.xlu0 0
        %492 = vperm.xlu0 %491, %v327
        %v493 = vpop.permute.xlu0 %492
        %494 = vset.pattern.permute.xlu0 0
        %495 = vperm.xlu0 %494, %v328
        %v496 = vpop.permute.xlu0 %495
        %497 = vset.pattern.permute.xlu0 0
        %498 = vperm.xlu0 %497, %v329
        %v499 = vpop.permute.xlu0 %498
        %500 = vset.pattern.permute.xlu0 0
        %501 = vperm.xlu0 %500, %v330
        %v502 = vpop.permute.xlu0 %501
        %503 = vset.pattern.permute.xlu0 0
        %504 = vperm.xlu0 %503, %v331
        %v505 = vpop.permute.xlu0 %504
        %506 = vset.pattern.permute.xlu0 0
        %507 = vperm.xlu0 %506, %v332
        %v508 = vpop.permute.xlu0 %507
        %509 = vset.pattern.permute.xlu0 0
        %510 = vperm.xlu0 %509, %v333
        %v511 = vpop.permute.xlu0 %510
        %512 = vset.pattern.permute.xlu0 0
        %513 = vperm.xlu0 %512, %v334
        %v514 = vpop.permute.xlu0 %513
        %515 = vset.pattern.permute.xlu0 0
        %516 = vperm.xlu0 %515, %v335
        %v517 = vpop.permute.xlu0 %516
        %518 = vset.pattern.permute.xlu0 0
        %519 = vperm.xlu0 %518, %v336
        %v520 = vpop.permute.xlu0 %519
        %521 = vset.pattern.permute.xlu0 0
        %522 = vperm.xlu0 %521, %v337
        %v523 = vpop.permute.xlu0 %522
        %524 = vset.pattern.permute.xlu0 0
        %525 = vperm.xlu0 %524, %v338
        %v526 = vpop.permute.xlu0 %525
        %527 = vset.pattern.permute.xlu0 0
        %528 = vperm.xlu0 %527, %v339
        %v529 = vpop.permute.xlu0 %528
        %530 = vset.pattern.permute.xlu0 0
        %531 = vperm.xlu0 %530, %v340
        %v532 = vpop.permute.xlu0 %531
        %533 = vset.pattern.permute.xlu0 0
        %534 = vperm.xlu0 %533, %v341
        %v535 = vpop.permute.xlu0 %534
        %vm536 = vcmp.ge.s32.totalorder %v343, %v346
        %vm537 = vcmp.ge.s32.totalorder %v343, %v349
        %vm538 = vcmp.ge.s32.totalorder %v343, %v352
        %vm539 = vcmp.ge.s32.totalorder %v343, %v355
        %vm540 = vcmp.ge.s32.totalorder %v343, %v358
        %vm541 = vcmp.ge.s32.totalorder %v343, %v361
        %vm542 = vcmp.ge.s32.totalorder %v343, %v364
        %vm543 = vcmp.ge.s32.totalorder %v343, %v367
        %vm544 = vcmp.ge.s32.totalorder %v343, %v370
        %vm545 = vcmp.ge.s32.totalorder %v343, %v373
        %vm546 = vcmp.ge.s32.totalorder %v343, %v376
        %vm547 = vcmp.ge.s32.totalorder %v343, %v379
        %vm548 = vcmp.ge.s32.totalorder %v343, %v382
        %vm549 = vcmp.ge.s32.totalorder %v343, %v385
        %vm550 = vcmp.ge.s32.totalorder %v343, %v388
        %vm551 = vcmp.ge.s32.totalorder %v343, %v391
        %vm552 = vcmp.ge.s32.totalorder %v343, %v394
        %vm553 = vcmp.ge.s32.totalorder %v343, %v397
        %vm554 = vcmp.ge.s32.totalorder %v343, %v400
        %vm555 = vcmp.ge.s32.totalorder %v343, %v403
        %vm556 = vcmp.ge.s32.totalorder %v343, %v406
        %vm557 = vcmp.ge.s32.totalorder %v343, %v409
        %vm558 = vcmp.ge.s32.totalorder %v343, %v412
        %vm559 = vcmp.ge.s32.totalorder %v343, %v415
        %vm560 = vcmp.ge.s32.totalorder %v343, %v418
        %vm561 = vcmp.ge.s32.totalorder %v343, %v421
        %vm562 = vcmp.ge.s32.totalorder %v343, %v424
        %vm563 = vcmp.ge.s32.totalorder %v343, %v427
        %vm564 = vcmp.ge.s32.totalorder %v343, %v430
        %vm565 = vcmp.ge.s32.totalorder %v343, %v433
        %vm566 = vcmp.ge.s32.totalorder %v343, %v436
        %vm567 = vcmp.ge.s32.totalorder %v343, %v439
        %vm568 = vcmp.ge.s32.totalorder %v343, %v442
        %vm569 = vcmp.ge.s32.totalorder %v343, %v445
        %vm570 = vcmp.ge.s32.totalorder %v343, %v448
        %vm571 = vcmp.ge.s32.totalorder %v343, %v451
        %vm572 = vcmp.ge.s32.totalorder %v343, %v454
        %vm573 = vcmp.ge.s32.totalorder %v343, %v457
        %vm574 = vcmp.ge.s32.totalorder %v343, %v460
        %vm575 = vcmp.ge.s32.totalorder %v343, %v463
        %vm576 = vcmp.ge.s32.totalorder %v343, %v466
        %vm577 = vcmp.ge.s32.totalorder %v343, %v469
        %vm578 = vcmp.ge.s32.totalorder %v343, %v472
        %vm579 = vcmp.ge.s32.totalorder %v343, %v475
        %vm580 = vcmp.ge.s32.totalorder %v343, %v478
        %vm581 = vcmp.ge.s32.totalorder %v343, %v481
        %vm582 = vcmp.ge.s32.totalorder %v343, %v484
        %vm583 = vcmp.ge.s32.totalorder %v343, %v487
        %vm584 = vcmp.ge.s32.totalorder %v343, %v490
        %vm585 = vcmp.ge.s32.totalorder %v343, %v493
        %vm586 = vcmp.ge.s32.totalorder %v343, %v496
        %vm587 = vcmp.ge.s32.totalorder %v343, %v499
        %vm588 = vcmp.ge.s32.totalorder %v343, %v502
        %vm589 = vcmp.ge.s32.totalorder %v343, %v505
        %vm590 = vcmp.ge.s32.totalorder %v343, %v508
        %vm591 = vcmp.ge.s32.totalorder %v343, %v511
        %vm592 = vcmp.ge.s32.totalorder %v343, %v514
        %vm593 = vcmp.ge.s32.totalorder %v343, %v517
        %vm594 = vcmp.ge.s32.totalorder %v343, %v520
        %vm595 = vcmp.ge.s32.totalorder %v343, %v523
        %vm596 = vcmp.ge.s32.totalorder %v343, %v526
        %vm597 = vcmp.ge.s32.totalorder %v343, %v529
        %vm598 = vcmp.ge.s32.totalorder %v343, %v532
        %vm599 = vcmp.ge.s32.totalorder %v343, %v535
        %600 = vset.pattern.permute.xlu0 1
        %601 = vperm.xlu0 %600, %v278
        %v602 = vpop.permute.xlu0 %601
        %603 = vset.pattern.permute.xlu0 1
        %604 = vperm.xlu0 %603, %v279
        %v605 = vpop.permute.xlu0 %604
        %606 = vset.pattern.permute.xlu0 1
        %607 = vperm.xlu0 %606, %v280
        %v608 = vpop.permute.xlu0 %607
        %609 = vset.pattern.permute.xlu0 1
        %610 = vperm.xlu0 %609, %v281
        %v611 = vpop.permute.xlu0 %610
        %612 = vset.pattern.permute.xlu0 1
        %613 = vperm.xlu0 %612, %v282
        %v614 = vpop.permute.xlu0 %613
        %615 = vset.pattern.permute.xlu0 1
        %616 = vperm.xlu0 %615, %v283
        %v617 = vpop.permute.xlu0 %616
        %618 = vset.pattern.permute.xlu0 1
        %619 = vperm.xlu0 %618, %v284
        %v620 = vpop.permute.xlu0 %619
        %621 = vset.pattern.permute.xlu0 1
        %622 = vperm.xlu0 %621, %v285
        %v623 = vpop.permute.xlu0 %622
        %624 = vset.pattern.permute.xlu0 1
        %625 = vperm.xlu0 %624, %v286
        %v626 = vpop.permute.xlu0 %625
        %627 = vset.pattern.permute.xlu0 1
        %628 = vperm.xlu0 %627, %v287
        %v629 = vpop.permute.xlu0 %628
        %630 = vset.pattern.permute.xlu0 1
        %631 = vperm.xlu0 %630, %v288
        %v632 = vpop.permute.xlu0 %631
        %633 = vset.pattern.permute.xlu0 1
        %634 = vperm.xlu0 %633, %v289
        %v635 = vpop.permute.xlu0 %634
        %636 = vset.pattern.permute.xlu0 1
        %637 = vperm.xlu0 %636, %v290
        %v638 = vpop.permute.xlu0 %637
        %639 = vset.pattern.permute.xlu0 1
        %640 = vperm.xlu0 %639, %v291
        %v641 = vpop.permute.xlu0 %640
        %642 = vset.pattern.permute.xlu0 1
        %643 = vperm.xlu0 %642, %v292
        %v644 = vpop.permute.xlu0 %643
        %645 = vset.pattern.permute.xlu0 1
        %646 = vperm.xlu0 %645, %v293
        %v647 = vpop.permute.xlu0 %646
        %648 = vset.pattern.permute.xlu0 1
        %649 = vperm.xlu0 %648, %v294
        %v650 = vpop.permute.xlu0 %649
        %651 = vset.pattern.permute.xlu0 1
        %652 = vperm.xlu0 %651, %v295
        %v653 = vpop.permute.xlu0 %652
        %654 = vset.pattern.permute.xlu0 1
        %655 = vperm.xlu0 %654, %v296
        %v656 = vpop.permute.xlu0 %655
        %657 = vset.pattern.permute.xlu0 1
        %658 = vperm.xlu0 %657, %v297
        %v659 = vpop.permute.xlu0 %658
        %660 = vset.pattern.permute.xlu0 1
        %661 = vperm.xlu0 %660, %v298
        %v662 = vpop.permute.xlu0 %661
        %663 = vset.pattern.permute.xlu0 1
        %664 = vperm.xlu0 %663, %v299
        %v665 = vpop.permute.xlu0 %664
        %666 = vset.pattern.permute.xlu0 1
        %667 = vperm.xlu0 %666, %v300
        %v668 = vpop.permute.xlu0 %667
        %669 = vset.pattern.permute.xlu0 1
        %670 = vperm.xlu0 %669, %v301
        %v671 = vpop.permute.xlu0 %670
        %672 = vset.pattern.permute.xlu0 1
        %673 = vperm.xlu0 %672, %v302
        %v674 = vpop.permute.xlu0 %673
        %675 = vset.pattern.permute.xlu0 1
        %676 = vperm.xlu0 %675, %v303
        %v677 = vpop.permute.xlu0 %676
        %678 = vset.pattern.permute.xlu0 1
        %679 = vperm.xlu0 %678, %v304
        %v680 = vpop.permute.xlu0 %679
        %681 = vset.pattern.permute.xlu0 1
        %682 = vperm.xlu0 %681, %v305
        %v683 = vpop.permute.xlu0 %682
        %684 = vset.pattern.permute.xlu0 1
        %685 = vperm.xlu0 %684, %v306
        %v686 = vpop.permute.xlu0 %685
        %687 = vset.pattern.permute.xlu0 1
        %688 = vperm.xlu0 %687, %v307
        %v689 = vpop.permute.xlu0 %688
        %690 = vset.pattern.permute.xlu0 1
        %691 = vperm.xlu0 %690, %v308
        %v692 = vpop.permute.xlu0 %691
        %693 = vset.pattern.permute.xlu0 1
        %694 = vperm.xlu0 %693, %v309
        %v695 = vpop.permute.xlu0 %694
        %696 = vset.pattern.permute.xlu0 1
        %697 = vperm.xlu0 %696, %v310
        %v698 = vpop.permute.xlu0 %697
        %699 = vset.pattern.permute.xlu0 1
        %700 = vperm.xlu0 %699, %v311
        %v701 = vpop.permute.xlu0 %700
        %702 = vset.pattern.permute.xlu0 1
        %703 = vperm.xlu0 %702, %v312
        %v704 = vpop.permute.xlu0 %703
        %705 = vset.pattern.permute.xlu0 1
        %706 = vperm.xlu0 %705, %v313
        %v707 = vpop.permute.xlu0 %706
        %708 = vset.pattern.permute.xlu0 1
        %709 = vperm.xlu0 %708, %v314
        %v710 = vpop.permute.xlu0 %709
        %711 = vset.pattern.permute.xlu0 1
        %712 = vperm.xlu0 %711, %v315
        %v713 = vpop.permute.xlu0 %712
        %714 = vset.pattern.permute.xlu0 1
        %715 = vperm.xlu0 %714, %v316
        %v716 = vpop.permute.xlu0 %715
        %717 = vset.pattern.permute.xlu0 1
        %718 = vperm.xlu0 %717, %v317
        %v719 = vpop.permute.xlu0 %718
        %720 = vset.pattern.permute.xlu0 1
        %721 = vperm.xlu0 %720, %v318
        %v722 = vpop.permute.xlu0 %721
        %723 = vset.pattern.permute.xlu0 1
        %724 = vperm.xlu0 %723, %v319
        %v725 = vpop.permute.xlu0 %724
        %726 = vset.pattern.permute.xlu0 1
        %727 = vperm.xlu0 %726, %v320
        %v728 = vpop.permute.xlu0 %727
        %729 = vset.pattern.permute.xlu0 1
        %730 = vperm.xlu0 %729, %v321
        %v731 = vpop.permute.xlu0 %730
        %732 = vset.pattern.permute.xlu0 1
        %733 = vperm.xlu0 %732, %v322
        %v734 = vpop.permute.xlu0 %733
        %735 = vset.pattern.permute.xlu0 1
        %736 = vperm.xlu0 %735, %v323
        %v737 = vpop.permute.xlu0 %736
        %738 = vset.pattern.permute.xlu0 1
        %739 = vperm.xlu0 %738, %v324
        %v740 = vpop.permute.xlu0 %739
        %741 = vset.pattern.permute.xlu0 1
        %742 = vperm.xlu0 %741, %v325
        %v743 = vpop.permute.xlu0 %742
        %744 = vset.pattern.permute.xlu0 1
        %745 = vperm.xlu0 %744, %v326
        %v746 = vpop.permute.xlu0 %745
        %747 = vset.pattern.permute.xlu0 1
        %748 = vperm.xlu0 %747, %v327
        %v749 = vpop.permute.xlu0 %748
        %750 = vset.pattern.permute.xlu0 1
        %751 = vperm.xlu0 %750, %v328
        %v752 = vpop.permute.xlu0 %751
        %753 = vset.pattern.permute.xlu0 1
        %754 = vperm.xlu0 %753, %v329
        %v755 = vpop.permute.xlu0 %754
        %756 = vset.pattern.permute.xlu0 1
        %757 = vperm.xlu0 %756, %v330
        %v758 = vpop.permute.xlu0 %757
        %759 = vset.pattern.permute.xlu0 1
        %760 = vperm.xlu0 %759, %v331
        %v761 = vpop.permute.xlu0 %760
        %762 = vset.pattern.permute.xlu0 1
        %763 = vperm.xlu0 %762, %v332
        %v764 = vpop.permute.xlu0 %763
        %765 = vset.pattern.permute.xlu0 1
        %766 = vperm.xlu0 %765, %v333
        %v767 = vpop.permute.xlu0 %766
        %768 = vset.pattern.permute.xlu0 1
        %769 = vperm.xlu0 %768, %v334
        %v770 = vpop.permute.xlu0 %769
        %771 = vset.pattern.permute.xlu0 1
        %772 = vperm.xlu0 %771, %v335
        %v773 = vpop.permute.xlu0 %772
        %774 = vset.pattern.permute.xlu0 1
        %775 = vperm.xlu0 %774, %v336
        %v776 = vpop.permute.xlu0 %775
        %777 = vset.pattern.permute.xlu0 1
        %778 = vperm.xlu0 %777, %v337
        %v779 = vpop.permute.xlu0 %778
        %780 = vset.pattern.permute.xlu0 1
        %781 = vperm.xlu0 %780, %v338
        %v782 = vpop.permute.xlu0 %781
        %783 = vset.pattern.permute.xlu0 1
        %784 = vperm.xlu0 %783, %v339
        %v785 = vpop.permute.xlu0 %784
        %786 = vset.pattern.permute.xlu0 1
        %787 = vperm.xlu0 %786, %v340
        %v788 = vpop.permute.xlu0 %787
        %789 = vset.pattern.permute.xlu0 1
        %790 = vperm.xlu0 %789, %v341
        %v791 = vpop.permute.xlu0 %790
        %vm792 = vcmp.le.s32.totalorder %v343, %v602
        %vm793 = vcmp.le.s32.totalorder %v343, %v605
        %vm794 = vcmp.le.s32.totalorder %v343, %v608
        %vm795 = vcmp.le.s32.totalorder %v343, %v611
        %vm796 = vcmp.le.s32.totalorder %v343, %v614
        %vm797 = vcmp.le.s32.totalorder %v343, %v617
        %vm798 = vcmp.le.s32.totalorder %v343, %v620
        %vm799 = vcmp.le.s32.totalorder %v343, %v623
        %vm800 = vcmp.le.s32.totalorder %v343, %v626
        %vm801 = vcmp.le.s32.totalorder %v343, %v629
        %vm802 = vcmp.le.s32.totalorder %v343, %v632
        %vm803 = vcmp.le.s32.totalorder %v343, %v635
        %vm804 = vcmp.le.s32.totalorder %v343, %v638
        %vm805 = vcmp.le.s32.totalorder %v343, %v641
        %vm806 = vcmp.le.s32.totalorder %v343, %v644
        %vm807 = vcmp.le.s32.totalorder %v343, %v647
        %vm808 = vcmp.le.s32.totalorder %v343, %v650
        %vm809 = vcmp.le.s32.totalorder %v343, %v653
        %vm810 = vcmp.le.s32.totalorder %v343, %v656
        %vm811 = vcmp.le.s32.totalorder %v343, %v659
        %vm812 = vcmp.le.s32.totalorder %v343, %v662
        %vm813 = vcmp.le.s32.totalorder %v343, %v665
        %vm814 = vcmp.le.s32.totalorder %v343, %v668
        %vm815 = vcmp.le.s32.totalorder %v343, %v671
        %vm816 = vcmp.le.s32.totalorder %v343, %v674
        %vm817 = vcmp.le.s32.totalorder %v343, %v677
        %vm818 = vcmp.le.s32.totalorder %v343, %v680
        %vm819 = vcmp.le.s32.totalorder %v343, %v683
        %vm820 = vcmp.le.s32.totalorder %v343, %v686
        %vm821 = vcmp.le.s32.totalorder %v343, %v689
        %vm822 = vcmp.le.s32.totalorder %v343, %v692
        %vm823 = vcmp.le.s32.totalorder %v343, %v695
        %vm824 = vcmp.le.s32.totalorder %v343, %v698
        %vm825 = vcmp.le.s32.totalorder %v343, %v701
        %vm826 = vcmp.le.s32.totalorder %v343, %v704
        %vm827 = vcmp.le.s32.totalorder %v343, %v707
        %vm828 = vcmp.le.s32.totalorder %v343, %v710
        %vm829 = vcmp.le.s32.totalorder %v343, %v713
        %vm830 = vcmp.le.s32.totalorder %v343, %v716
        %vm831 = vcmp.le.s32.totalorder %v343, %v719
        %vm832 = vcmp.le.s32.totalorder %v343, %v722
        %vm833 = vcmp.le.s32.totalorder %v343, %v725
        %vm834 = vcmp.le.s32.totalorder %v343, %v728
        %vm835 = vcmp.le.s32.totalorder %v343, %v731
        %vm836 = vcmp.le.s32.totalorder %v343, %v734
        %vm837 = vcmp.le.s32.totalorder %v343, %v737
        %vm838 = vcmp.le.s32.totalorder %v343, %v740
        %vm839 = vcmp.le.s32.totalorder %v343, %v743
        %vm840 = vcmp.le.s32.totalorder %v343, %v746
        %vm841 = vcmp.le.s32.totalorder %v343, %v749
        %vm842 = vcmp.le.s32.totalorder %v343, %v752
        %vm843 = vcmp.le.s32.totalorder %v343, %v755
        %vm844 = vcmp.le.s32.totalorder %v343, %v758
        %vm845 = vcmp.le.s32.totalorder %v343, %v761
        %vm846 = vcmp.le.s32.totalorder %v343, %v764
        %vm847 = vcmp.le.s32.totalorder %v343, %v767
        %vm848 = vcmp.le.s32.totalorder %v343, %v770
        %vm849 = vcmp.le.s32.totalorder %v343, %v773
        %vm850 = vcmp.le.s32.totalorder %v343, %v776
        %vm851 = vcmp.le.s32.totalorder %v343, %v779
        %vm852 = vcmp.le.s32.totalorder %v343, %v782
        %vm853 = vcmp.le.s32.totalorder %v343, %v785
        %vm854 = vcmp.le.s32.totalorder %v343, %v788
        %vm855 = vcmp.le.s32.totalorder %v343, %v791
        %vm856 = vmand %vm536, %vm792
        %vm857 = vmand %vm537, %vm793
        %vm858 = vmand %vm538, %vm794
        %vm859 = vmand %vm539, %vm795
        %vm860 = vmand %vm540, %vm796
        %vm861 = vmand %vm541, %vm797
        %vm862 = vmand %vm542, %vm798
        %vm863 = vmand %vm543, %vm799
        %vm864 = vmand %vm544, %vm800
        %vm865 = vmand %vm545, %vm801
        %vm866 = vmand %vm546, %vm802
        %vm867 = vmand %vm547, %vm803
        %vm868 = vmand %vm548, %vm804
        %vm869 = vmand %vm549, %vm805
        %vm870 = vmand %vm550, %vm806
        %vm871 = vmand %vm551, %vm807
        %vm872 = vmand %vm552, %vm808
        %vm873 = vmand %vm553, %vm809
        %vm874 = vmand %vm554, %vm810
        %vm875 = vmand %vm555, %vm811
        %vm876 = vmand %vm556, %vm812
        %vm877 = vmand %vm557, %vm813
        %vm878 = vmand %vm558, %vm814
        %vm879 = vmand %vm559, %vm815
        %vm880 = vmand %vm560, %vm816
        %vm881 = vmand %vm561, %vm817
        %vm882 = vmand %vm562, %vm818
        %vm883 = vmand %vm563, %vm819
        %vm884 = vmand %vm564, %vm820
        %vm885 = vmand %vm565, %vm821
        %vm886 = vmand %vm566, %vm822
        %vm887 = vmand %vm567, %vm823
        %vm888 = vmand %vm568, %vm824
        %vm889 = vmand %vm569, %vm825
        %vm890 = vmand %vm570, %vm826
        %vm891 = vmand %vm571, %vm827
        %vm892 = vmand %vm572, %vm828
        %vm893 = vmand %vm573, %vm829
        %vm894 = vmand %vm574, %vm830
        %vm895 = vmand %vm575, %vm831
        %vm896 = vmand %vm576, %vm832
        %vm897 = vmand %vm577, %vm833
        %vm898 = vmand %vm578, %vm834
        %vm899 = vmand %vm579, %vm835
        %vm900 = vmand %vm580, %vm836
        %vm901 = vmand %vm581, %vm837
        %vm902 = vmand %vm582, %vm838
        %vm903 = vmand %vm583, %vm839
        %vm904 = vmand %vm584, %vm840
        %vm905 = vmand %vm585, %vm841
        %vm906 = vmand %vm586, %vm842
        %vm907 = vmand %vm587, %vm843
        %vm908 = vmand %vm588, %vm844
        %vm909 = vmand %vm589, %vm845
        %vm910 = vmand %vm590, %vm846
        %vm911 = vmand %vm591, %vm847
        %vm912 = vmand %vm592, %vm848
        %vm913 = vmand %vm593, %vm849
        %vm914 = vmand %vm594, %vm850
        %vm915 = vmand %vm595, %vm851
        %vm916 = vmand %vm596, %vm852
        %vm917 = vmand %vm597, %vm853
        %vm918 = vmand %vm598, %vm854
        %vm919 = vmand %vm599, %vm855
        %v920 = vsel %vm856, 1.0, 0.0
        %v921 = vsel %vm857, 1.0, 0.0
        %v922 = vsel %vm858, 1.0, 0.0
        %v923 = vsel %vm859, 1.0, 0.0
        %v924 = vsel %vm860, 1.0, 0.0
        %v925 = vsel %vm861, 1.0, 0.0
        %v926 = vsel %vm862, 1.0, 0.0
        %v927 = vsel %vm863, 1.0, 0.0
        %v928 = vsel %vm864, 1.0, 0.0
        %v929 = vsel %vm865, 1.0, 0.0
        %v930 = vsel %vm866, 1.0, 0.0
        %v931 = vsel %vm867, 1.0, 0.0
        %v932 = vsel %vm868, 1.0, 0.0
        %v933 = vsel %vm869, 1.0, 0.0
        %v934 = vsel %vm870, 1.0, 0.0
        %v935 = vsel %vm871, 1.0, 0.0
        %v936 = vsel %vm872, 1.0, 0.0
        %v937 = vsel %vm873, 1.0, 0.0
        %v938 = vsel %vm874, 1.0, 0.0
        %v939 = vsel %vm875, 1.0, 0.0
        %v940 = vsel %vm876, 1.0, 0.0
        %v941 = vsel %vm877, 1.0, 0.0
        %v942 = vsel %vm878, 1.0, 0.0
        %v943 = vsel %vm879, 1.0, 0.0
        %v944 = vsel %vm880, 1.0, 0.0
        %v945 = vsel %vm881, 1.0, 0.0
        %v946 = vsel %vm882, 1.0, 0.0
        %v947 = vsel %vm883, 1.0, 0.0
        %v948 = vsel %vm884, 1.0, 0.0
        %v949 = vsel %vm885, 1.0, 0.0
        %v950 = vsel %vm886, 1.0, 0.0
        %v951 = vsel %vm887, 1.0, 0.0
        %v952 = vsel %vm888, 1.0, 0.0
        %v953 = vsel %vm889, 1.0, 0.0
        %v954 = vsel %vm890, 1.0, 0.0
        %v955 = vsel %vm891, 1.0, 0.0
        %v956 = vsel %vm892, 1.0, 0.0
        %v957 = vsel %vm893, 1.0, 0.0
        %v958 = vsel %vm894, 1.0, 0.0
        %v959 = vsel %vm895, 1.0, 0.0
        %v960 = vsel %vm896, 1.0, 0.0
        %v961 = vsel %vm897, 1.0, 0.0
        %v962 = vsel %vm898, 1.0, 0.0
        %v963 = vsel %vm899, 1.0, 0.0
        %v964 = vsel %vm900, 1.0, 0.0
        %v965 = vsel %vm901, 1.0, 0.0
        %v966 = vsel %vm902, 1.0, 0.0
        %v967 = vsel %vm903, 1.0, 0.0
        %v968 = vsel %vm904, 1.0, 0.0
        %v969 = vsel %vm905, 1.0, 0.0
        %v970 = vsel %vm906, 1.0, 0.0
        %v971 = vsel %vm907, 1.0, 0.0
        %v972 = vsel %vm908, 1.0, 0.0
        %v973 = vsel %vm909, 1.0, 0.0
        %v974 = vsel %vm910, 1.0, 0.0
        %v975 = vsel %vm911, 1.0, 0.0
        %v976 = vsel %vm912, 1.0, 0.0
        %v977 = vsel %vm913, 1.0, 0.0
        %v978 = vsel %vm914, 1.0, 0.0
        %v979 = vsel %vm915, 1.0, 0.0
        %v980 = vsel %vm916, 1.0, 0.0
        %v981 = vsel %vm917, 1.0, 0.0
        %v982 = vsel %vm918, 1.0, 0.0
        %v983 = vsel %vm919, 1.0, 0.0
        %v985 = vperm.slane %v261, 0
        %v987 = vmul.f32 %v985, %v920
        %v988 = vmul.f32 %v985, %v921
        %v989 = vmul.f32 %v985, %v922
        %v990 = vmul.f32 %v985, %v923
        %v991 = vmul.f32 %v985, %v924
        %v992 = vmul.f32 %v985, %v925
        %v993 = vmul.f32 %v985, %v926
        %v994 = vmul.f32 %v985, %v927
        %v995 = vmul.f32 %v985, %v928
        %v996 = vmul.f32 %v985, %v929
        %v997 = vmul.f32 %v985, %v930
        %v998 = vmul.f32 %v985, %v931
        %v999 = vmul.f32 %v985, %v932
        %v1000 = vmul.f32 %v985, %v933
        %v1001 = vmul.f32 %v985, %v934
        %v1002 = vmul.f32 %v985, %v935
        %v1003 = vmul.f32 %v985, %v936
        %v1004 = vmul.f32 %v985, %v937
        %v1005 = vmul.f32 %v985, %v938
        %v1006 = vmul.f32 %v985, %v939
        %v1007 = vmul.f32 %v985, %v940
        %v1008 = vmul.f32 %v985, %v941
        %v1009 = vmul.f32 %v985, %v942
        %v1010 = vmul.f32 %v985, %v943
        %v1011 = vmul.f32 %v985, %v944
        %v1012 = vmul.f32 %v985, %v945
        %v1013 = vmul.f32 %v985, %v946
        %v1014 = vmul.f32 %v985, %v947
        %v1015 = vmul.f32 %v985, %v948
        %v1016 = vmul.f32 %v985, %v949
        %v1017 = vmul.f32 %v985, %v950
        %v1018 = vmul.f32 %v985, %v951
        %v1019 = vmul.f32 %v985, %v952
        %v1020 = vmul.f32 %v985, %v953
        %v1021 = vmul.f32 %v985, %v954
        %v1022 = vmul.f32 %v985, %v955
        %v1023 = vmul.f32 %v985, %v956
        %v1024 = vmul.f32 %v985, %v957
        %v1025 = vmul.f32 %v985, %v958
        %v1026 = vmul.f32 %v985, %v959
        %v1027 = vmul.f32 %v985, %v960
        %v1028 = vmul.f32 %v985, %v961
        %v1029 = vmul.f32 %v985, %v962
        %v1030 = vmul.f32 %v985, %v963
        %v1031 = vmul.f32 %v985, %v964
        %v1032 = vmul.f32 %v985, %v965
        %v1033 = vmul.f32 %v985, %v966
        %v1034 = vmul.f32 %v985, %v967
        %v1035 = vmul.f32 %v985, %v968
        %v1036 = vmul.f32 %v985, %v969
        %v1037 = vmul.f32 %v985, %v970
        %v1038 = vmul.f32 %v985, %v971
        %v1039 = vmul.f32 %v985, %v972
        %v1040 = vmul.f32 %v985, %v973
        %v1041 = vmul.f32 %v985, %v974
        %v1042 = vmul.f32 %v985, %v975
        %v1043 = vmul.f32 %v985, %v976
        %v1044 = vmul.f32 %v985, %v977
        %v1045 = vmul.f32 %v985, %v978
        %v1046 = vmul.f32 %v985, %v979
        %v1047 = vmul.f32 %v985, %v980
        %v1048 = vmul.f32 %v985, %v981
        %v1049 = vmul.f32 %v985, %v982
        %v1050 = vmul.f32 %v985, %v983
        %1051 = vmax.xlane.f32.xlu0 %v987
        %v1052 = vpop.xlane.xlu0 %1051
        %1053 = vmax.xlane.f32.xlu0 %v988
        %v1054 = vpop.xlane.xlu0 %1053
        %1055 = vmax.xlane.f32.xlu0 %v989
        %v1056 = vpop.xlane.xlu0 %1055
        %1057 = vmax.xlane.f32.xlu0 %v990
        %v1058 = vpop.xlane.xlu0 %1057
        %1059 = vmax.xlane.f32.xlu0 %v991
        %v1060 = vpop.xlane.xlu0 %1059
        %1061 = vmax.xlane.f32.xlu0 %v992
        %v1062 = vpop.xlane.xlu0 %1061
        %1063 = vmax.xlane.f32.xlu0 %v993
        %v1064 = vpop.xlane.xlu0 %1063
        %1065 = vmax.xlane.f32.xlu0 %v994
        %v1066 = vpop.xlane.xlu0 %1065
        %1067 = vmax.xlane.f32.xlu0 %v995
        %v1068 = vpop.xlane.xlu0 %1067
        %1069 = vmax.xlane.f32.xlu0 %v996
        %v1070 = vpop.xlane.xlu0 %1069
        %1071 = vmax.xlane.f32.xlu0 %v997
        %v1072 = vpop.xlane.xlu0 %1071
        %1073 = vmax.xlane.f32.xlu0 %v998
        %v1074 = vpop.xlane.xlu0 %1073
        %1075 = vmax.xlane.f32.xlu0 %v999
        %v1076 = vpop.xlane.xlu0 %1075
        %1077 = vmax.xlane.f32.xlu0 %v1000
        %v1078 = vpop.xlane.xlu0 %1077
        %1079 = vmax.xlane.f32.xlu0 %v1001
        %v1080 = vpop.xlane.xlu0 %1079
        %1081 = vmax.xlane.f32.xlu0 %v1002
        %v1082 = vpop.xlane.xlu0 %1081
        %1083 = vmax.xlane.f32.xlu0 %v1003
        %v1084 = vpop.xlane.xlu0 %1083
        %1085 = vmax.xlane.f32.xlu0 %v1004
        %v1086 = vpop.xlane.xlu0 %1085
        %1087 = vmax.xlane.f32.xlu0 %v1005
        %v1088 = vpop.xlane.xlu0 %1087
        %1089 = vmax.xlane.f32.xlu0 %v1006
        %v1090 = vpop.xlane.xlu0 %1089
        %1091 = vmax.xlane.f32.xlu0 %v1007
        %v1092 = vpop.xlane.xlu0 %1091
        %1093 = vmax.xlane.f32.xlu0 %v1008
        %v1094 = vpop.xlane.xlu0 %1093
        %1095 = vmax.xlane.f32.xlu0 %v1009
        %v1096 = vpop.xlane.xlu0 %1095
        %1097 = vmax.xlane.f32.xlu0 %v1010
        %v1098 = vpop.xlane.xlu0 %1097
        %1099 = vmax.xlane.f32.xlu0 %v1011
        %v1100 = vpop.xlane.xlu0 %1099
        %1101 = vmax.xlane.f32.xlu0 %v1012
        %v1102 = vpop.xlane.xlu0 %1101
        %1103 = vmax.xlane.f32.xlu0 %v1013
        %v1104 = vpop.xlane.xlu0 %1103
        %1105 = vmax.xlane.f32.xlu0 %v1014
        %v1106 = vpop.xlane.xlu0 %1105
        %1107 = vmax.xlane.f32.xlu0 %v1015
        %v1108 = vpop.xlane.xlu0 %1107
        %1109 = vmax.xlane.f32.xlu0 %v1016
        %v1110 = vpop.xlane.xlu0 %1109
        %1111 = vmax.xlane.f32.xlu0 %v1017
        %v1112 = vpop.xlane.xlu0 %1111
        %1113 = vmax.xlane.f32.xlu0 %v1018
        %v1114 = vpop.xlane.xlu0 %1113
        %1115 = vmax.xlane.f32.xlu0 %v1019
        %v1116 = vpop.xlane.xlu0 %1115
        %1117 = vmax.xlane.f32.xlu0 %v1020
        %v1118 = vpop.xlane.xlu0 %1117
        %1119 = vmax.xlane.f32.xlu0 %v1021
        %v1120 = vpop.xlane.xlu0 %1119
        %1121 = vmax.xlane.f32.xlu0 %v1022
        %v1122 = vpop.xlane.xlu0 %1121
        %1123 = vmax.xlane.f32.xlu0 %v1023
        %v1124 = vpop.xlane.xlu0 %1123
        %1125 = vmax.xlane.f32.xlu0 %v1024
        %v1126 = vpop.xlane.xlu0 %1125
        %1127 = vmax.xlane.f32.xlu0 %v1025
        %v1128 = vpop.xlane.xlu0 %1127
        %1129 = vmax.xlane.f32.xlu0 %v1026
        %v1130 = vpop.xlane.xlu0 %1129
        %1131 = vmax.xlane.f32.xlu0 %v1027
        %v1132 = vpop.xlane.xlu0 %1131
        %1133 = vmax.xlane.f32.xlu0 %v1028
        %v1134 = vpop.xlane.xlu0 %1133
        %1135 = vmax.xlane.f32.xlu0 %v1029
        %v1136 = vpop.xlane.xlu0 %1135
        %1137 = vmax.xlane.f32.xlu0 %v1030
        %v1138 = vpop.xlane.xlu0 %1137
        %1139 = vmax.xlane.f32.xlu0 %v1031
        %v1140 = vpop.xlane.xlu0 %1139
        %1141 = vmax.xlane.f32.xlu0 %v1032
        %v1142 = vpop.xlane.xlu0 %1141
        %1143 = vmax.xlane.f32.xlu0 %v1033
        %v1144 = vpop.xlane.xlu0 %1143
        %1145 = vmax.xlane.f32.xlu0 %v1034
        %v1146 = vpop.xlane.xlu0 %1145
        %1147 = vmax.xlane.f32.xlu0 %v1035
        %v1148 = vpop.xlane.xlu0 %1147
        %1149 = vmax.xlane.f32.xlu0 %v1036
        %v1150 = vpop.xlane.xlu0 %1149
        %1151 = vmax.xlane.f32.xlu0 %v1037
        %v1152 = vpop.xlane.xlu0 %1151
        %1153 = vmax.xlane.f32.xlu0 %v1038
        %v1154 = vpop.xlane.xlu0 %1153
        %1155 = vmax.xlane.f32.xlu0 %v1039
        %v1156 = vpop.xlane.xlu0 %1155
        %1157 = vmax.xlane.f32.xlu0 %v1040
        %v1158 = vpop.xlane.xlu0 %1157
        %1159 = vmax.xlane.f32.xlu0 %v1041
        %v1160 = vpop.xlane.xlu0 %1159
        %1161 = vmax.xlane.f32.xlu0 %v1042
        %v1162 = vpop.xlane.xlu0 %1161
        %1163 = vmax.xlane.f32.xlu0 %v1043
        %v1164 = vpop.xlane.xlu0 %1163
        %1165 = vmax.xlane.f32.xlu0 %v1044
        %v1166 = vpop.xlane.xlu0 %1165
        %1167 = vmax.xlane.f32.xlu0 %v1045
        %v1168 = vpop.xlane.xlu0 %1167
        %1169 = vmax.xlane.f32.xlu0 %v1046
        %v1170 = vpop.xlane.xlu0 %1169
        %1171 = vmax.xlane.f32.xlu0 %v1047
        %v1172 = vpop.xlane.xlu0 %1171
        %1173 = vmax.xlane.f32.xlu0 %v1048
        %v1174 = vpop.xlane.xlu0 %1173
        %1175 = vmax.xlane.f32.xlu0 %v1049
        %v1176 = vpop.xlane.xlu0 %1175
        %1177 = vmax.xlane.f32.xlu0 %v1050
        %v1178 = vpop.xlane.xlu0 %1177
        %v1179 = vsub.f32 %v987, %v1052
        %v1180 = vsub.f32 %v988, %v1054
        %v1181 = vsub.f32 %v989, %v1056
        %v1182 = vsub.f32 %v990, %v1058
        %v1183 = vsub.f32 %v991, %v1060
        %v1184 = vsub.f32 %v992, %v1062
        %v1185 = vsub.f32 %v993, %v1064
        %v1186 = vsub.f32 %v994, %v1066
        %v1187 = vsub.f32 %v995, %v1068
        %v1188 = vsub.f32 %v996, %v1070
        %v1189 = vsub.f32 %v997, %v1072
        %v1190 = vsub.f32 %v998, %v1074
        %v1191 = vsub.f32 %v999, %v1076
        %v1192 = vsub.f32 %v1000, %v1078
        %v1193 = vsub.f32 %v1001, %v1080
        %v1194 = vsub.f32 %v1002, %v1082
        %v1195 = vsub.f32 %v1003, %v1084
        %v1196 = vsub.f32 %v1004, %v1086
        %v1197 = vsub.f32 %v1005, %v1088
        %v1198 = vsub.f32 %v1006, %v1090
        %v1199 = vsub.f32 %v1007, %v1092
        %v1200 = vsub.f32 %v1008, %v1094
        %v1201 = vsub.f32 %v1009, %v1096
        %v1202 = vsub.f32 %v1010, %v1098
        %v1203 = vsub.f32 %v1011, %v1100
        %v1204 = vsub.f32 %v1012, %v1102
        %v1205 = vsub.f32 %v1013, %v1104
        %v1206 = vsub.f32 %v1014, %v1106
        %v1207 = vsub.f32 %v1015, %v1108
        %v1208 = vsub.f32 %v1016, %v1110
        %v1209 = vsub.f32 %v1017, %v1112
        %v1210 = vsub.f32 %v1018, %v1114
        %v1211 = vsub.f32 %v1019, %v1116
        %v1212 = vsub.f32 %v1020, %v1118
        %v1213 = vsub.f32 %v1021, %v1120
        %v1214 = vsub.f32 %v1022, %v1122
        %v1215 = vsub.f32 %v1023, %v1124
        %v1216 = vsub.f32 %v1024, %v1126
        %v1217 = vsub.f32 %v1025, %v1128
        %v1218 = vsub.f32 %v1026, %v1130
        %v1219 = vsub.f32 %v1027, %v1132
        %v1220 = vsub.f32 %v1028, %v1134
        %v1221 = vsub.f32 %v1029, %v1136
        %v1222 = vsub.f32 %v1030, %v1138
        %v1223 = vsub.f32 %v1031, %v1140
        %v1224 = vsub.f32 %v1032, %v1142
        %v1225 = vsub.f32 %v1033, %v1144
        %v1226 = vsub.f32 %v1034, %v1146
        %v1227 = vsub.f32 %v1035, %v1148
        %v1228 = vsub.f32 %v1036, %v1150
        %v1229 = vsub.f32 %v1037, %v1152
        %v1230 = vsub.f32 %v1038, %v1154
        %v1231 = vsub.f32 %v1039, %v1156
        %v1232 = vsub.f32 %v1040, %v1158
        %v1233 = vsub.f32 %v1041, %v1160
        %v1234 = vsub.f32 %v1042, %v1162
        %v1235 = vsub.f32 %v1043, %v1164
        %v1236 = vsub.f32 %v1044, %v1166
        %v1237 = vsub.f32 %v1045, %v1168
        %v1238 = vsub.f32 %v1046, %v1170
        %v1239 = vsub.f32 %v1047, %v1172
        %v1240 = vsub.f32 %v1048, %v1174
        %v1241 = vsub.f32 %v1049, %v1176
        %v1242 = vsub.f32 %v1050, %v1178
        %v1243 = vmul.f32 %v1179, 1.442695
        %v1244 = vpow.pop %v1243
        %v1245 = vmul.f32 %v1180, 1.442695
        %v1246 = vpow.pop %v1245
        %v1247 = vmul.f32 %v1181, 1.442695
        %v1248 = vpow.pop %v1247
        %v1249 = vmul.f32 %v1182, 1.442695
        %v1250 = vpow.pop %v1249
        %v1251 = vmul.f32 %v1183, 1.442695
        %v1252 = vpow.pop %v1251
        %v1253 = vmul.f32 %v1184, 1.442695
        %v1254 = vpow.pop %v1253
        %v1255 = vmul.f32 %v1185, 1.442695
        %v1256 = vpow.pop %v1255
        %v1257 = vmul.f32 %v1186, 1.442695
        %v1258 = vpow.pop %v1257
        %v1259 = vmul.f32 %v1187, 1.442695
        %v1260 = vpow.pop %v1259
        %v1261 = vmul.f32 %v1188, 1.442695
        %v1262 = vpow.pop %v1261
        %v1263 = vmul.f32 %v1189, 1.442695
        %v1264 = vpow.pop %v1263
        %v1265 = vmul.f32 %v1190, 1.442695
        %v1266 = vpow.pop %v1265
        %v1267 = vmul.f32 %v1191, 1.442695
        %v1268 = vpow.pop %v1267
        %v1269 = vmul.f32 %v1192, 1.442695
        %v1270 = vpow.pop %v1269
        %v1271 = vmul.f32 %v1193, 1.442695
        %v1272 = vpow.pop %v1271
        %v1273 = vmul.f32 %v1194, 1.442695
        %v1274 = vpow.pop %v1273
        %v1275 = vmul.f32 %v1195, 1.442695
        %v1276 = vpow.pop %v1275
        %v1277 = vmul.f32 %v1196, 1.442695
        %v1278 = vpow.pop %v1277
        %v1279 = vmul.f32 %v1197, 1.442695
        %v1280 = vpow.pop %v1279
        %v1281 = vmul.f32 %v1198, 1.442695
        %v1282 = vpow.pop %v1281
        %v1283 = vmul.f32 %v1199, 1.442695
        %v1284 = vpow.pop %v1283
        %v1285 = vmul.f32 %v1200, 1.442695
        %v1286 = vpow.pop %v1285
        %v1287 = vmul.f32 %v1201, 1.442695
        %v1288 = vpow.pop %v1287
        %v1289 = vmul.f32 %v1202, 1.442695
        %v1290 = vpow.pop %v1289
        %v1291 = vmul.f32 %v1203, 1.442695
        %v1292 = vpow.pop %v1291
        %v1293 = vmul.f32 %v1204, 1.442695
        %v1294 = vpow.pop %v1293
        %v1295 = vmul.f32 %v1205, 1.442695
        %v1296 = vpow.pop %v1295
        %v1297 = vmul.f32 %v1206, 1.442695
        %v1298 = vpow.pop %v1297
        %v1299 = vmul.f32 %v1207, 1.442695
        %v1300 = vpow.pop %v1299
        %v1301 = vmul.f32 %v1208, 1.442695
        %v1302 = vpow.pop %v1301
        %v1303 = vmul.f32 %v1209, 1.442695
        %v1304 = vpow.pop %v1303
        %v1305 = vmul.f32 %v1210, 1.442695
        %v1306 = vpow.pop %v1305
        %v1307 = vmul.f32 %v1211, 1.442695
        %v1308 = vpow.pop %v1307
        %v1309 = vmul.f32 %v1212, 1.442695
        %v1310 = vpow.pop %v1309
        %v1311 = vmul.f32 %v1213, 1.442695
        %v1312 = vpow.pop %v1311
        %v1313 = vmul.f32 %v1214, 1.442695
        %v1314 = vpow.pop %v1313
        %v1315 = vmul.f32 %v1215, 1.442695
        %v1316 = vpow.pop %v1315
        %v1317 = vmul.f32 %v1216, 1.442695
        %v1318 = vpow.pop %v1317
        %v1319 = vmul.f32 %v1217, 1.442695
        %v1320 = vpow.pop %v1319
        %v1321 = vmul.f32 %v1218, 1.442695
        %v1322 = vpow.pop %v1321
        %v1323 = vmul.f32 %v1219, 1.442695
        %v1324 = vpow.pop %v1323
        %v1325 = vmul.f32 %v1220, 1.442695
        %v1326 = vpow.pop %v1325
        %v1327 = vmul.f32 %v1221, 1.442695
        %v1328 = vpow.pop %v1327
        %v1329 = vmul.f32 %v1222, 1.442695
        %v1330 = vpow.pop %v1329
        %v1331 = vmul.f32 %v1223, 1.442695
        %v1332 = vpow.pop %v1331
        %v1333 = vmul.f32 %v1224, 1.442695
        %v1334 = vpow.pop %v1333
        %v1335 = vmul.f32 %v1225, 1.442695
        %v1336 = vpow.pop %v1335
        %v1337 = vmul.f32 %v1226, 1.442695
        %v1338 = vpow.pop %v1337
        %v1339 = vmul.f32 %v1227, 1.442695
        %v1340 = vpow.pop %v1339
        %v1341 = vmul.f32 %v1228, 1.442695
        %v1342 = vpow.pop %v1341
        %v1343 = vmul.f32 %v1229, 1.442695
        %v1344 = vpow.pop %v1343
        %v1345 = vmul.f32 %v1230, 1.442695
        %v1346 = vpow.pop %v1345
        %v1347 = vmul.f32 %v1231, 1.442695
        %v1348 = vpow.pop %v1347
        %v1349 = vmul.f32 %v1232, 1.442695
        %v1350 = vpow.pop %v1349
        %v1351 = vmul.f32 %v1233, 1.442695
        %v1352 = vpow.pop %v1351
        %v1353 = vmul.f32 %v1234, 1.442695
        %v1354 = vpow.pop %v1353
        %v1355 = vmul.f32 %v1235, 1.442695
        %v1356 = vpow.pop %v1355
        %v1357 = vmul.f32 %v1236, 1.442695
        %v1358 = vpow.pop %v1357
        %v1359 = vmul.f32 %v1237, 1.442695
        %v1360 = vpow.pop %v1359
        %v1361 = vmul.f32 %v1238, 1.442695
        %v1362 = vpow.pop %v1361
        %v1363 = vmul.f32 %v1239, 1.442695
        %v1364 = vpow.pop %v1363
        %v1365 = vmul.f32 %v1240, 1.442695
        %v1366 = vpow.pop %v1365
        %v1367 = vmul.f32 %v1241, 1.442695
        %v1368 = vpow.pop %v1367
        %v1369 = vmul.f32 %v1242, 1.442695
        %v1370 = vpow.pop %v1369
        %v1371 = vmul.f32 %v920, %v1244
        %v1372 = vmul.f32 %v921, %v1246
        %v1373 = vmul.f32 %v922, %v1248
        %v1374 = vmul.f32 %v923, %v1250
        %v1375 = vmul.f32 %v924, %v1252
        %v1376 = vmul.f32 %v925, %v1254
        %v1377 = vmul.f32 %v926, %v1256
        %v1378 = vmul.f32 %v927, %v1258
        %v1379 = vmul.f32 %v928, %v1260
        %v1380 = vmul.f32 %v929, %v1262
        %v1381 = vmul.f32 %v930, %v1264
        %v1382 = vmul.f32 %v931, %v1266
        %v1383 = vmul.f32 %v932, %v1268
        %v1384 = vmul.f32 %v933, %v1270
        %v1385 = vmul.f32 %v934, %v1272
        %v1386 = vmul.f32 %v935, %v1274
        %v1387 = vmul.f32 %v936, %v1276
        %v1388 = vmul.f32 %v937, %v1278
        %v1389 = vmul.f32 %v938, %v1280
        %v1390 = vmul.f32 %v939, %v1282
        %v1391 = vmul.f32 %v940, %v1284
        %v1392 = vmul.f32 %v941, %v1286
        %v1393 = vmul.f32 %v942, %v1288
        %v1394 = vmul.f32 %v943, %v1290
        %v1395 = vmul.f32 %v944, %v1292
        %v1396 = vmul.f32 %v945, %v1294
        %v1397 = vmul.f32 %v946, %v1296
        %v1398 = vmul.f32 %v947, %v1298
        %v1399 = vmul.f32 %v948, %v1300
        %v1400 = vmul.f32 %v949, %v1302
        %v1401 = vmul.f32 %v950, %v1304
        %v1402 = vmul.f32 %v951, %v1306
        %v1403 = vmul.f32 %v952, %v1308
        %v1404 = vmul.f32 %v953, %v1310
        %v1405 = vmul.f32 %v954, %v1312
        %v1406 = vmul.f32 %v955, %v1314
        %v1407 = vmul.f32 %v956, %v1316
        %v1408 = vmul.f32 %v957, %v1318
        %v1409 = vmul.f32 %v958, %v1320
        %v1410 = vmul.f32 %v959, %v1322
        %v1411 = vmul.f32 %v960, %v1324
        %v1412 = vmul.f32 %v961, %v1326
        %v1413 = vmul.f32 %v962, %v1328
        %v1414 = vmul.f32 %v963, %v1330
        %v1415 = vmul.f32 %v964, %v1332
        %v1416 = vmul.f32 %v965, %v1334
        %v1417 = vmul.f32 %v966, %v1336
        %v1418 = vmul.f32 %v967, %v1338
        %v1419 = vmul.f32 %v968, %v1340
        %v1420 = vmul.f32 %v969, %v1342
        %v1421 = vmul.f32 %v970, %v1344
        %v1422 = vmul.f32 %v971, %v1346
        %v1423 = vmul.f32 %v972, %v1348
        %v1424 = vmul.f32 %v973, %v1350
        %v1425 = vmul.f32 %v974, %v1352
        %v1426 = vmul.f32 %v975, %v1354
        %v1427 = vmul.f32 %v976, %v1356
        %v1428 = vmul.f32 %v977, %v1358
        %v1429 = vmul.f32 %v978, %v1360
        %v1430 = vmul.f32 %v979, %v1362
        %v1431 = vmul.f32 %v980, %v1364
        %v1432 = vmul.f32 %v981, %v1366
        %v1433 = vmul.f32 %v982, %v1368
        %v1434 = vmul.f32 %v983, %v1370
        %1435 = vadd.xlane.f32.xlu0 %v1371
        %v1436 = vpop.xlane.xlu0 %1435
        %1437 = vadd.xlane.f32.xlu0 %v1372
        %v1438 = vpop.xlane.xlu0 %1437
        %1439 = vadd.xlane.f32.xlu0 %v1373
        %v1440 = vpop.xlane.xlu0 %1439
        %1441 = vadd.xlane.f32.xlu0 %v1374
        %v1442 = vpop.xlane.xlu0 %1441
        %1443 = vadd.xlane.f32.xlu0 %v1375
        %v1444 = vpop.xlane.xlu0 %1443
        %1445 = vadd.xlane.f32.xlu0 %v1376
        %v1446 = vpop.xlane.xlu0 %1445
        %1447 = vadd.xlane.f32.xlu0 %v1377
        %v1448 = vpop.xlane.xlu0 %1447
        %1449 = vadd.xlane.f32.xlu0 %v1378
        %v1450 = vpop.xlane.xlu0 %1449
        %1451 = vadd.xlane.f32.xlu0 %v1379
        %v1452 = vpop.xlane.xlu0 %1451
        %1453 = vadd.xlane.f32.xlu0 %v1380
        %v1454 = vpop.xlane.xlu0 %1453
        %1455 = vadd.xlane.f32.xlu0 %v1381
        %v1456 = vpop.xlane.xlu0 %1455
        %1457 = vadd.xlane.f32.xlu0 %v1382
        %v1458 = vpop.xlane.xlu0 %1457
        %1459 = vadd.xlane.f32.xlu0 %v1383
        %v1460 = vpop.xlane.xlu0 %1459
        %1461 = vadd.xlane.f32.xlu0 %v1384
        %v1462 = vpop.xlane.xlu0 %1461
        %1463 = vadd.xlane.f32.xlu0 %v1385
        %v1464 = vpop.xlane.xlu0 %1463
        %1465 = vadd.xlane.f32.xlu0 %v1386
        %v1466 = vpop.xlane.xlu0 %1465
        %1467 = vadd.xlane.f32.xlu0 %v1387
        %v1468 = vpop.xlane.xlu0 %1467
        %1469 = vadd.xlane.f32.xlu0 %v1388
        %v1470 = vpop.xlane.xlu0 %1469
        %1471 = vadd.xlane.f32.xlu0 %v1389
        %v1472 = vpop.xlane.xlu0 %1471
        %1473 = vadd.xlane.f32.xlu0 %v1390
        %v1474 = vpop.xlane.xlu0 %1473
        %1475 = vadd.xlane.f32.xlu0 %v1391
        %v1476 = vpop.xlane.xlu0 %1475
        %1477 = vadd.xlane.f32.xlu0 %v1392
        %v1478 = vpop.xlane.xlu0 %1477
        %1479 = vadd.xlane.f32.xlu0 %v1393
        %v1480 = vpop.xlane.xlu0 %1479
        %1481 = vadd.xlane.f32.xlu0 %v1394
        %v1482 = vpop.xlane.xlu0 %1481
        %1483 = vadd.xlane.f32.xlu0 %v1395
        %v1484 = vpop.xlane.xlu0 %1483
        %1485 = vadd.xlane.f32.xlu0 %v1396
        %v1486 = vpop.xlane.xlu0 %1485
        %1487 = vadd.xlane.f32.xlu0 %v1397
        %v1488 = vpop.xlane.xlu0 %1487
        %1489 = vadd.xlane.f32.xlu0 %v1398
        %v1490 = vpop.xlane.xlu0 %1489
        %1491 = vadd.xlane.f32.xlu0 %v1399
        %v1492 = vpop.xlane.xlu0 %1491
        %1493 = vadd.xlane.f32.xlu0 %v1400
        %v1494 = vpop.xlane.xlu0 %1493
        %1495 = vadd.xlane.f32.xlu0 %v1401
        %v1496 = vpop.xlane.xlu0 %1495
        %1497 = vadd.xlane.f32.xlu0 %v1402
        %v1498 = vpop.xlane.xlu0 %1497
        %1499 = vadd.xlane.f32.xlu0 %v1403
        %v1500 = vpop.xlane.xlu0 %1499
        %1501 = vadd.xlane.f32.xlu0 %v1404
        %v1502 = vpop.xlane.xlu0 %1501
        %1503 = vadd.xlane.f32.xlu0 %v1405
        %v1504 = vpop.xlane.xlu0 %1503
        %1505 = vadd.xlane.f32.xlu0 %v1406
        %v1506 = vpop.xlane.xlu0 %1505
        %1507 = vadd.xlane.f32.xlu0 %v1407
        %v1508 = vpop.xlane.xlu0 %1507
        %1509 = vadd.xlane.f32.xlu0 %v1408
        %v1510 = vpop.xlane.xlu0 %1509
        %1511 = vadd.xlane.f32.xlu0 %v1409
        %v1512 = vpop.xlane.xlu0 %1511
        %1513 = vadd.xlane.f32.xlu0 %v1410
        %v1514 = vpop.xlane.xlu0 %1513
        %1515 = vadd.xlane.f32.xlu0 %v1411
        %v1516 = vpop.xlane.xlu0 %1515
        %1517 = vadd.xlane.f32.xlu0 %v1412
        %v1518 = vpop.xlane.xlu0 %1517
        %1519 = vadd.xlane.f32.xlu0 %v1413
        %v1520 = vpop.xlane.xlu0 %1519
        %1521 = vadd.xlane.f32.xlu0 %v1414
        %v1522 = vpop.xlane.xlu0 %1521
        %1523 = vadd.xlane.f32.xlu0 %v1415
        %v1524 = vpop.xlane.xlu0 %1523
        %1525 = vadd.xlane.f32.xlu0 %v1416
        %v1526 = vpop.xlane.xlu0 %1525
        %1527 = vadd.xlane.f32.xlu0 %v1417
        %v1528 = vpop.xlane.xlu0 %1527
        %1529 = vadd.xlane.f32.xlu0 %v1418
        %v1530 = vpop.xlane.xlu0 %1529
        %1531 = vadd.xlane.f32.xlu0 %v1419
        %v1532 = vpop.xlane.xlu0 %1531
        %1533 = vadd.xlane.f32.xlu0 %v1420
        %v1534 = vpop.xlane.xlu0 %1533
        %1535 = vadd.xlane.f32.xlu0 %v1421
        %v1536 = vpop.xlane.xlu0 %1535
        %1537 = vadd.xlane.f32.xlu0 %v1422
        %v1538 = vpop.xlane.xlu0 %1537
        %1539 = vadd.xlane.f32.xlu0 %v1423
        %v1540 = vpop.xlane.xlu0 %1539
        %1541 = vadd.xlane.f32.xlu0 %v1424
        %v1542 = vpop.xlane.xlu0 %1541
        %1543 = vadd.xlane.f32.xlu0 %v1425
        %v1544 = vpop.xlane.xlu0 %1543
        %1545 = vadd.xlane.f32.xlu0 %v1426
        %v1546 = vpop.xlane.xlu0 %1545
        %1547 = vadd.xlane.f32.xlu0 %v1427
        %v1548 = vpop.xlane.xlu0 %1547
        %1549 = vadd.xlane.f32.xlu0 %v1428
        %v1550 = vpop.xlane.xlu0 %1549
        %1551 = vadd.xlane.f32.xlu0 %v1429
        %v1552 = vpop.xlane.xlu0 %1551
        %1553 = vadd.xlane.f32.xlu0 %v1430
        %v1554 = vpop.xlane.xlu0 %1553
        %1555 = vadd.xlane.f32.xlu0 %v1431
        %v1556 = vpop.xlane.xlu0 %1555
        %1557 = vadd.xlane.f32.xlu0 %v1432
        %v1558 = vpop.xlane.xlu0 %1557
        %1559 = vadd.xlane.f32.xlu0 %v1433
        %v1560 = vpop.xlane.xlu0 %1559
        %1561 = vadd.xlane.f32.xlu0 %v1434
        %v1562 = vpop.xlane.xlu0 %1561
        %vm1563 = vcmp.lt.s32.totalorder %v278, 127
        %v1564 = vsel %vm1563, %v278, 127
        %vm1565 = vcmp.lt.s32.totalorder %v279, 127
        %v1566 = vsel %vm1565, %v279, 127
        %vm1567 = vcmp.lt.s32.totalorder %v280, 127
        %v1568 = vsel %vm1567, %v280, 127
        %vm1569 = vcmp.lt.s32.totalorder %v281, 127
        %v1570 = vsel %vm1569, %v281, 127
        %vm1571 = vcmp.lt.s32.totalorder %v282, 127
        %v1572 = vsel %vm1571, %v282, 127
        %vm1573 = vcmp.lt.s32.totalorder %v283, 127
        %v1574 = vsel %vm1573, %v283, 127
        %vm1575 = vcmp.lt.s32.totalorder %v284, 127
        %v1576 = vsel %vm1575, %v284, 127
        %vm1577 = vcmp.lt.s32.totalorder %v285, 127
        %v1578 = vsel %vm1577, %v285, 127
        %vm1579 = vcmp.lt.s32.totalorder %v286, 127
        %v1580 = vsel %vm1579, %v286, 127
        %vm1581 = vcmp.lt.s32.totalorder %v287, 127
        %v1582 = vsel %vm1581, %v287, 127
        %vm1583 = vcmp.lt.s32.totalorder %v288, 127
        %v1584 = vsel %vm1583, %v288, 127
        %vm1585 = vcmp.lt.s32.totalorder %v289, 127
        %v1586 = vsel %vm1585, %v289, 127
        %vm1587 = vcmp.lt.s32.totalorder %v290, 127
        %v1588 = vsel %vm1587, %v290, 127
        %vm1589 = vcmp.lt.s32.totalorder %v291, 127
        %v1590 = vsel %vm1589, %v291, 127
        %vm1591 = vcmp.lt.s32.totalorder %v292, 127
        %v1592 = vsel %vm1591, %v292, 127
        %vm1593 = vcmp.lt.s32.totalorder %v293, 127
        %v1594 = vsel %vm1593, %v293, 127
        %vm1595 = vcmp.lt.s32.totalorder %v294, 127
        %v1596 = vsel %vm1595, %v294, 127
        %vm1597 = vcmp.lt.s32.totalorder %v295, 127
        %v1598 = vsel %vm1597, %v295, 127
        %vm1599 = vcmp.lt.s32.totalorder %v296, 127
        %v1600 = vsel %vm1599, %v296, 127
        %vm1601 = vcmp.lt.s32.totalorder %v297, 127
        %v1602 = vsel %vm1601, %v297, 127
        %vm1603 = vcmp.lt.s32.totalorder %v298, 127
        %v1604 = vsel %vm1603, %v298, 127
        %vm1605 = vcmp.lt.s32.totalorder %v299, 127
        %v1606 = vsel %vm1605, %v299, 127
        %vm1607 = vcmp.lt.s32.totalorder %v300, 127
        %v1608 = vsel %vm1607, %v300, 127
        %vm1609 = vcmp.lt.s32.totalorder %v301, 127
        %v1610 = vsel %vm1609, %v301, 127
        %vm1611 = vcmp.lt.s32.totalorder %v302, 127
        %v1612 = vsel %vm1611, %v302, 127
        %vm1613 = vcmp.lt.s32.totalorder %v303, 127
        %v1614 = vsel %vm1613, %v303, 127
        %vm1615 = vcmp.lt.s32.totalorder %v304, 127
        %v1616 = vsel %vm1615, %v304, 127
        %vm1617 = vcmp.lt.s32.totalorder %v305, 127
        %v1618 = vsel %vm1617, %v305, 127
        %vm1619 = vcmp.lt.s32.totalorder %v306, 127
        %v1620 = vsel %vm1619, %v306, 127
        %vm1621 = vcmp.lt.s32.totalorder %v307, 127
        %v1622 = vsel %vm1621, %v307, 127
        %vm1623 = vcmp.lt.s32.totalorder %v308, 127
        %v1624 = vsel %vm1623, %v308, 127
        %vm1625 = vcmp.lt.s32.totalorder %v309, 127
        %v1626 = vsel %vm1625, %v309, 127
        %vm1627 = vcmp.lt.s32.totalorder %v310, 127
        %v1628 = vsel %vm1627, %v310, 127
        %vm1629 = vcmp.lt.s32.totalorder %v311, 127
        %v1630 = vsel %vm1629, %v311, 127
        %vm1631 = vcmp.lt.s32.totalorder %v312, 127
        %v1632 = vsel %vm1631, %v312, 127
        %vm1633 = vcmp.lt.s32.totalorder %v313, 127
        %v1634 = vsel %vm1633, %v313, 127
        %vm1635 = vcmp.lt.s32.totalorder %v314, 127
        %v1636 = vsel %vm1635, %v314, 127
        %vm1637 = vcmp.lt.s32.totalorder %v315, 127
        %v1638 = vsel %vm1637, %v315, 127
        %vm1639 = vcmp.lt.s32.totalorder %v316, 127
        %v1640 = vsel %vm1639, %v316, 127
        %vm1641 = vcmp.lt.s32.totalorder %v317, 127
        %v1642 = vsel %vm1641, %v317, 127
        %vm1643 = vcmp.lt.s32.totalorder %v318, 127
        %v1644 = vsel %vm1643, %v318, 127
        %vm1645 = vcmp.lt.s32.totalorder %v319, 127
        %v1646 = vsel %vm1645, %v319, 127
        %vm1647 = vcmp.lt.s32.totalorder %v320, 127
        %v1648 = vsel %vm1647, %v320, 127
        %vm1649 = vcmp.lt.s32.totalorder %v321, 127
        %v1650 = vsel %vm1649, %v321, 127
        %vm1651 = vcmp.lt.s32.totalorder %v322, 127
        %v1652 = vsel %vm1651, %v322, 127
        %vm1653 = vcmp.lt.s32.totalorder %v323, 127
        %v1654 = vsel %vm1653, %v323, 127
        %vm1655 = vcmp.lt.s32.totalorder %v324, 127
        %v1656 = vsel %vm1655, %v324, 127
        %vm1657 = vcmp.lt.s32.totalorder %v325, 127
        %v1658 = vsel %vm1657, %v325, 127
        %vm1659 = vcmp.lt.s32.totalorder %v326, 127
        %v1660 = vsel %vm1659, %v326, 127
        %vm1661 = vcmp.lt.s32.totalorder %v327, 127
        %v1662 = vsel %vm1661, %v327, 127
        %vm1663 = vcmp.lt.s32.totalorder %v328, 127
        %v1664 = vsel %vm1663, %v328, 127
        %vm1665 = vcmp.lt.s32.totalorder %v329, 127
        %v1666 = vsel %vm1665, %v329, 127
        %vm1667 = vcmp.lt.s32.totalorder %v330, 127
        %v1668 = vsel %vm1667, %v330, 127
        %vm1669 = vcmp.lt.s32.totalorder %v331, 127
        %v1670 = vsel %vm1669, %v331, 127
        %vm1671 = vcmp.lt.s32.totalorder %v332, 127
        %v1672 = vsel %vm1671, %v332, 127
        %vm1673 = vcmp.lt.s32.totalorder %v333, 127
        %v1674 = vsel %vm1673, %v333, 127
        %vm1675 = vcmp.lt.s32.totalorder %v334, 127
        %v1676 = vsel %vm1675, %v334, 127
        %vm1677 = vcmp.lt.s32.totalorder %v335, 127
        %v1678 = vsel %vm1677, %v335, 127
        %vm1679 = vcmp.lt.s32.totalorder %v336, 127
        %v1680 = vsel %vm1679, %v336, 127
        %vm1681 = vcmp.lt.s32.totalorder %v337, 127
        %v1682 = vsel %vm1681, %v337, 127
        %vm1683 = vcmp.lt.s32.totalorder %v338, 127
        %v1684 = vsel %vm1683, %v338, 127
        %vm1685 = vcmp.lt.s32.totalorder %v339, 127
        %v1686 = vsel %vm1685, %v339, 127
        %vm1687 = vcmp.lt.s32.totalorder %v340, 127
        %v1688 = vsel %vm1687, %v340, 127
        %vm1689 = vcmp.lt.s32.totalorder %v341, 127
        %v1690 = vsel %vm1689, %v341, 127
        %vm1691 = vcmp.gt.s32.totalorder %v278, 0
        %v1692 = vsel %vm1691, %v278, 0
        %vm1693 = vcmp.gt.s32.totalorder %v279, 0
        %v1694 = vsel %vm1693, %v279, 0
        %vm1695 = vcmp.gt.s32.totalorder %v280, 0
        %v1696 = vsel %vm1695, %v280, 0
        %vm1697 = vcmp.gt.s32.totalorder %v281, 0
        %v1698 = vsel %vm1697, %v281, 0
        %vm1699 = vcmp.gt.s32.totalorder %v282, 0
        %v1700 = vsel %vm1699, %v282, 0
        %vm1701 = vcmp.gt.s32.totalorder %v283, 0
        %v1702 = vsel %vm1701, %v283, 0
        %vm1703 = vcmp.gt.s32.totalorder %v284, 0
        %v1704 = vsel %vm1703, %v284, 0
        %vm1705 = vcmp.gt.s32.totalorder %v285, 0
        %v1706 = vsel %vm1705, %v285, 0
        %vm1707 = vcmp.gt.s32.totalorder %v286, 0
        %v1708 = vsel %vm1707, %v286, 0
        %vm1709 = vcmp.gt.s32.totalorder %v287, 0
        %v1710 = vsel %vm1709, %v287, 0
        %vm1711 = vcmp.gt.s32.totalorder %v288, 0
        %v1712 = vsel %vm1711, %v288, 0
        %vm1713 = vcmp.gt.s32.totalorder %v289, 0
        %v1714 = vsel %vm1713, %v289, 0
        %vm1715 = vcmp.gt.s32.totalorder %v290, 0
        %v1716 = vsel %vm1715, %v290, 0
        %vm1717 = vcmp.gt.s32.totalorder %v291, 0
        %v1718 = vsel %vm1717, %v291, 0
        %vm1719 = vcmp.gt.s32.totalorder %v292, 0
        %v1720 = vsel %vm1719, %v292, 0
        %vm1721 = vcmp.gt.s32.totalorder %v293, 0
        %v1722 = vsel %vm1721, %v293, 0
        %vm1723 = vcmp.gt.s32.totalorder %v294, 0
        %v1724 = vsel %vm1723, %v294, 0
        %vm1725 = vcmp.gt.s32.totalorder %v295, 0
        %v1726 = vsel %vm1725, %v295, 0
        %vm1727 = vcmp.gt.s32.totalorder %v296, 0
        %v1728 = vsel %vm1727, %v296, 0
        %vm1729 = vcmp.gt.s32.totalorder %v297, 0
        %v1730 = vsel %vm1729, %v297, 0
        %vm1731 = vcmp.gt.s32.totalorder %v298, 0
        %v1732 = vsel %vm1731, %v298, 0
        %vm1733 = vcmp.gt.s32.totalorder %v299, 0
        %v1734 = vsel %vm1733, %v299, 0
        %vm1735 = vcmp.gt.s32.totalorder %v300, 0
        %v1736 = vsel %vm1735, %v300, 0
        %vm1737 = vcmp.gt.s32.totalorder %v301, 0
        %v1738 = vsel %vm1737, %v301, 0
        %vm1739 = vcmp.gt.s32.totalorder %v302, 0
        %v1740 = vsel %vm1739, %v302, 0
        %vm1741 = vcmp.gt.s32.totalorder %v303, 0
        %v1742 = vsel %vm1741, %v303, 0
        %vm1743 = vcmp.gt.s32.totalorder %v304, 0
        %v1744 = vsel %vm1743, %v304, 0
        %vm1745 = vcmp.gt.s32.totalorder %v305, 0
        %v1746 = vsel %vm1745, %v305, 0
        %vm1747 = vcmp.gt.s32.totalorder %v306, 0
        %v1748 = vsel %vm1747, %v306, 0
        %vm1749 = vcmp.gt.s32.totalorder %v307, 0
        %v1750 = vsel %vm1749, %v307, 0
        %vm1751 = vcmp.gt.s32.totalorder %v308, 0
        %v1752 = vsel %vm1751, %v308, 0
        %vm1753 = vcmp.gt.s32.totalorder %v309, 0
        %v1754 = vsel %vm1753, %v309, 0
        %vm1755 = vcmp.gt.s32.totalorder %v310, 0
        %v1756 = vsel %vm1755, %v310, 0
        %vm1757 = vcmp.gt.s32.totalorder %v311, 0
        %v1758 = vsel %vm1757, %v311, 0
        %vm1759 = vcmp.gt.s32.totalorder %v312, 0
        %v1760 = vsel %vm1759, %v312, 0
        %vm1761 = vcmp.gt.s32.totalorder %v313, 0
        %v1762 = vsel %vm1761, %v313, 0
        %vm1763 = vcmp.gt.s32.totalorder %v314, 0
        %v1764 = vsel %vm1763, %v314, 0
        %vm1765 = vcmp.gt.s32.totalorder %v315, 0
        %v1766 = vsel %vm1765, %v315, 0
        %vm1767 = vcmp.gt.s32.totalorder %v316, 0
        %v1768 = vsel %vm1767, %v316, 0
        %vm1769 = vcmp.gt.s32.totalorder %v317, 0
        %v1770 = vsel %vm1769, %v317, 0
        %vm1771 = vcmp.gt.s32.totalorder %v318, 0
        %v1772 = vsel %vm1771, %v318, 0
        %vm1773 = vcmp.gt.s32.totalorder %v319, 0
        %v1774 = vsel %vm1773, %v319, 0
        %vm1775 = vcmp.gt.s32.totalorder %v320, 0
        %v1776 = vsel %vm1775, %v320, 0
        %vm1777 = vcmp.gt.s32.totalorder %v321, 0
        %v1778 = vsel %vm1777, %v321, 0
        %vm1779 = vcmp.gt.s32.totalorder %v322, 0
        %v1780 = vsel %vm1779, %v322, 0
        %vm1781 = vcmp.gt.s32.totalorder %v323, 0
        %v1782 = vsel %vm1781, %v323, 0
        %vm1783 = vcmp.gt.s32.totalorder %v324, 0
        %v1784 = vsel %vm1783, %v324, 0
        %vm1785 = vcmp.gt.s32.totalorder %v325, 0
        %v1786 = vsel %vm1785, %v325, 0
        %vm1787 = vcmp.gt.s32.totalorder %v326, 0
        %v1788 = vsel %vm1787, %v326, 0
        %vm1789 = vcmp.gt.s32.totalorder %v327, 0
        %v1790 = vsel %vm1789, %v327, 0
        %vm1791 = vcmp.gt.s32.totalorder %v328, 0
        %v1792 = vsel %vm1791, %v328, 0
        %vm1793 = vcmp.gt.s32.totalorder %v329, 0
        %v1794 = vsel %vm1793, %v329, 0
        %vm1795 = vcmp.gt.s32.totalorder %v330, 0
        %v1796 = vsel %vm1795, %v330, 0
        %vm1797 = vcmp.gt.s32.totalorder %v331, 0
        %v1798 = vsel %vm1797, %v331, 0
        %vm1799 = vcmp.gt.s32.totalorder %v332, 0
        %v1800 = vsel %vm1799, %v332, 0
        %vm1801 = vcmp.gt.s32.totalorder %v333, 0
        %v1802 = vsel %vm1801, %v333, 0
        %vm1803 = vcmp.gt.s32.totalorder %v334, 0
        %v1804 = vsel %vm1803, %v334, 0
        %vm1805 = vcmp.gt.s32.totalorder %v335, 0
        %v1806 = vsel %vm1805, %v335, 0
        %vm1807 = vcmp.gt.s32.totalorder %v336, 0
        %v1808 = vsel %vm1807, %v336, 0
        %vm1809 = vcmp.gt.s32.totalorder %v337, 0
        %v1810 = vsel %vm1809, %v337, 0
        %vm1811 = vcmp.gt.s32.totalorder %v338, 0
        %v1812 = vsel %vm1811, %v338, 0
        %vm1813 = vcmp.gt.s32.totalorder %v339, 0
        %v1814 = vsel %vm1813, %v339, 0
        %vm1815 = vcmp.gt.s32.totalorder %v340, 0
        %v1816 = vsel %vm1815, %v340, 0
        %vm1817 = vcmp.gt.s32.totalorder %v341, 0
        %v1818 = vsel %vm1817, %v341, 0
        %1819 = vrot.lane.b32.xlu0 %v1692, 1
        %v1820 = vpop.permute.xlu0 %1819
        %1821 = vrot.lane.b32.xlu0 %v1694, 1
        %v1822 = vpop.permute.xlu0 %1821
        %1823 = vrot.lane.b32.xlu0 %v1696, 1
        %v1824 = vpop.permute.xlu0 %1823
        %1825 = vrot.lane.b32.xlu0 %v1698, 1
        %v1826 = vpop.permute.xlu0 %1825
        %1827 = vrot.lane.b32.xlu0 %v1700, 1
        %v1828 = vpop.permute.xlu0 %1827
        %1829 = vrot.lane.b32.xlu0 %v1702, 1
        %v1830 = vpop.permute.xlu0 %1829
        %1831 = vrot.lane.b32.xlu0 %v1704, 1
        %v1832 = vpop.permute.xlu0 %1831
        %1833 = vrot.lane.b32.xlu0 %v1706, 1
        %v1834 = vpop.permute.xlu0 %1833
        %1835 = vrot.lane.b32.xlu0 %v1708, 1
        %v1836 = vpop.permute.xlu0 %1835
        %1837 = vrot.lane.b32.xlu0 %v1710, 1
        %v1838 = vpop.permute.xlu0 %1837
        %1839 = vrot.lane.b32.xlu0 %v1712, 1
        %v1840 = vpop.permute.xlu0 %1839
        %1841 = vrot.lane.b32.xlu0 %v1714, 1
        %v1842 = vpop.permute.xlu0 %1841
        %1843 = vrot.lane.b32.xlu0 %v1716, 1
        %v1844 = vpop.permute.xlu0 %1843
        %1845 = vrot.lane.b32.xlu0 %v1718, 1
        %v1846 = vpop.permute.xlu0 %1845
        %1847 = vrot.lane.b32.xlu0 %v1720, 1
        %v1848 = vpop.permute.xlu0 %1847
        %1849 = vrot.lane.b32.xlu0 %v1722, 1
        %v1850 = vpop.permute.xlu0 %1849
        %1851 = vrot.lane.b32.xlu0 %v1724, 1
        %v1852 = vpop.permute.xlu0 %1851
        %1853 = vrot.lane.b32.xlu0 %v1726, 1
        %v1854 = vpop.permute.xlu0 %1853
        %1855 = vrot.lane.b32.xlu0 %v1728, 1
        %v1856 = vpop.permute.xlu0 %1855
        %1857 = vrot.lane.b32.xlu0 %v1730, 1
        %v1858 = vpop.permute.xlu0 %1857
        %1859 = vrot.lane.b32.xlu0 %v1732, 1
        %v1860 = vpop.permute.xlu0 %1859
        %1861 = vrot.lane.b32.xlu0 %v1734, 1
        %v1862 = vpop.permute.xlu0 %1861
        %1863 = vrot.lane.b32.xlu0 %v1736, 1
        %v1864 = vpop.permute.xlu0 %1863
        %1865 = vrot.lane.b32.xlu0 %v1738, 1
        %v1866 = vpop.permute.xlu0 %1865
        %1867 = vrot.lane.b32.xlu0 %v1740, 1
        %v1868 = vpop.permute.xlu0 %1867
        %1869 = vrot.lane.b32.xlu0 %v1742, 1
        %v1870 = vpop.permute.xlu0 %1869
        %1871 = vrot.lane.b32.xlu0 %v1744, 1
        %v1872 = vpop.permute.xlu0 %1871
        %1873 = vrot.lane.b32.xlu0 %v1746, 1
        %v1874 = vpop.permute.xlu0 %1873
        %1875 = vrot.lane.b32.xlu0 %v1748, 1
        %v1876 = vpop.permute.xlu0 %1875
        %1877 = vrot.lane.b32.xlu0 %v1750, 1
        %v1878 = vpop.permute.xlu0 %1877
        %1879 = vrot.lane.b32.xlu0 %v1752, 1
        %v1880 = vpop.permute.xlu0 %1879
        %1881 = vrot.lane.b32.xlu0 %v1754, 1
        %v1882 = vpop.permute.xlu0 %1881
        %1883 = vrot.lane.b32.xlu0 %v1756, 1
        %v1884 = vpop.permute.xlu0 %1883
        %1885 = vrot.lane.b32.xlu0 %v1758, 1
        %v1886 = vpop.permute.xlu0 %1885
        %1887 = vrot.lane.b32.xlu0 %v1760, 1
        %v1888 = vpop.permute.xlu0 %1887
        %1889 = vrot.lane.b32.xlu0 %v1762, 1
        %v1890 = vpop.permute.xlu0 %1889
        %1891 = vrot.lane.b32.xlu0 %v1764, 1
        %v1892 = vpop.permute.xlu0 %1891
        %1893 = vrot.lane.b32.xlu0 %v1766, 1
        %v1894 = vpop.permute.xlu0 %1893
        %1895 = vrot.lane.b32.xlu0 %v1768, 1
        %v1896 = vpop.permute.xlu0 %1895
        %1897 = vrot.lane.b32.xlu0 %v1770, 1
        %v1898 = vpop.permute.xlu0 %1897
        %1899 = vrot.lane.b32.xlu0 %v1772, 1
        %v1900 = vpop.permute.xlu0 %1899
        %1901 = vrot.lane.b32.xlu0 %v1774, 1
        %v1902 = vpop.permute.xlu0 %1901
        %1903 = vrot.lane.b32.xlu0 %v1776, 1
        %v1904 = vpop.permute.xlu0 %1903
        %1905 = vrot.lane.b32.xlu0 %v1778, 1
        %v1906 = vpop.permute.xlu0 %1905
        %1907 = vrot.lane.b32.xlu0 %v1780, 1
        %v1908 = vpop.permute.xlu0 %1907
        %1909 = vrot.lane.b32.xlu0 %v1782, 1
        %v1910 = vpop.permute.xlu0 %1909
        %1911 = vrot.lane.b32.xlu0 %v1784, 1
        %v1912 = vpop.permute.xlu0 %1911
        %1913 = vrot.lane.b32.xlu0 %v1786, 1
        %v1914 = vpop.permute.xlu0 %1913
        %1915 = vrot.lane.b32.xlu0 %v1788, 1
        %v1916 = vpop.permute.xlu0 %1915
        %1917 = vrot.lane.b32.xlu0 %v1790, 1
        %v1918 = vpop.permute.xlu0 %1917
        %1919 = vrot.lane.b32.xlu0 %v1792, 1
        %v1920 = vpop.permute.xlu0 %1919
        %1921 = vrot.lane.b32.xlu0 %v1794, 1
        %v1922 = vpop.permute.xlu0 %1921
        %1923 = vrot.lane.b32.xlu0 %v1796, 1
        %v1924 = vpop.permute.xlu0 %1923
        %1925 = vrot.lane.b32.xlu0 %v1798, 1
        %v1926 = vpop.permute.xlu0 %1925
        %1927 = vrot.lane.b32.xlu0 %v1800, 1
        %v1928 = vpop.permute.xlu0 %1927
        %1929 = vrot.lane.b32.xlu0 %v1802, 1
        %v1930 = vpop.permute.xlu0 %1929
        %1931 = vrot.lane.b32.xlu0 %v1804, 1
        %v1932 = vpop.permute.xlu0 %1931
        %1933 = vrot.lane.b32.xlu0 %v1806, 1
        %v1934 = vpop.permute.xlu0 %1933
        %1935 = vrot.lane.b32.xlu0 %v1808, 1
        %v1936 = vpop.permute.xlu0 %1935
        %1937 = vrot.lane.b32.xlu0 %v1810, 1
        %v1938 = vpop.permute.xlu0 %1937
        %1939 = vrot.lane.b32.xlu0 %v1812, 1
        %v1940 = vpop.permute.xlu0 %1939
        %1941 = vrot.lane.b32.xlu0 %v1814, 1
        %v1942 = vpop.permute.xlu0 %1941
        %1943 = vrot.lane.b32.xlu0 %v1816, 1
        %v1944 = vpop.permute.xlu0 %1943
        %1945 = vrot.lane.b32.xlu0 %v1818, 1
        %v1946 = vpop.permute.xlu0 %1945
        %v1947 = vsub.s32 %v1564, %v1820
        %v1948 = vsub.s32 %v1566, %v1822
        %v1949 = vsub.s32 %v1568, %v1824
        %v1950 = vsub.s32 %v1570, %v1826
        %v1951 = vsub.s32 %v1572, %v1828
        %v1952 = vsub.s32 %v1574, %v1830
        %v1953 = vsub.s32 %v1576, %v1832
        %v1954 = vsub.s32 %v1578, %v1834
        %v1955 = vsub.s32 %v1580, %v1836
        %v1956 = vsub.s32 %v1582, %v1838
        %v1957 = vsub.s32 %v1584, %v1840
        %v1958 = vsub.s32 %v1586, %v1842
        %v1959 = vsub.s32 %v1588, %v1844
        %v1960 = vsub.s32 %v1590, %v1846
        %v1961 = vsub.s32 %v1592, %v1848
        %v1962 = vsub.s32 %v1594, %v1850
        %v1963 = vsub.s32 %v1596, %v1852
        %v1964 = vsub.s32 %v1598, %v1854
        %v1965 = vsub.s32 %v1600, %v1856
        %v1966 = vsub.s32 %v1602, %v1858
        %v1967 = vsub.s32 %v1604, %v1860
        %v1968 = vsub.s32 %v1606, %v1862
        %v1969 = vsub.s32 %v1608, %v1864
        %v1970 = vsub.s32 %v1610, %v1866
        %v1971 = vsub.s32 %v1612, %v1868
        %v1972 = vsub.s32 %v1614, %v1870
        %v1973 = vsub.s32 %v1616, %v1872
        %v1974 = vsub.s32 %v1618, %v1874
        %v1975 = vsub.s32 %v1620, %v1876
        %v1976 = vsub.s32 %v1622, %v1878
        %v1977 = vsub.s32 %v1624, %v1880
        %v1978 = vsub.s32 %v1626, %v1882
        %v1979 = vsub.s32 %v1628, %v1884
        %v1980 = vsub.s32 %v1630, %v1886
        %v1981 = vsub.s32 %v1632, %v1888
        %v1982 = vsub.s32 %v1634, %v1890
        %v1983 = vsub.s32 %v1636, %v1892
        %v1984 = vsub.s32 %v1638, %v1894
        %v1985 = vsub.s32 %v1640, %v1896
        %v1986 = vsub.s32 %v1642, %v1898
        %v1987 = vsub.s32 %v1644, %v1900
        %v1988 = vsub.s32 %v1646, %v1902
        %v1989 = vsub.s32 %v1648, %v1904
        %v1990 = vsub.s32 %v1650, %v1906
        %v1991 = vsub.s32 %v1652, %v1908
        %v1992 = vsub.s32 %v1654, %v1910
        %v1993 = vsub.s32 %v1656, %v1912
        %v1994 = vsub.s32 %v1658, %v1914
        %v1995 = vsub.s32 %v1660, %v1916
        %v1996 = vsub.s32 %v1662, %v1918
        %v1997 = vsub.s32 %v1664, %v1920
        %v1998 = vsub.s32 %v1666, %v1922
        %v1999 = vsub.s32 %v1668, %v1924
        %v2000 = vsub.s32 %v1670, %v1926
        %v2001 = vsub.s32 %v1672, %v1928
        %v2002 = vsub.s32 %v1674, %v1930
        %v2003 = vsub.s32 %v1676, %v1932
        %v2004 = vsub.s32 %v1678, %v1934
        %v2005 = vsub.s32 %v1680, %v1936
        %v2006 = vsub.s32 %v1682, %v1938
        %v2007 = vsub.s32 %v1684, %v1940
        %v2008 = vsub.s32 %v1686, %v1942
        %v2009 = vsub.s32 %v1688, %v1944
        %v2010 = vsub.s32 %v1690, %v1946
        %v2011 = vadd.s32 %v1947, 1
        %v2012 = vadd.s32 %v1948, 1
        %v2013 = vadd.s32 %v1949, 1
        %v2014 = vadd.s32 %v1950, 1
        %v2015 = vadd.s32 %v1951, 1
        %v2016 = vadd.s32 %v1952, 1
        %v2017 = vadd.s32 %v1953, 1
        %v2018 = vadd.s32 %v1954, 1
        %v2019 = vadd.s32 %v1955, 1
        %v2020 = vadd.s32 %v1956, 1
        %v2021 = vadd.s32 %v1957, 1
        %v2022 = vadd.s32 %v1958, 1
        %v2023 = vadd.s32 %v1959, 1
        %v2024 = vadd.s32 %v1960, 1
        %v2025 = vadd.s32 %v1961, 1
        %v2026 = vadd.s32 %v1962, 1
        %v2027 = vadd.s32 %v1963, 1
        %v2028 = vadd.s32 %v1964, 1
        %v2029 = vadd.s32 %v1965, 1
        %v2030 = vadd.s32 %v1966, 1
        %v2031 = vadd.s32 %v1967, 1
        %v2032 = vadd.s32 %v1968, 1
        %v2033 = vadd.s32 %v1969, 1
        %v2034 = vadd.s32 %v1970, 1
        %v2035 = vadd.s32 %v1971, 1
        %v2036 = vadd.s32 %v1972, 1
        %v2037 = vadd.s32 %v1973, 1
        %v2038 = vadd.s32 %v1974, 1
        %v2039 = vadd.s32 %v1975, 1
        %v2040 = vadd.s32 %v1976, 1
        %v2041 = vadd.s32 %v1977, 1
        %v2042 = vadd.s32 %v1978, 1
        %v2043 = vadd.s32 %v1979, 1
        %v2044 = vadd.s32 %v1980, 1
        %v2045 = vadd.s32 %v1981, 1
        %v2046 = vadd.s32 %v1982, 1
        %v2047 = vadd.s32 %v1983, 1
        %v2048 = vadd.s32 %v1984, 1
        %v2049 = vadd.s32 %v1985, 1
        %v2050 = vadd.s32 %v1986, 1
        %v2051 = vadd.s32 %v1987, 1
        %v2052 = vadd.s32 %v1988, 1
        %v2053 = vadd.s32 %v1989, 1
        %v2054 = vadd.s32 %v1990, 1
        %v2055 = vadd.s32 %v1991, 1
        %v2056 = vadd.s32 %v1992, 1
        %v2057 = vadd.s32 %v1993, 1
        %v2058 = vadd.s32 %v1994, 1
        %v2059 = vadd.s32 %v1995, 1
        %v2060 = vadd.s32 %v1996, 1
        %v2061 = vadd.s32 %v1997, 1
        %v2062 = vadd.s32 %v1998, 1
        %v2063 = vadd.s32 %v1999, 1
        %v2064 = vadd.s32 %v2000, 1
        %v2065 = vadd.s32 %v2001, 1
        %v2066 = vadd.s32 %v2002, 1
        %v2067 = vadd.s32 %v2003, 1
        %v2068 = vadd.s32 %v2004, 1
        %v2069 = vadd.s32 %v2005, 1
        %v2070 = vadd.s32 %v2006, 1
        %v2071 = vadd.s32 %v2007, 1
        %v2072 = vadd.s32 %v2008, 1
        %v2073 = vadd.s32 %v2009, 1
        %v2074 = vadd.s32 %v2010, 1
        %vm2075 = vcmp.gt.s32.totalorder %v2011, 0
        %v2076 = vsel %vm2075, %v2011, 0
        %vm2077 = vcmp.gt.s32.totalorder %v2012, 0
        %v2078 = vsel %vm2077, %v2012, 0
        %vm2079 = vcmp.gt.s32.totalorder %v2013, 0
        %v2080 = vsel %vm2079, %v2013, 0
        %vm2081 = vcmp.gt.s32.totalorder %v2014, 0
        %v2082 = vsel %vm2081, %v2014, 0
        %vm2083 = vcmp.gt.s32.totalorder %v2015, 0
        %v2084 = vsel %vm2083, %v2015, 0
        %vm2085 = vcmp.gt.s32.totalorder %v2016, 0
        %v2086 = vsel %vm2085, %v2016, 0
        %vm2087 = vcmp.gt.s32.totalorder %v2017, 0
        %v2088 = vsel %vm2087, %v2017, 0
        %vm2089 = vcmp.gt.s32.totalorder %v2018, 0
        %v2090 = vsel %vm2089, %v2018, 0
        %vm2091 = vcmp.gt.s32.totalorder %v2019, 0
        %v2092 = vsel %vm2091, %v2019, 0
        %vm2093 = vcmp.gt.s32.totalorder %v2020, 0
        %v2094 = vsel %vm2093, %v2020, 0
        %vm2095 = vcmp.gt.s32.totalorder %v2021, 0
        %v2096 = vsel %vm2095, %v2021, 0
        %vm2097 = vcmp.gt.s32.totalorder %v2022, 0
        %v2098 = vsel %vm2097, %v2022, 0
        %vm2099 = vcmp.gt.s32.totalorder %v2023, 0
        %v2100 = vsel %vm2099, %v2023, 0
        %vm2101 = vcmp.gt.s32.totalorder %v2024, 0
        %v2102 = vsel %vm2101, %v2024, 0
        %vm2103 = vcmp.gt.s32.totalorder %v2025, 0
        %v2104 = vsel %vm2103, %v2025, 0
        %vm2105 = vcmp.gt.s32.totalorder %v2026, 0
        %v2106 = vsel %vm2105, %v2026, 0
        %vm2107 = vcmp.gt.s32.totalorder %v2027, 0
        %v2108 = vsel %vm2107, %v2027, 0
        %vm2109 = vcmp.gt.s32.totalorder %v2028, 0
        %v2110 = vsel %vm2109, %v2028, 0
        %vm2111 = vcmp.gt.s32.totalorder %v2029, 0
        %v2112 = vsel %vm2111, %v2029, 0
        %vm2113 = vcmp.gt.s32.totalorder %v2030, 0
        %v2114 = vsel %vm2113, %v2030, 0
        %vm2115 = vcmp.gt.s32.totalorder %v2031, 0
        %v2116 = vsel %vm2115, %v2031, 0
        %vm2117 = vcmp.gt.s32.totalorder %v2032, 0
        %v2118 = vsel %vm2117, %v2032, 0
        %vm2119 = vcmp.gt.s32.totalorder %v2033, 0
        %v2120 = vsel %vm2119, %v2033, 0
        %vm2121 = vcmp.gt.s32.totalorder %v2034, 0
        %v2122 = vsel %vm2121, %v2034, 0
        %vm2123 = vcmp.gt.s32.totalorder %v2035, 0
        %v2124 = vsel %vm2123, %v2035, 0
        %vm2125 = vcmp.gt.s32.totalorder %v2036, 0
        %v2126 = vsel %vm2125, %v2036, 0
        %vm2127 = vcmp.gt.s32.totalorder %v2037, 0
        %v2128 = vsel %vm2127, %v2037, 0
        %vm2129 = vcmp.gt.s32.totalorder %v2038, 0
        %v2130 = vsel %vm2129, %v2038, 0
        %vm2131 = vcmp.gt.s32.totalorder %v2039, 0
        %v2132 = vsel %vm2131, %v2039, 0
        %vm2133 = vcmp.gt.s32.totalorder %v2040, 0
        %v2134 = vsel %vm2133, %v2040, 0
        %vm2135 = vcmp.gt.s32.totalorder %v2041, 0
        %v2136 = vsel %vm2135, %v2041, 0
        %vm2137 = vcmp.gt.s32.totalorder %v2042, 0
        %v2138 = vsel %vm2137, %v2042, 0
        %vm2139 = vcmp.gt.s32.totalorder %v2043, 0
        %v2140 = vsel %vm2139, %v2043, 0
        %vm2141 = vcmp.gt.s32.totalorder %v2044, 0
        %v2142 = vsel %vm2141, %v2044, 0
        %vm2143 = vcmp.gt.s32.totalorder %v2045, 0
        %v2144 = vsel %vm2143, %v2045, 0
        %vm2145 = vcmp.gt.s32.totalorder %v2046, 0
        %v2146 = vsel %vm2145, %v2046, 0
        %vm2147 = vcmp.gt.s32.totalorder %v2047, 0
        %v2148 = vsel %vm2147, %v2047, 0
        %vm2149 = vcmp.gt.s32.totalorder %v2048, 0
        %v2150 = vsel %vm2149, %v2048, 0
        %vm2151 = vcmp.gt.s32.totalorder %v2049, 0
        %v2152 = vsel %vm2151, %v2049, 0
        %vm2153 = vcmp.gt.s32.totalorder %v2050, 0
        %v2154 = vsel %vm2153, %v2050, 0
        %vm2155 = vcmp.gt.s32.totalorder %v2051, 0
        %v2156 = vsel %vm2155, %v2051, 0
        %vm2157 = vcmp.gt.s32.totalorder %v2052, 0
        %v2158 = vsel %vm2157, %v2052, 0
        %vm2159 = vcmp.gt.s32.totalorder %v2053, 0
        %v2160 = vsel %vm2159, %v2053, 0
        %vm2161 = vcmp.gt.s32.totalorder %v2054, 0
        %v2162 = vsel %vm2161, %v2054, 0
        %vm2163 = vcmp.gt.s32.totalorder %v2055, 0
        %v2164 = vsel %vm2163, %v2055, 0
        %vm2165 = vcmp.gt.s32.totalorder %v2056, 0
        %v2166 = vsel %vm2165, %v2056, 0
        %vm2167 = vcmp.gt.s32.totalorder %v2057, 0
        %v2168 = vsel %vm2167, %v2057, 0
        %vm2169 = vcmp.gt.s32.totalorder %v2058, 0
        %v2170 = vsel %vm2169, %v2058, 0
        %vm2171 = vcmp.gt.s32.totalorder %v2059, 0
        %v2172 = vsel %vm2171, %v2059, 0
        %vm2173 = vcmp.gt.s32.totalorder %v2060, 0
        %v2174 = vsel %vm2173, %v2060, 0
        %vm2175 = vcmp.gt.s32.totalorder %v2061, 0
        %v2176 = vsel %vm2175, %v2061, 0
        %vm2177 = vcmp.gt.s32.totalorder %v2062, 0
        %v2178 = vsel %vm2177, %v2062, 0
        %vm2179 = vcmp.gt.s32.totalorder %v2063, 0
        %v2180 = vsel %vm2179, %v2063, 0
        %vm2181 = vcmp.gt.s32.totalorder %v2064, 0
        %v2182 = vsel %vm2181, %v2064, 0
        %vm2183 = vcmp.gt.s32.totalorder %v2065, 0
        %v2184 = vsel %vm2183, %v2065, 0
        %vm2185 = vcmp.gt.s32.totalorder %v2066, 0
        %v2186 = vsel %vm2185, %v2066, 0
        %vm2187 = vcmp.gt.s32.totalorder %v2067, 0
        %v2188 = vsel %vm2187, %v2067, 0
        %vm2189 = vcmp.gt.s32.totalorder %v2068, 0
        %v2190 = vsel %vm2189, %v2068, 0
        %vm2191 = vcmp.gt.s32.totalorder %v2069, 0
        %v2192 = vsel %vm2191, %v2069, 0
        %vm2193 = vcmp.gt.s32.totalorder %v2070, 0
        %v2194 = vsel %vm2193, %v2070, 0
        %vm2195 = vcmp.gt.s32.totalorder %v2071, 0
        %v2196 = vsel %vm2195, %v2071, 0
        %vm2197 = vcmp.gt.s32.totalorder %v2072, 0
        %v2198 = vsel %vm2197, %v2072, 0
        %vm2199 = vcmp.gt.s32.totalorder %v2073, 0
        %v2200 = vsel %vm2199, %v2073, 0
        %vm2201 = vcmp.gt.s32.totalorder %v2074, 0
        %v2202 = vsel %vm2201, %v2074, 0
        %v2203 = vcvt.s32.f32 %v2076
        %v2204 = vcvt.s32.f32 %v2078
        %v2205 = vcvt.s32.f32 %v2080
        %v2206 = vcvt.s32.f32 %v2082
        %v2207 = vcvt.s32.f32 %v2084
        %v2208 = vcvt.s32.f32 %v2086
        %v2209 = vcvt.s32.f32 %v2088
        %v2210 = vcvt.s32.f32 %v2090
        %v2211 = vcvt.s32.f32 %v2092
        %v2212 = vcvt.s32.f32 %v2094
        %v2213 = vcvt.s32.f32 %v2096
        %v2214 = vcvt.s32.f32 %v2098
        %v2215 = vcvt.s32.f32 %v2100
        %v2216 = vcvt.s32.f32 %v2102
        %v2217 = vcvt.s32.f32 %v2104
        %v2218 = vcvt.s32.f32 %v2106
        %v2219 = vcvt.s32.f32 %v2108
        %v2220 = vcvt.s32.f32 %v2110
        %v2221 = vcvt.s32.f32 %v2112
        %v2222 = vcvt.s32.f32 %v2114
        %v2223 = vcvt.s32.f32 %v2116
        %v2224 = vcvt.s32.f32 %v2118
        %v2225 = vcvt.s32.f32 %v2120
        %v2226 = vcvt.s32.f32 %v2122
        %v2227 = vcvt.s32.f32 %v2124
        %v2228 = vcvt.s32.f32 %v2126
        %v2229 = vcvt.s32.f32 %v2128
        %v2230 = vcvt.s32.f32 %v2130
        %v2231 = vcvt.s32.f32 %v2132
        %v2232 = vcvt.s32.f32 %v2134
        %v2233 = vcvt.s32.f32 %v2136
        %v2234 = vcvt.s32.f32 %v2138
        %v2235 = vcvt.s32.f32 %v2140
        %v2236 = vcvt.s32.f32 %v2142
        %v2237 = vcvt.s32.f32 %v2144
        %v2238 = vcvt.s32.f32 %v2146
        %v2239 = vcvt.s32.f32 %v2148
        %v2240 = vcvt.s32.f32 %v2150
        %v2241 = vcvt.s32.f32 %v2152
        %v2242 = vcvt.s32.f32 %v2154
        %v2243 = vcvt.s32.f32 %v2156
        %v2244 = vcvt.s32.f32 %v2158
        %v2245 = vcvt.s32.f32 %v2160
        %v2246 = vcvt.s32.f32 %v2162
        %v2247 = vcvt.s32.f32 %v2164
        %v2248 = vcvt.s32.f32 %v2166
        %v2249 = vcvt.s32.f32 %v2168
        %v2250 = vcvt.s32.f32 %v2170
        %v2251 = vcvt.s32.f32 %v2172
        %v2252 = vcvt.s32.f32 %v2174
        %v2253 = vcvt.s32.f32 %v2176
        %v2254 = vcvt.s32.f32 %v2178
        %v2255 = vcvt.s32.f32 %v2180
        %v2256 = vcvt.s32.f32 %v2182
        %v2257 = vcvt.s32.f32 %v2184
        %v2258 = vcvt.s32.f32 %v2186
        %v2259 = vcvt.s32.f32 %v2188
        %v2260 = vcvt.s32.f32 %v2190
        %v2261 = vcvt.s32.f32 %v2192
        %v2262 = vcvt.s32.f32 %v2194
        %v2263 = vcvt.s32.f32 %v2196
        %v2264 = vcvt.s32.f32 %v2198
        %v2265 = vcvt.s32.f32 %v2200
        %v2266 = vcvt.s32.f32 %v2202
        %v2267 = vsub.f32 128.0, %v2203
        %v2268 = vsub.f32 128.0, %v2204
        %v2269 = vsub.f32 128.0, %v2205
        %v2270 = vsub.f32 128.0, %v2206
        %v2271 = vsub.f32 128.0, %v2207
        %v2272 = vsub.f32 128.0, %v2208
        %v2273 = vsub.f32 128.0, %v2209
        %v2274 = vsub.f32 128.0, %v2210
        %v2275 = vsub.f32 128.0, %v2211
        %v2276 = vsub.f32 128.0, %v2212
        %v2277 = vsub.f32 128.0, %v2213
        %v2278 = vsub.f32 128.0, %v2214
        %v2279 = vsub.f32 128.0, %v2215
        %v2280 = vsub.f32 128.0, %v2216
        %v2281 = vsub.f32 128.0, %v2217
        %v2282 = vsub.f32 128.0, %v2218
        %v2283 = vsub.f32 128.0, %v2219
        %v2284 = vsub.f32 128.0, %v2220
        %v2285 = vsub.f32 128.0, %v2221
        %v2286 = vsub.f32 128.0, %v2222
        %v2287 = vsub.f32 128.0, %v2223
        %v2288 = vsub.f32 128.0, %v2224
        %v2289 = vsub.f32 128.0, %v2225
        %v2290 = vsub.f32 128.0, %v2226
        %v2291 = vsub.f32 128.0, %v2227
        %v2292 = vsub.f32 128.0, %v2228
        %v2293 = vsub.f32 128.0, %v2229
        %v2294 = vsub.f32 128.0, %v2230
        %v2295 = vsub.f32 128.0, %v2231
        %v2296 = vsub.f32 128.0, %v2232
        %v2297 = vsub.f32 128.0, %v2233
        %v2298 = vsub.f32 128.0, %v2234
        %v2299 = vsub.f32 128.0, %v2235
        %v2300 = vsub.f32 128.0, %v2236
        %v2301 = vsub.f32 128.0, %v2237
        %v2302 = vsub.f32 128.0, %v2238
        %v2303 = vsub.f32 128.0, %v2239
        %v2304 = vsub.f32 128.0, %v2240
        %v2305 = vsub.f32 128.0, %v2241
        %v2306 = vsub.f32 128.0, %v2242
        %v2307 = vsub.f32 128.0, %v2243
        %v2308 = vsub.f32 128.0, %v2244
        %v2309 = vsub.f32 128.0, %v2245
        %v2310 = vsub.f32 128.0, %v2246
        %v2311 = vsub.f32 128.0, %v2247
        %v2312 = vsub.f32 128.0, %v2248
        %v2313 = vsub.f32 128.0, %v2249
        %v2314 = vsub.f32 128.0, %v2250
        %v2315 = vsub.f32 128.0, %v2251
        %v2316 = vsub.f32 128.0, %v2252
        %v2317 = vsub.f32 128.0, %v2253
        %v2318 = vsub.f32 128.0, %v2254
        %v2319 = vsub.f32 128.0, %v2255
        %v2320 = vsub.f32 128.0, %v2256
        %v2321 = vsub.f32 128.0, %v2257
        %v2322 = vsub.f32 128.0, %v2258
        %v2323 = vsub.f32 128.0, %v2259
        %v2324 = vsub.f32 128.0, %v2260
        %v2325 = vsub.f32 128.0, %v2261
        %v2326 = vsub.f32 128.0, %v2262
        %v2327 = vsub.f32 128.0, %v2263
        %v2328 = vsub.f32 128.0, %v2264
        %v2329 = vsub.f32 128.0, %v2265
        %v2330 = vsub.f32 128.0, %v2266
        %v2331 = vsub.f32 0.0, %v1052
        %v2332 = vsub.f32 0.0, %v1054
        %v2333 = vsub.f32 0.0, %v1056
        %v2334 = vsub.f32 0.0, %v1058
        %v2335 = vsub.f32 0.0, %v1060
        %v2336 = vsub.f32 0.0, %v1062
        %v2337 = vsub.f32 0.0, %v1064
        %v2338 = vsub.f32 0.0, %v1066
        %v2339 = vsub.f32 0.0, %v1068
        %v2340 = vsub.f32 0.0, %v1070
        %v2341 = vsub.f32 0.0, %v1072
        %v2342 = vsub.f32 0.0, %v1074
        %v2343 = vsub.f32 0.0, %v1076
        %v2344 = vsub.f32 0.0, %v1078
        %v2345 = vsub.f32 0.0, %v1080
        %v2346 = vsub.f32 0.0, %v1082
        %v2347 = vsub.f32 0.0, %v1084
        %v2348 = vsub.f32 0.0, %v1086
        %v2349 = vsub.f32 0.0, %v1088
        %v2350 = vsub.f32 0.0, %v1090
        %v2351 = vsub.f32 0.0, %v1092
        %v2352 = vsub.f32 0.0, %v1094
        %v2353 = vsub.f32 0.0, %v1096
        %v2354 = vsub.f32 0.0, %v1098
        %v2355 = vsub.f32 0.0, %v1100
        %v2356 = vsub.f32 0.0, %v1102
        %v2357 = vsub.f32 0.0, %v1104
        %v2358 = vsub.f32 0.0, %v1106
        %v2359 = vsub.f32 0.0, %v1108
        %v2360 = vsub.f32 0.0, %v1110
        %v2361 = vsub.f32 0.0, %v1112
        %v2362 = vsub.f32 0.0, %v1114
        %v2363 = vsub.f32 0.0, %v1116
        %v2364 = vsub.f32 0.0, %v1118
        %v2365 = vsub.f32 0.0, %v1120
        %v2366 = vsub.f32 0.0, %v1122
        %v2367 = vsub.f32 0.0, %v1124
        %v2368 = vsub.f32 0.0, %v1126
        %v2369 = vsub.f32 0.0, %v1128
        %v2370 = vsub.f32 0.0, %v1130
        %v2371 = vsub.f32 0.0, %v1132
        %v2372 = vsub.f32 0.0, %v1134
        %v2373 = vsub.f32 0.0, %v1136
        %v2374 = vsub.f32 0.0, %v1138
        %v2375 = vsub.f32 0.0, %v1140
        %v2376 = vsub.f32 0.0, %v1142
        %v2377 = vsub.f32 0.0, %v1144
        %v2378 = vsub.f32 0.0, %v1146
        %v2379 = vsub.f32 0.0, %v1148
        %v2380 = vsub.f32 0.0, %v1150
        %v2381 = vsub.f32 0.0, %v1152
        %v2382 = vsub.f32 0.0, %v1154
        %v2383 = vsub.f32 0.0, %v1156
        %v2384 = vsub.f32 0.0, %v1158
        %v2385 = vsub.f32 0.0, %v1160
        %v2386 = vsub.f32 0.0, %v1162
        %v2387 = vsub.f32 0.0, %v1164
        %v2388 = vsub.f32 0.0, %v1166
        %v2389 = vsub.f32 0.0, %v1168
        %v2390 = vsub.f32 0.0, %v1170
        %v2391 = vsub.f32 0.0, %v1172
        %v2392 = vsub.f32 0.0, %v1174
        %v2393 = vsub.f32 0.0, %v1176
        %v2394 = vsub.f32 0.0, %v1178
        %v2395 = vmul.f32 %v2331, 1.442695
        %v2396 = vpow.pop %v2395
        %v2397 = vmul.f32 %v2332, 1.442695
        %v2398 = vpow.pop %v2397
        %v2399 = vmul.f32 %v2333, 1.442695
        %v2400 = vpow.pop %v2399
        %v2401 = vmul.f32 %v2334, 1.442695
        %v2402 = vpow.pop %v2401
        %v2403 = vmul.f32 %v2335, 1.442695
        %v2404 = vpow.pop %v2403
        %v2405 = vmul.f32 %v2336, 1.442695
        %v2406 = vpow.pop %v2405
        %v2407 = vmul.f32 %v2337, 1.442695
        %v2408 = vpow.pop %v2407
        %v2409 = vmul.f32 %v2338, 1.442695
        %v2410 = vpow.pop %v2409
        %v2411 = vmul.f32 %v2339, 1.442695
        %v2412 = vpow.pop %v2411
        %v2413 = vmul.f32 %v2340, 1.442695
        %v2414 = vpow.pop %v2413
        %v2415 = vmul.f32 %v2341, 1.442695
        %v2416 = vpow.pop %v2415
        %v2417 = vmul.f32 %v2342, 1.442695
        %v2418 = vpow.pop %v2417
        %v2419 = vmul.f32 %v2343, 1.442695
        %v2420 = vpow.pop %v2419
        %v2421 = vmul.f32 %v2344, 1.442695
        %v2422 = vpow.pop %v2421
        %v2423 = vmul.f32 %v2345, 1.442695
        %v2424 = vpow.pop %v2423
        %v2425 = vmul.f32 %v2346, 1.442695
        %v2426 = vpow.pop %v2425
        %v2427 = vmul.f32 %v2347, 1.442695
        %v2428 = vpow.pop %v2427
        %v2429 = vmul.f32 %v2348, 1.442695
        %v2430 = vpow.pop %v2429
        %v2431 = vmul.f32 %v2349, 1.442695
        %v2432 = vpow.pop %v2431
        %v2433 = vmul.f32 %v2350, 1.442695
        %v2434 = vpow.pop %v2433
        %v2435 = vmul.f32 %v2351, 1.442695
        %v2436 = vpow.pop %v2435
        %v2437 = vmul.f32 %v2352, 1.442695
        %v2438 = vpow.pop %v2437
        %v2439 = vmul.f32 %v2353, 1.442695
        %v2440 = vpow.pop %v2439
        %v2441 = vmul.f32 %v2354, 1.442695
        %v2442 = vpow.pop %v2441
        %v2443 = vmul.f32 %v2355, 1.442695
        %v2444 = vpow.pop %v2443
        %v2445 = vmul.f32 %v2356, 1.442695
        %v2446 = vpow.pop %v2445
        %v2447 = vmul.f32 %v2357, 1.442695
        %v2448 = vpow.pop %v2447
        %v2449 = vmul.f32 %v2358, 1.442695
        %v2450 = vpow.pop %v2449
        %v2451 = vmul.f32 %v2359, 1.442695
        %v2452 = vpow.pop %v2451
        %v2453 = vmul.f32 %v2360, 1.442695
        %v2454 = vpow.pop %v2453
        %v2455 = vmul.f32 %v2361, 1.442695
        %v2456 = vpow.pop %v2455
        %v2457 = vmul.f32 %v2362, 1.442695
        %v2458 = vpow.pop %v2457
        %v2459 = vmul.f32 %v2363, 1.442695
        %v2460 = vpow.pop %v2459
        %v2461 = vmul.f32 %v2364, 1.442695
        %v2462 = vpow.pop %v2461
        %v2463 = vmul.f32 %v2365, 1.442695
        %v2464 = vpow.pop %v2463
        %v2465 = vmul.f32 %v2366, 1.442695
        %v2466 = vpow.pop %v2465
        %v2467 = vmul.f32 %v2367, 1.442695
        %v2468 = vpow.pop %v2467
        %v2469 = vmul.f32 %v2368, 1.442695
        %v2470 = vpow.pop %v2469
        %v2471 = vmul.f32 %v2369, 1.442695
        %v2472 = vpow.pop %v2471
        %v2473 = vmul.f32 %v2370, 1.442695
        %v2474 = vpow.pop %v2473
        %v2475 = vmul.f32 %v2371, 1.442695
        %v2476 = vpow.pop %v2475
        %v2477 = vmul.f32 %v2372, 1.442695
        %v2478 = vpow.pop %v2477
        %v2479 = vmul.f32 %v2373, 1.442695
        %v2480 = vpow.pop %v2479
        %v2481 = vmul.f32 %v2374, 1.442695
        %v2482 = vpow.pop %v2481
        %v2483 = vmul.f32 %v2375, 1.442695
        %v2484 = vpow.pop %v2483
        %v2485 = vmul.f32 %v2376, 1.442695
        %v2486 = vpow.pop %v2485
        %v2487 = vmul.f32 %v2377, 1.442695
        %v2488 = vpow.pop %v2487
        %v2489 = vmul.f32 %v2378, 1.442695
        %v2490 = vpow.pop %v2489
        %v2491 = vmul.f32 %v2379, 1.442695
        %v2492 = vpow.pop %v2491
        %v2493 = vmul.f32 %v2380, 1.442695
        %v2494 = vpow.pop %v2493
        %v2495 = vmul.f32 %v2381, 1.442695
        %v2496 = vpow.pop %v2495
        %v2497 = vmul.f32 %v2382, 1.442695
        %v2498 = vpow.pop %v2497
        %v2499 = vmul.f32 %v2383, 1.442695
        %v2500 = vpow.pop %v2499
        %v2501 = vmul.f32 %v2384, 1.442695
        %v2502 = vpow.pop %v2501
        %v2503 = vmul.f32 %v2385, 1.442695
        %v2504 = vpow.pop %v2503
        %v2505 = vmul.f32 %v2386, 1.442695
        %v2506 = vpow.pop %v2505
        %v2507 = vmul.f32 %v2387, 1.442695
        %v2508 = vpow.pop %v2507
        %v2509 = vmul.f32 %v2388, 1.442695
        %v2510 = vpow.pop %v2509
        %v2511 = vmul.f32 %v2389, 1.442695
        %v2512 = vpow.pop %v2511
        %v2513 = vmul.f32 %v2390, 1.442695
        %v2514 = vpow.pop %v2513
        %v2515 = vmul.f32 %v2391, 1.442695
        %v2516 = vpow.pop %v2515
        %v2517 = vmul.f32 %v2392, 1.442695
        %v2518 = vpow.pop %v2517
        %v2519 = vmul.f32 %v2393, 1.442695
        %v2520 = vpow.pop %v2519
        %v2521 = vmul.f32 %v2394, 1.442695
        %v2522 = vpow.pop %v2521
        %v2523 = vmul.f32 %v2267, %v2396
        %v2524 = vmul.f32 %v2268, %v2398
        %v2525 = vmul.f32 %v2269, %v2400
        %v2526 = vmul.f32 %v2270, %v2402
        %v2527 = vmul.f32 %v2271, %v2404
        %v2528 = vmul.f32 %v2272, %v2406
        %v2529 = vmul.f32 %v2273, %v2408
        %v2530 = vmul.f32 %v2274, %v2410
        %v2531 = vmul.f32 %v2275, %v2412
        %v2532 = vmul.f32 %v2276, %v2414
        %v2533 = vmul.f32 %v2277, %v2416
        %v2534 = vmul.f32 %v2278, %v2418
        %v2535 = vmul.f32 %v2279, %v2420
        %v2536 = vmul.f32 %v2280, %v2422
        %v2537 = vmul.f32 %v2281, %v2424
        %v2538 = vmul.f32 %v2282, %v2426
        %v2539 = vmul.f32 %v2283, %v2428
        %v2540 = vmul.f32 %v2284, %v2430
        %v2541 = vmul.f32 %v2285, %v2432
        %v2542 = vmul.f32 %v2286, %v2434
        %v2543 = vmul.f32 %v2287, %v2436
        %v2544 = vmul.f32 %v2288, %v2438
        %v2545 = vmul.f32 %v2289, %v2440
        %v2546 = vmul.f32 %v2290, %v2442
        %v2547 = vmul.f32 %v2291, %v2444
        %v2548 = vmul.f32 %v2292, %v2446
        %v2549 = vmul.f32 %v2293, %v2448
        %v2550 = vmul.f32 %v2294, %v2450
        %v2551 = vmul.f32 %v2295, %v2452
        %v2552 = vmul.f32 %v2296, %v2454
        %v2553 = vmul.f32 %v2297, %v2456
        %v2554 = vmul.f32 %v2298, %v2458
        %v2555 = vmul.f32 %v2299, %v2460
        %v2556 = vmul.f32 %v2300, %v2462
        %v2557 = vmul.f32 %v2301, %v2464
        %v2558 = vmul.f32 %v2302, %v2466
        %v2559 = vmul.f32 %v2303, %v2468
        %v2560 = vmul.f32 %v2304, %v2470
        %v2561 = vmul.f32 %v2305, %v2472
        %v2562 = vmul.f32 %v2306, %v2474
        %v2563 = vmul.f32 %v2307, %v2476
        %v2564 = vmul.f32 %v2308, %v2478
        %v2565 = vmul.f32 %v2309, %v2480
        %v2566 = vmul.f32 %v2310, %v2482
        %v2567 = vmul.f32 %v2311, %v2484
        %v2568 = vmul.f32 %v2312, %v2486
        %v2569 = vmul.f32 %v2313, %v2488
        %v2570 = vmul.f32 %v2314, %v2490
        %v2571 = vmul.f32 %v2315, %v2492
        %v2572 = vmul.f32 %v2316, %v2494
        %v2573 = vmul.f32 %v2317, %v2496
        %v2574 = vmul.f32 %v2318, %v2498
        %v2575 = vmul.f32 %v2319, %v2500
        %v2576 = vmul.f32 %v2320, %v2502
        %v2577 = vmul.f32 %v2321, %v2504
        %v2578 = vmul.f32 %v2322, %v2506
        %v2579 = vmul.f32 %v2323, %v2508
        %v2580 = vmul.f32 %v2324, %v2510
        %v2581 = vmul.f32 %v2325, %v2512
        %v2582 = vmul.f32 %v2326, %v2514
        %v2583 = vmul.f32 %v2327, %v2516
        %v2584 = vmul.f32 %v2328, %v2518
        %v2585 = vmul.f32 %v2329, %v2520
        %v2586 = vmul.f32 %v2330, %v2522
        %v2587 = vadd.f32 %v1436, %v2523
        %v2588 = vadd.f32 %v1438, %v2524
        %v2589 = vadd.f32 %v1440, %v2525
        %v2590 = vadd.f32 %v1442, %v2526
        %v2591 = vadd.f32 %v1444, %v2527
        %v2592 = vadd.f32 %v1446, %v2528
        %v2593 = vadd.f32 %v1448, %v2529
        %v2594 = vadd.f32 %v1450, %v2530
        %v2595 = vadd.f32 %v1452, %v2531
        %v2596 = vadd.f32 %v1454, %v2532
        %v2597 = vadd.f32 %v1456, %v2533
        %v2598 = vadd.f32 %v1458, %v2534
        %v2599 = vadd.f32 %v1460, %v2535
        %v2600 = vadd.f32 %v1462, %v2536
        %v2601 = vadd.f32 %v1464, %v2537
        %v2602 = vadd.f32 %v1466, %v2538
        %v2603 = vadd.f32 %v1468, %v2539
        %v2604 = vadd.f32 %v1470, %v2540
        %v2605 = vadd.f32 %v1472, %v2541
        %v2606 = vadd.f32 %v1474, %v2542
        %v2607 = vadd.f32 %v1476, %v2543
        %v2608 = vadd.f32 %v1478, %v2544
        %v2609 = vadd.f32 %v1480, %v2545
        %v2610 = vadd.f32 %v1482, %v2546
        %v2611 = vadd.f32 %v1484, %v2547
        %v2612 = vadd.f32 %v1486, %v2548
        %v2613 = vadd.f32 %v1488, %v2549
        %v2614 = vadd.f32 %v1490, %v2550
        %v2615 = vadd.f32 %v1492, %v2551
        %v2616 = vadd.f32 %v1494, %v2552
        %v2617 = vadd.f32 %v1496, %v2553
        %v2618 = vadd.f32 %v1498, %v2554
        %v2619 = vadd.f32 %v1500, %v2555
        %v2620 = vadd.f32 %v1502, %v2556
        %v2621 = vadd.f32 %v1504, %v2557
        %v2622 = vadd.f32 %v1506, %v2558
        %v2623 = vadd.f32 %v1508, %v2559
        %v2624 = vadd.f32 %v1510, %v2560
        %v2625 = vadd.f32 %v1512, %v2561
        %v2626 = vadd.f32 %v1514, %v2562
        %v2627 = vadd.f32 %v1516, %v2563
        %v2628 = vadd.f32 %v1518, %v2564
        %v2629 = vadd.f32 %v1520, %v2565
        %v2630 = vadd.f32 %v1522, %v2566
        %v2631 = vadd.f32 %v1524, %v2567
        %v2632 = vadd.f32 %v1526, %v2568
        %v2633 = vadd.f32 %v1528, %v2569
        %v2634 = vadd.f32 %v1530, %v2570
        %v2635 = vadd.f32 %v1532, %v2571
        %v2636 = vadd.f32 %v1534, %v2572
        %v2637 = vadd.f32 %v1536, %v2573
        %v2638 = vadd.f32 %v1538, %v2574
        %v2639 = vadd.f32 %v1540, %v2575
        %v2640 = vadd.f32 %v1542, %v2576
        %v2641 = vadd.f32 %v1544, %v2577
        %v2642 = vadd.f32 %v1546, %v2578
        %v2643 = vadd.f32 %v1548, %v2579
        %v2644 = vadd.f32 %v1550, %v2580
        %v2645 = vadd.f32 %v1552, %v2581
        %v2646 = vadd.f32 %v1554, %v2582
        %v2647 = vadd.f32 %v1556, %v2583
        %v2648 = vadd.f32 %v1558, %v2584
        %v2649 = vadd.f32 %v1560, %v2585
        %v2650 = vadd.f32 %v1562, %v2586
        %v2651 = vmul.f32 %v2587, 1e-13
        %v2652 = vmul.f32 %v2588, 1e-13
        %v2653 = vmul.f32 %v2589, 1e-13
        %v2654 = vmul.f32 %v2590, 1e-13
        %v2655 = vmul.f32 %v2591, 1e-13
        %v2656 = vmul.f32 %v2592, 1e-13
        %v2657 = vmul.f32 %v2593, 1e-13
        %v2658 = vmul.f32 %v2594, 1e-13
        %v2659 = vmul.f32 %v2595, 1e-13
        %v2660 = vmul.f32 %v2596, 1e-13
        %v2661 = vmul.f32 %v2597, 1e-13
        %v2662 = vmul.f32 %v2598, 1e-13
        %v2663 = vmul.f32 %v2599, 1e-13
        %v2664 = vmul.f32 %v2600, 1e-13
        %v2665 = vmul.f32 %v2601, 1e-13
        %v2666 = vmul.f32 %v2602, 1e-13
        %v2667 = vmul.f32 %v2603, 1e-13
        %v2668 = vmul.f32 %v2604, 1e-13
        %v2669 = vmul.f32 %v2605, 1e-13
        %v2670 = vmul.f32 %v2606, 1e-13
        %v2671 = vmul.f32 %v2607, 1e-13
        %v2672 = vmul.f32 %v2608, 1e-13
        %v2673 = vmul.f32 %v2609, 1e-13
        %v2674 = vmul.f32 %v2610, 1e-13
        %v2675 = vmul.f32 %v2611, 1e-13
        %v2676 = vmul.f32 %v2612, 1e-13
        %v2677 = vmul.f32 %v2613, 1e-13
        %v2678 = vmul.f32 %v2614, 1e-13
        %v2679 = vmul.f32 %v2615, 1e-13
        %v2680 = vmul.f32 %v2616, 1e-13
        %v2681 = vmul.f32 %v2617, 1e-13
        %v2682 = vmul.f32 %v2618, 1e-13
        %v2683 = vmul.f32 %v2619, 1e-13
        %v2684 = vmul.f32 %v2620, 1e-13
        %v2685 = vmul.f32 %v2621, 1e-13
        %v2686 = vmul.f32 %v2622, 1e-13
        %v2687 = vmul.f32 %v2623, 1e-13
        %v2688 = vmul.f32 %v2624, 1e-13
        %v2689 = vmul.f32 %v2625, 1e-13
        %v2690 = vmul.f32 %v2626, 1e-13
        %v2691 = vmul.f32 %v2627, 1e-13
        %v2692 = vmul.f32 %v2628, 1e-13
        %v2693 = vmul.f32 %v2629, 1e-13
        %v2694 = vmul.f32 %v2630, 1e-13
        %v2695 = vmul.f32 %v2631, 1e-13
        %v2696 = vmul.f32 %v2632, 1e-13
        %v2697 = vmul.f32 %v2633, 1e-13
        %v2698 = vmul.f32 %v2634, 1e-13
        %v2699 = vmul.f32 %v2635, 1e-13
        %v2700 = vmul.f32 %v2636, 1e-13
        %v2701 = vmul.f32 %v2637, 1e-13
        %v2702 = vmul.f32 %v2638, 1e-13
        %v2703 = vmul.f32 %v2639, 1e-13
        %v2704 = vmul.f32 %v2640, 1e-13
        %v2705 = vmul.f32 %v2641, 1e-13
        %v2706 = vmul.f32 %v2642, 1e-13
        %v2707 = vmul.f32 %v2643, 1e-13
        %v2708 = vmul.f32 %v2644, 1e-13
        %v2709 = vmul.f32 %v2645, 1e-13
        %v2710 = vmul.f32 %v2646, 1e-13
        %v2711 = vmul.f32 %v2647, 1e-13
        %v2712 = vmul.f32 %v2648, 1e-13
        %v2713 = vmul.f32 %v2649, 1e-13
        %v2714 = vmul.f32 %v2650, 1e-13
        %v2715 = vadd.f32 %v1436, %v2651
        %v2716 = vadd.f32 %v1438, %v2652
        %v2717 = vadd.f32 %v1440, %v2653
        %v2718 = vadd.f32 %v1442, %v2654
        %v2719 = vadd.f32 %v1444, %v2655
        %v2720 = vadd.f32 %v1446, %v2656
        %v2721 = vadd.f32 %v1448, %v2657
        %v2722 = vadd.f32 %v1450, %v2658
        %v2723 = vadd.f32 %v1452, %v2659
        %v2724 = vadd.f32 %v1454, %v2660
        %v2725 = vadd.f32 %v1456, %v2661
        %v2726 = vadd.f32 %v1458, %v2662
        %v2727 = vadd.f32 %v1460, %v2663
        %v2728 = vadd.f32 %v1462, %v2664
        %v2729 = vadd.f32 %v1464, %v2665
        %v2730 = vadd.f32 %v1466, %v2666
        %v2731 = vadd.f32 %v1468, %v2667
        %v2732 = vadd.f32 %v1470, %v2668
        %v2733 = vadd.f32 %v1472, %v2669
        %v2734 = vadd.f32 %v1474, %v2670
        %v2735 = vadd.f32 %v1476, %v2671
        %v2736 = vadd.f32 %v1478, %v2672
        %v2737 = vadd.f32 %v1480, %v2673
        %v2738 = vadd.f32 %v1482, %v2674
        %v2739 = vadd.f32 %v1484, %v2675
        %v2740 = vadd.f32 %v1486, %v2676
        %v2741 = vadd.f32 %v1488, %v2677
        %v2742 = vadd.f32 %v1490, %v2678
        %v2743 = vadd.f32 %v1492, %v2679
        %v2744 = vadd.f32 %v1494, %v2680
        %v2745 = vadd.f32 %v1496, %v2681
        %v2746 = vadd.f32 %v1498, %v2682
        %v2747 = vadd.f32 %v1500, %v2683
        %v2748 = vadd.f32 %v1502, %v2684
        %v2749 = vadd.f32 %v1504, %v2685
        %v2750 = vadd.f32 %v1506, %v2686
        %v2751 = vadd.f32 %v1508, %v2687
        %v2752 = vadd.f32 %v1510, %v2688
        %v2753 = vadd.f32 %v1512, %v2689
        %v2754 = vadd.f32 %v1514, %v2690
        %v2755 = vadd.f32 %v1516, %v2691
        %v2756 = vadd.f32 %v1518, %v2692
        %v2757 = vadd.f32 %v1520, %v2693
        %v2758 = vadd.f32 %v1522, %v2694
        %v2759 = vadd.f32 %v1524, %v2695
        %v2760 = vadd.f32 %v1526, %v2696
        %v2761 = vadd.f32 %v1528, %v2697
        %v2762 = vadd.f32 %v1530, %v2698
        %v2763 = vadd.f32 %v1532, %v2699
        %v2764 = vadd.f32 %v1534, %v2700
        %v2765 = vadd.f32 %v1536, %v2701
        %v2766 = vadd.f32 %v1538, %v2702
        %v2767 = vadd.f32 %v1540, %v2703
        %v2768 = vadd.f32 %v1542, %v2704
        %v2769 = vadd.f32 %v1544, %v2705
        %v2770 = vadd.f32 %v1546, %v2706
        %v2771 = vadd.f32 %v1548, %v2707
        %v2772 = vadd.f32 %v1550, %v2708
        %v2773 = vadd.f32 %v1552, %v2709
        %v2774 = vadd.f32 %v1554, %v2710
        %v2775 = vadd.f32 %v1556, %v2711
        %v2776 = vadd.f32 %v1558, %v2712
        %v2777 = vadd.f32 %v1560, %v2713
        %v2778 = vadd.f32 %v1562, %v2714
        %v2779 = vrcp.pop %v2715
        %v2780 = vrcp.pop %v2716
        %v2781 = vrcp.pop %v2717
        %v2782 = vrcp.pop %v2718
        %v2783 = vrcp.pop %v2719
        %v2784 = vrcp.pop %v2720
        %v2785 = vrcp.pop %v2721
        %v2786 = vrcp.pop %v2722
        %v2787 = vrcp.pop %v2723
        %v2788 = vrcp.pop %v2724
        %v2789 = vrcp.pop %v2725
        %v2790 = vrcp.pop %v2726
        %v2791 = vrcp.pop %v2727
        %v2792 = vrcp.pop %v2728
        %v2793 = vrcp.pop %v2729
        %v2794 = vrcp.pop %v2730
        %v2795 = vrcp.pop %v2731
        %v2796 = vrcp.pop %v2732
        %v2797 = vrcp.pop %v2733
        %v2798 = vrcp.pop %v2734
        %v2799 = vrcp.pop %v2735
        %v2800 = vrcp.pop %v2736
        %v2801 = vrcp.pop %v2737
        %v2802 = vrcp.pop %v2738
        %v2803 = vrcp.pop %v2739
        %v2804 = vrcp.pop %v2740
        %v2805 = vrcp.pop %v2741
        %v2806 = vrcp.pop %v2742
        %v2807 = vrcp.pop %v2743
        %v2808 = vrcp.pop %v2744
        %v2809 = vrcp.pop %v2745
        %v2810 = vrcp.pop %v2746
        %v2811 = vrcp.pop %v2747
        %v2812 = vrcp.pop %v2748
        %v2813 = vrcp.pop %v2749
        %v2814 = vrcp.pop %v2750
        %v2815 = vrcp.pop %v2751
        %v2816 = vrcp.pop %v2752
        %v2817 = vrcp.pop %v2753
        %v2818 = vrcp.pop %v2754
        %v2819 = vrcp.pop %v2755
        %v2820 = vrcp.pop %v2756
        %v2821 = vrcp.pop %v2757
        %v2822 = vrcp.pop %v2758
        %v2823 = vrcp.pop %v2759
        %v2824 = vrcp.pop %v2760
        %v2825 = vrcp.pop %v2761
        %v2826 = vrcp.pop %v2762
        %v2827 = vrcp.pop %v2763
        %v2828 = vrcp.pop %v2764
        %v2829 = vrcp.pop %v2765
        %v2830 = vrcp.pop %v2766
        %v2831 = vrcp.pop %v2767
        %v2832 = vrcp.pop %v2768
        %v2833 = vrcp.pop %v2769
        %v2834 = vrcp.pop %v2770
        %v2835 = vrcp.pop %v2771
        %v2836 = vrcp.pop %v2772
        %v2837 = vrcp.pop %v2773
        %v2838 = vrcp.pop %v2774
        %v2839 = vrcp.pop %v2775
        %v2840 = vrcp.pop %v2776
        %v2841 = vrcp.pop %v2777
        %v2842 = vrcp.pop %v2778
        %2844 = vset.pattern.permute.xlu0 1
        %2845 = vperm.xlu0 %2844, %v2779
        %v2846 = vpop.permute.xlu0 %2845
        %2849 = vset.pattern.permute.xlu0 1
        %2850 = vperm.xlu0 %2849, %v2780
        %v2851 = vpop.permute.xlu0 %2850
        %2854 = vset.pattern.permute.xlu0 1
        %2855 = vperm.xlu0 %2854, %v2781
        %v2856 = vpop.permute.xlu0 %2855
        %2859 = vset.pattern.permute.xlu0 1
        %2860 = vperm.xlu0 %2859, %v2782
        %v2861 = vpop.permute.xlu0 %2860
        %2864 = vset.pattern.permute.xlu0 1
        %2865 = vperm.xlu0 %2864, %v2783
        %v2866 = vpop.permute.xlu0 %2865
        %2869 = vset.pattern.permute.xlu0 1
        %2870 = vperm.xlu0 %2869, %v2784
        %v2871 = vpop.permute.xlu0 %2870
        %2874 = vset.pattern.permute.xlu0 1
        %2875 = vperm.xlu0 %2874, %v2785
        %v2876 = vpop.permute.xlu0 %2875
        %2879 = vset.pattern.permute.xlu0 1
        %2880 = vperm.xlu0 %2879, %v2786
        %v2881 = vpop.permute.xlu0 %2880
        %2884 = vset.pattern.permute.xlu0 1
        %2885 = vperm.xlu0 %2884, %v2787
        %v2886 = vpop.permute.xlu0 %2885
        %2889 = vset.pattern.permute.xlu0 1
        %2890 = vperm.xlu0 %2889, %v2788
        %v2891 = vpop.permute.xlu0 %2890
        %2894 = vset.pattern.permute.xlu0 1
        %2895 = vperm.xlu0 %2894, %v2789
        %v2896 = vpop.permute.xlu0 %2895
        %2899 = vset.pattern.permute.xlu0 1
        %2900 = vperm.xlu0 %2899, %v2790
        %v2901 = vpop.permute.xlu0 %2900
        %2904 = vset.pattern.permute.xlu0 1
        %2905 = vperm.xlu0 %2904, %v2791
        %v2906 = vpop.permute.xlu0 %2905
        %2909 = vset.pattern.permute.xlu0 1
        %2910 = vperm.xlu0 %2909, %v2792
        %v2911 = vpop.permute.xlu0 %2910
        %2914 = vset.pattern.permute.xlu0 1
        %2915 = vperm.xlu0 %2914, %v2793
        %v2916 = vpop.permute.xlu0 %2915
        %2919 = vset.pattern.permute.xlu0 1
        %2920 = vperm.xlu0 %2919, %v2794
        %v2921 = vpop.permute.xlu0 %2920
        %2924 = vset.pattern.permute.xlu0 1
        %2925 = vperm.xlu0 %2924, %v2795
        %v2926 = vpop.permute.xlu0 %2925
        %2929 = vset.pattern.permute.xlu0 1
        %2930 = vperm.xlu0 %2929, %v2796
        %v2931 = vpop.permute.xlu0 %2930
        %2934 = vset.pattern.permute.xlu0 1
        %2935 = vperm.xlu0 %2934, %v2797
        %v2936 = vpop.permute.xlu0 %2935
        %2939 = vset.pattern.permute.xlu0 1
        %2940 = vperm.xlu0 %2939, %v2798
        %v2941 = vpop.permute.xlu0 %2940
        %2944 = vset.pattern.permute.xlu0 1
        %2945 = vperm.xlu0 %2944, %v2799
        %v2946 = vpop.permute.xlu0 %2945
        %2949 = vset.pattern.permute.xlu0 1
        %2950 = vperm.xlu0 %2949, %v2800
        %v2951 = vpop.permute.xlu0 %2950
        %2954 = vset.pattern.permute.xlu0 1
        %2955 = vperm.xlu0 %2954, %v2801
        %v2956 = vpop.permute.xlu0 %2955
        %2959 = vset.pattern.permute.xlu0 1
        %2960 = vperm.xlu0 %2959, %v2802
        %v2961 = vpop.permute.xlu0 %2960
        %2964 = vset.pattern.permute.xlu0 1
        %2965 = vperm.xlu0 %2964, %v2803
        %v2966 = vpop.permute.xlu0 %2965
        %2969 = vset.pattern.permute.xlu0 1
        %2970 = vperm.xlu0 %2969, %v2804
        %v2971 = vpop.permute.xlu0 %2970
        %2974 = vset.pattern.permute.xlu0 1
        %2975 = vperm.xlu0 %2974, %v2805
        %v2976 = vpop.permute.xlu0 %2975
        %2979 = vset.pattern.permute.xlu0 1
        %2980 = vperm.xlu0 %2979, %v2806
        %v2981 = vpop.permute.xlu0 %2980
        %2984 = vset.pattern.permute.xlu0 1
        %2985 = vperm.xlu0 %2984, %v2807
        %v2986 = vpop.permute.xlu0 %2985
        %2989 = vset.pattern.permute.xlu0 1
        %2990 = vperm.xlu0 %2989, %v2808
        %v2991 = vpop.permute.xlu0 %2990
        %2994 = vset.pattern.permute.xlu0 1
        %2995 = vperm.xlu0 %2994, %v2809
        %v2996 = vpop.permute.xlu0 %2995
        %2999 = vset.pattern.permute.xlu0 1
        %3000 = vperm.xlu0 %2999, %v2810
        %v3001 = vpop.permute.xlu0 %3000
        %3004 = vset.pattern.permute.xlu0 1
        %3005 = vperm.xlu0 %3004, %v2811
        %v3006 = vpop.permute.xlu0 %3005
        %3009 = vset.pattern.permute.xlu0 1
        %3010 = vperm.xlu0 %3009, %v2812
        %v3011 = vpop.permute.xlu0 %3010
        %3014 = vset.pattern.permute.xlu0 1
        %3015 = vperm.xlu0 %3014, %v2813
        %v3016 = vpop.permute.xlu0 %3015
        %3019 = vset.pattern.permute.xlu0 1
        %3020 = vperm.xlu0 %3019, %v2814
        %v3021 = vpop.permute.xlu0 %3020
        %3024 = vset.pattern.permute.xlu0 1
        %3025 = vperm.xlu0 %3024, %v2815
        %v3026 = vpop.permute.xlu0 %3025
        %3029 = vset.pattern.permute.xlu0 1
        %3030 = vperm.xlu0 %3029, %v2816
        %v3031 = vpop.permute.xlu0 %3030
        %3034 = vset.pattern.permute.xlu0 1
        %3035 = vperm.xlu0 %3034, %v2817
        %v3036 = vpop.permute.xlu0 %3035
        %3039 = vset.pattern.permute.xlu0 1
        %3040 = vperm.xlu0 %3039, %v2818
        %v3041 = vpop.permute.xlu0 %3040
        %3044 = vset.pattern.permute.xlu0 1
        %3045 = vperm.xlu0 %3044, %v2819
        %v3046 = vpop.permute.xlu0 %3045
        %3049 = vset.pattern.permute.xlu0 1
        %3050 = vperm.xlu0 %3049, %v2820
        %v3051 = vpop.permute.xlu0 %3050
        %3054 = vset.pattern.permute.xlu0 1
        %3055 = vperm.xlu0 %3054, %v2821
        %v3056 = vpop.permute.xlu0 %3055
        %3059 = vset.pattern.permute.xlu0 1
        %3060 = vperm.xlu0 %3059, %v2822
        %v3061 = vpop.permute.xlu0 %3060
        %3064 = vset.pattern.permute.xlu0 1
        %3065 = vperm.xlu0 %3064, %v2823
        %v3066 = vpop.permute.xlu0 %3065
        %3069 = vset.pattern.permute.xlu0 1
        %3070 = vperm.xlu0 %3069, %v2824
        %v3071 = vpop.permute.xlu0 %3070
        %3074 = vset.pattern.permute.xlu0 1
        %3075 = vperm.xlu0 %3074, %v2825
        %v3076 = vpop.permute.xlu0 %3075
        %3079 = vset.pattern.permute.xlu0 1
        %3080 = vperm.xlu0 %3079, %v2826
        %v3081 = vpop.permute.xlu0 %3080
        %3084 = vset.pattern.permute.xlu0 1
        %3085 = vperm.xlu0 %3084, %v2827
        %v3086 = vpop.permute.xlu0 %3085
        %3089 = vset.pattern.permute.xlu0 1
        %3090 = vperm.xlu0 %3089, %v2828
        %v3091 = vpop.permute.xlu0 %3090
        %3094 = vset.pattern.permute.xlu0 1
        %3095 = vperm.xlu0 %3094, %v2829
        %v3096 = vpop.permute.xlu0 %3095
        %3099 = vset.pattern.permute.xlu0 1
        %3100 = vperm.xlu0 %3099, %v2830
        %v3101 = vpop.permute.xlu0 %3100
        %3104 = vset.pattern.permute.xlu0 1
        %3105 = vperm.xlu0 %3104, %v2831
        %v3106 = vpop.permute.xlu0 %3105
        %3109 = vset.pattern.permute.xlu0 1
        %3110 = vperm.xlu0 %3109, %v2832
        %v3111 = vpop.permute.xlu0 %3110
        %3114 = vset.pattern.permute.xlu0 1
        %3115 = vperm.xlu0 %3114, %v2833
        %v3116 = vpop.permute.xlu0 %3115
        %3119 = vset.pattern.permute.xlu0 1
        %3120 = vperm.xlu0 %3119, %v2834
        %v3121 = vpop.permute.xlu0 %3120
        %3124 = vset.pattern.permute.xlu0 1
        %3125 = vperm.xlu0 %3124, %v2835
        %v3126 = vpop.permute.xlu0 %3125
        %3129 = vset.pattern.permute.xlu0 1
        %3130 = vperm.xlu0 %3129, %v2836
        %v3131 = vpop.permute.xlu0 %3130
        %3134 = vset.pattern.permute.xlu0 1
        %3135 = vperm.xlu0 %3134, %v2837
        %v3136 = vpop.permute.xlu0 %3135
        %3139 = vset.pattern.permute.xlu0 1
        %3140 = vperm.xlu0 %3139, %v2838
        %v3141 = vpop.permute.xlu0 %3140
        %3144 = vset.pattern.permute.xlu0 1
        %3145 = vperm.xlu0 %3144, %v2839
        %v3146 = vpop.permute.xlu0 %3145
        %3149 = vset.pattern.permute.xlu0 1
        %3150 = vperm.xlu0 %3149, %v2840
        %v3151 = vpop.permute.xlu0 %3150
        %3154 = vset.pattern.permute.xlu0 1
        %3155 = vperm.xlu0 %3154, %v2841
        %v3156 = vpop.permute.xlu0 %3155
        %3159 = vset.pattern.permute.xlu0 1
        %3160 = vperm.xlu0 %3159, %v2842
        %v3161 = vpop.permute.xlu0 %3160
        %v3163 = vmul.f32 %v1371, %v2846
        %v3164 = vmul.f32 %v1372, %v2851
        %v3165 = vmul.f32 %v1373, %v2856
        %v3166 = vmul.f32 %v1374, %v2861
        %v3167 = vmul.f32 %v1375, %v2866
        %v3168 = vmul.f32 %v1376, %v2871
        %v3169 = vmul.f32 %v1377, %v2876
        %v3170 = vmul.f32 %v1378, %v2881
        %v3171 = vmul.f32 %v1379, %v2886
        %v3172 = vmul.f32 %v1380, %v2891
        %v3173 = vmul.f32 %v1381, %v2896
        %v3174 = vmul.f32 %v1382, %v2901
        %v3175 = vmul.f32 %v1383, %v2906
        %v3176 = vmul.f32 %v1384, %v2911
        %v3177 = vmul.f32 %v1385, %v2916
        %v3178 = vmul.f32 %v1386, %v2921
        %v3179 = vmul.f32 %v1387, %v2926
        %v3180 = vmul.f32 %v1388, %v2931
        %v3181 = vmul.f32 %v1389, %v2936
        %v3182 = vmul.f32 %v1390, %v2941
        %v3183 = vmul.f32 %v1391, %v2946
        %v3184 = vmul.f32 %v1392, %v2951
        %v3185 = vmul.f32 %v1393, %v2956
        %v3186 = vmul.f32 %v1394, %v2961
        %v3187 = vmul.f32 %v1395, %v2966
        %v3188 = vmul.f32 %v1396, %v2971
        %v3189 = vmul.f32 %v1397, %v2976
        %v3190 = vmul.f32 %v1398, %v2981
        %v3191 = vmul.f32 %v1399, %v2986
        %v3192 = vmul.f32 %v1400, %v2991
        %v3193 = vmul.f32 %v1401, %v2996
        %v3194 = vmul.f32 %v1402, %v3001
        %v3195 = vmul.f32 %v1403, %v3006
        %v3196 = vmul.f32 %v1404, %v3011
        %v3197 = vmul.f32 %v1405, %v3016
        %v3198 = vmul.f32 %v1406, %v3021
        %v3199 = vmul.f32 %v1407, %v3026
        %v3200 = vmul.f32 %v1408, %v3031
        %v3201 = vmul.f32 %v1409, %v3036
        %v3202 = vmul.f32 %v1410, %v3041
        %v3203 = vmul.f32 %v1411, %v3046
        %v3204 = vmul.f32 %v1412, %v3051
        %v3205 = vmul.f32 %v1413, %v3056
        %v3206 = vmul.f32 %v1414, %v3061
        %v3207 = vmul.f32 %v1415, %v3066
        %v3208 = vmul.f32 %v1416, %v3071
        %v3209 = vmul.f32 %v1417, %v3076
        %v3210 = vmul.f32 %v1418, %v3081
        %v3211 = vmul.f32 %v1419, %v3086
        %v3212 = vmul.f32 %v1420, %v3091
        %v3213 = vmul.f32 %v1421, %v3096
        %v3214 = vmul.f32 %v1422, %v3101
        %v3215 = vmul.f32 %v1423, %v3106
        %v3216 = vmul.f32 %v1424, %v3111
        %v3217 = vmul.f32 %v1425, %v3116
        %v3218 = vmul.f32 %v1426, %v3121
        %v3219 = vmul.f32 %v1427, %v3126
        %v3220 = vmul.f32 %v1428, %v3131
        %v3221 = vmul.f32 %v1429, %v3136
        %v3222 = vmul.f32 %v1430, %v3141
        %v3223 = vmul.f32 %v1431, %v3146
        %v3224 = vmul.f32 %v1432, %v3151
        %v3225 = vmul.f32 %v1433, %v3156
        %v3226 = vmul.f32 %v1434, %v3161
        %v3227 = vpack.c.bf16 %v3164, %v3163
        %v3228 = vpack.c.bf16 %v3166, %v3165
        %v3229 = vpack.c.bf16 %v3168, %v3167
        %v3230 = vpack.c.bf16 %v3170, %v3169
        %v3231 = vpack.c.bf16 %v3172, %v3171
        %v3232 = vpack.c.bf16 %v3174, %v3173
        %v3233 = vpack.c.bf16 %v3176, %v3175
        %v3234 = vpack.c.bf16 %v3178, %v3177
        %v3235 = vpack.c.bf16 %v3180, %v3179
        %v3236 = vpack.c.bf16 %v3182, %v3181
        %v3237 = vpack.c.bf16 %v3184, %v3183
        %v3238 = vpack.c.bf16 %v3186, %v3185
        %v3239 = vpack.c.bf16 %v3188, %v3187
        %v3240 = vpack.c.bf16 %v3190, %v3189
        %v3241 = vpack.c.bf16 %v3192, %v3191
        %v3242 = vpack.c.bf16 %v3194, %v3193
        %v3243 = vpack.c.bf16 %v3196, %v3195
        %v3244 = vpack.c.bf16 %v3198, %v3197
        %v3245 = vpack.c.bf16 %v3200, %v3199
        %v3246 = vpack.c.bf16 %v3202, %v3201
        %v3247 = vpack.c.bf16 %v3204, %v3203
        %v3248 = vpack.c.bf16 %v3206, %v3205
        %v3249 = vpack.c.bf16 %v3208, %v3207
        %v3250 = vpack.c.bf16 %v3210, %v3209
        %v3251 = vpack.c.bf16 %v3212, %v3211
        %v3252 = vpack.c.bf16 %v3214, %v3213
        %v3253 = vpack.c.bf16 %v3216, %v3215
        %v3254 = vpack.c.bf16 %v3218, %v3217
        %v3255 = vpack.c.bf16 %v3220, %v3219
        %v3256 = vpack.c.bf16 %v3222, %v3221
        %v3257 = vpack.c.bf16 %v3224, %v3223
        %v3258 = vpack.c.bf16 %v3226, %v3225
        %3259 = vrot.lane.b32.xlu0 %v278, 1
        %v3260 = vpop.permute.xlu0 %3259
        %3261 = vrot.lane.b32.xlu0 %v279, 1
        %v3262 = vpop.permute.xlu0 %3261
        %3263 = vrot.lane.b32.xlu0 %v280, 1
        %v3264 = vpop.permute.xlu0 %3263
        %3265 = vrot.lane.b32.xlu0 %v281, 1
        %v3266 = vpop.permute.xlu0 %3265
        %3267 = vrot.lane.b32.xlu0 %v282, 1
        %v3268 = vpop.permute.xlu0 %3267
        %3269 = vrot.lane.b32.xlu0 %v283, 1
        %v3270 = vpop.permute.xlu0 %3269
        %3271 = vrot.lane.b32.xlu0 %v284, 1
        %v3272 = vpop.permute.xlu0 %3271
        %3273 = vrot.lane.b32.xlu0 %v285, 1
        %v3274 = vpop.permute.xlu0 %3273
        %3275 = vrot.lane.b32.xlu0 %v286, 1
        %v3276 = vpop.permute.xlu0 %3275
        %3277 = vrot.lane.b32.xlu0 %v287, 1
        %v3278 = vpop.permute.xlu0 %3277
        %3279 = vrot.lane.b32.xlu0 %v288, 1
        %v3280 = vpop.permute.xlu0 %3279
        %3281 = vrot.lane.b32.xlu0 %v289, 1
        %v3282 = vpop.permute.xlu0 %3281
        %3283 = vrot.lane.b32.xlu0 %v290, 1
        %v3284 = vpop.permute.xlu0 %3283
        %3285 = vrot.lane.b32.xlu0 %v291, 1
        %v3286 = vpop.permute.xlu0 %3285
        %3287 = vrot.lane.b32.xlu0 %v292, 1
        %v3288 = vpop.permute.xlu0 %3287
        %3289 = vrot.lane.b32.xlu0 %v293, 1
        %v3290 = vpop.permute.xlu0 %3289
        %3291 = vrot.lane.b32.xlu0 %v294, 1
        %v3292 = vpop.permute.xlu0 %3291
        %3293 = vrot.lane.b32.xlu0 %v295, 1
        %v3294 = vpop.permute.xlu0 %3293
        %3295 = vrot.lane.b32.xlu0 %v296, 1
        %v3296 = vpop.permute.xlu0 %3295
        %3297 = vrot.lane.b32.xlu0 %v297, 1
        %v3298 = vpop.permute.xlu0 %3297
        %3299 = vrot.lane.b32.xlu0 %v298, 1
        %v3300 = vpop.permute.xlu0 %3299
        %3301 = vrot.lane.b32.xlu0 %v299, 1
        %v3302 = vpop.permute.xlu0 %3301
        %3303 = vrot.lane.b32.xlu0 %v300, 1
        %v3304 = vpop.permute.xlu0 %3303
        %3305 = vrot.lane.b32.xlu0 %v301, 1
        %v3306 = vpop.permute.xlu0 %3305
        %3307 = vrot.lane.b32.xlu0 %v302, 1
        %v3308 = vpop.permute.xlu0 %3307
        %3309 = vrot.lane.b32.xlu0 %v303, 1
        %v3310 = vpop.permute.xlu0 %3309
        %3311 = vrot.lane.b32.xlu0 %v304, 1
        %v3312 = vpop.permute.xlu0 %3311
        %3313 = vrot.lane.b32.xlu0 %v305, 1
        %v3314 = vpop.permute.xlu0 %3313
        %3315 = vrot.lane.b32.xlu0 %v306, 1
        %v3316 = vpop.permute.xlu0 %3315
        %3317 = vrot.lane.b32.xlu0 %v307, 1
        %v3318 = vpop.permute.xlu0 %3317
        %3319 = vrot.lane.b32.xlu0 %v308, 1
        %v3320 = vpop.permute.xlu0 %3319
        %3321 = vrot.lane.b32.xlu0 %v309, 1
        %v3322 = vpop.permute.xlu0 %3321
        %3323 = vrot.lane.b32.xlu0 %v310, 1
        %v3324 = vpop.permute.xlu0 %3323
        %3325 = vrot.lane.b32.xlu0 %v311, 1
        %v3326 = vpop.permute.xlu0 %3325
        %3327 = vrot.lane.b32.xlu0 %v312, 1
        %v3328 = vpop.permute.xlu0 %3327
        %3329 = vrot.lane.b32.xlu0 %v313, 1
        %v3330 = vpop.permute.xlu0 %3329
        %3331 = vrot.lane.b32.xlu0 %v314, 1
        %v3332 = vpop.permute.xlu0 %3331
        %3333 = vrot.lane.b32.xlu0 %v315, 1
        %v3334 = vpop.permute.xlu0 %3333
        %3335 = vrot.lane.b32.xlu0 %v316, 1
        %v3336 = vpop.permute.xlu0 %3335
        %3337 = vrot.lane.b32.xlu0 %v317, 1
        %v3338 = vpop.permute.xlu0 %3337
        %3339 = vrot.lane.b32.xlu0 %v318, 1
        %v3340 = vpop.permute.xlu0 %3339
        %3341 = vrot.lane.b32.xlu0 %v319, 1
        %v3342 = vpop.permute.xlu0 %3341
        %3343 = vrot.lane.b32.xlu0 %v320, 1
        %v3344 = vpop.permute.xlu0 %3343
        %3345 = vrot.lane.b32.xlu0 %v321, 1
        %v3346 = vpop.permute.xlu0 %3345
        %3347 = vrot.lane.b32.xlu0 %v322, 1
        %v3348 = vpop.permute.xlu0 %3347
        %3349 = vrot.lane.b32.xlu0 %v323, 1
        %v3350 = vpop.permute.xlu0 %3349
        %3351 = vrot.lane.b32.xlu0 %v324, 1
        %v3352 = vpop.permute.xlu0 %3351
        %3353 = vrot.lane.b32.xlu0 %v325, 1
        %v3354 = vpop.permute.xlu0 %3353
        %3355 = vrot.lane.b32.xlu0 %v326, 1
        %v3356 = vpop.permute.xlu0 %3355
        %3357 = vrot.lane.b32.xlu0 %v327, 1
        %v3358 = vpop.permute.xlu0 %3357
        %3359 = vrot.lane.b32.xlu0 %v328, 1
        %v3360 = vpop.permute.xlu0 %3359
        %3361 = vrot.lane.b32.xlu0 %v329, 1
        %v3362 = vpop.permute.xlu0 %3361
        %3363 = vrot.lane.b32.xlu0 %v330, 1
        %v3364 = vpop.permute.xlu0 %3363
        %3365 = vrot.lane.b32.xlu0 %v331, 1
        %v3366 = vpop.permute.xlu0 %3365
        %3367 = vrot.lane.b32.xlu0 %v332, 1
        %v3368 = vpop.permute.xlu0 %3367
        %3369 = vrot.lane.b32.xlu0 %v333, 1
        %v3370 = vpop.permute.xlu0 %3369
        %3371 = vrot.lane.b32.xlu0 %v334, 1
        %v3372 = vpop.permute.xlu0 %3371
        %3373 = vrot.lane.b32.xlu0 %v335, 1
        %v3374 = vpop.permute.xlu0 %3373
        %3375 = vrot.lane.b32.xlu0 %v336, 1
        %v3376 = vpop.permute.xlu0 %3375
        %3377 = vrot.lane.b32.xlu0 %v337, 1
        %v3378 = vpop.permute.xlu0 %3377
        %3379 = vrot.lane.b32.xlu0 %v338, 1
        %v3380 = vpop.permute.xlu0 %3379
        %3381 = vrot.lane.b32.xlu0 %v339, 1
        %v3382 = vpop.permute.xlu0 %3381
        %3383 = vrot.lane.b32.xlu0 %v340, 1
        %v3384 = vpop.permute.xlu0 %3383
        %3385 = vrot.lane.b32.xlu0 %v341, 1
        %v3386 = vpop.permute.xlu0 %3385
        %v3387 = vsub.s32 %v278, %v3260
        %v3388 = vsub.s32 %v279, %v3262
        %v3389 = vsub.s32 %v280, %v3264
        %v3390 = vsub.s32 %v281, %v3266
        %v3391 = vsub.s32 %v282, %v3268
        %v3392 = vsub.s32 %v283, %v3270
        %v3393 = vsub.s32 %v284, %v3272
        %v3394 = vsub.s32 %v285, %v3274
        %v3395 = vsub.s32 %v286, %v3276
        %v3396 = vsub.s32 %v287, %v3278
        %v3397 = vsub.s32 %v288, %v3280
        %v3398 = vsub.s32 %v289, %v3282
        %v3399 = vsub.s32 %v290, %v3284
        %v3400 = vsub.s32 %v291, %v3286
        %v3401 = vsub.s32 %v292, %v3288
        %v3402 = vsub.s32 %v293, %v3290
        %v3403 = vsub.s32 %v294, %v3292
        %v3404 = vsub.s32 %v295, %v3294
        %v3405 = vsub.s32 %v296, %v3296
        %v3406 = vsub.s32 %v297, %v3298
        %v3407 = vsub.s32 %v298, %v3300
        %v3408 = vsub.s32 %v299, %v3302
        %v3409 = vsub.s32 %v300, %v3304
        %v3410 = vsub.s32 %v301, %v3306
        %v3411 = vsub.s32 %v302, %v3308
        %v3412 = vsub.s32 %v303, %v3310
        %v3413 = vsub.s32 %v304, %v3312
        %v3414 = vsub.s32 %v305, %v3314
        %v3415 = vsub.s32 %v306, %v3316
        %v3416 = vsub.s32 %v307, %v3318
        %v3417 = vsub.s32 %v308, %v3320
        %v3418 = vsub.s32 %v309, %v3322
        %v3419 = vsub.s32 %v310, %v3324
        %v3420 = vsub.s32 %v311, %v3326
        %v3421 = vsub.s32 %v312, %v3328
        %v3422 = vsub.s32 %v313, %v3330
        %v3423 = vsub.s32 %v314, %v3332
        %v3424 = vsub.s32 %v315, %v3334
        %v3425 = vsub.s32 %v316, %v3336
        %v3426 = vsub.s32 %v317, %v3338
        %v3427 = vsub.s32 %v318, %v3340
        %v3428 = vsub.s32 %v319, %v3342
        %v3429 = vsub.s32 %v320, %v3344
        %v3430 = vsub.s32 %v321, %v3346
        %v3431 = vsub.s32 %v322, %v3348
        %v3432 = vsub.s32 %v323, %v3350
        %v3433 = vsub.s32 %v324, %v3352
        %v3434 = vsub.s32 %v325, %v3354
        %v3435 = vsub.s32 %v326, %v3356
        %v3436 = vsub.s32 %v327, %v3358
        %v3437 = vsub.s32 %v328, %v3360
        %v3438 = vsub.s32 %v329, %v3362
        %v3439 = vsub.s32 %v330, %v3364
        %v3440 = vsub.s32 %v331, %v3366
        %v3441 = vsub.s32 %v332, %v3368
        %v3442 = vsub.s32 %v333, %v3370
        %v3443 = vsub.s32 %v334, %v3372
        %v3444 = vsub.s32 %v335, %v3374
        %v3445 = vsub.s32 %v336, %v3376
        %v3446 = vsub.s32 %v337, %v3378
        %v3447 = vsub.s32 %v338, %v3380
        %v3448 = vsub.s32 %v339, %v3382
        %v3449 = vsub.s32 %v340, %v3384
        %v3450 = vsub.s32 %v341, %v3386
        %vm3451 = vcmp.gt.s32.totalorder %v3387, 0
        %v3452 = vsel %vm3451, %v3387, 0
        %vm3453 = vcmp.gt.s32.totalorder %v3388, 0
        %v3454 = vsel %vm3453, %v3388, 0
        %vm3455 = vcmp.gt.s32.totalorder %v3389, 0
        %v3456 = vsel %vm3455, %v3389, 0
        %vm3457 = vcmp.gt.s32.totalorder %v3390, 0
        %v3458 = vsel %vm3457, %v3390, 0
        %vm3459 = vcmp.gt.s32.totalorder %v3391, 0
        %v3460 = vsel %vm3459, %v3391, 0
        %vm3461 = vcmp.gt.s32.totalorder %v3392, 0
        %v3462 = vsel %vm3461, %v3392, 0
        %vm3463 = vcmp.gt.s32.totalorder %v3393, 0
        %v3464 = vsel %vm3463, %v3393, 0
        %vm3465 = vcmp.gt.s32.totalorder %v3394, 0
        %v3466 = vsel %vm3465, %v3394, 0
        %vm3467 = vcmp.gt.s32.totalorder %v3395, 0
        %v3468 = vsel %vm3467, %v3395, 0
        %vm3469 = vcmp.gt.s32.totalorder %v3396, 0
        %v3470 = vsel %vm3469, %v3396, 0
        %vm3471 = vcmp.gt.s32.totalorder %v3397, 0
        %v3472 = vsel %vm3471, %v3397, 0
        %vm3473 = vcmp.gt.s32.totalorder %v3398, 0
        %v3474 = vsel %vm3473, %v3398, 0
        %vm3475 = vcmp.gt.s32.totalorder %v3399, 0
        %v3476 = vsel %vm3475, %v3399, 0
        %vm3477 = vcmp.gt.s32.totalorder %v3400, 0
        %v3478 = vsel %vm3477, %v3400, 0
        %vm3479 = vcmp.gt.s32.totalorder %v3401, 0
        %v3480 = vsel %vm3479, %v3401, 0
        %vm3481 = vcmp.gt.s32.totalorder %v3402, 0
        %v3482 = vsel %vm3481, %v3402, 0
        %vm3483 = vcmp.gt.s32.totalorder %v3403, 0
        %v3484 = vsel %vm3483, %v3403, 0
        %vm3485 = vcmp.gt.s32.totalorder %v3404, 0
        %v3486 = vsel %vm3485, %v3404, 0
        %vm3487 = vcmp.gt.s32.totalorder %v3405, 0
        %v3488 = vsel %vm3487, %v3405, 0
        %vm3489 = vcmp.gt.s32.totalorder %v3406, 0
        %v3490 = vsel %vm3489, %v3406, 0
        %vm3491 = vcmp.gt.s32.totalorder %v3407, 0
        %v3492 = vsel %vm3491, %v3407, 0
        %vm3493 = vcmp.gt.s32.totalorder %v3408, 0
        %v3494 = vsel %vm3493, %v3408, 0
        %vm3495 = vcmp.gt.s32.totalorder %v3409, 0
        %v3496 = vsel %vm3495, %v3409, 0
        %vm3497 = vcmp.gt.s32.totalorder %v3410, 0
        %v3498 = vsel %vm3497, %v3410, 0
        %vm3499 = vcmp.gt.s32.totalorder %v3411, 0
        %v3500 = vsel %vm3499, %v3411, 0
        %vm3501 = vcmp.gt.s32.totalorder %v3412, 0
        %v3502 = vsel %vm3501, %v3412, 0
        %vm3503 = vcmp.gt.s32.totalorder %v3413, 0
        %v3504 = vsel %vm3503, %v3413, 0
        %vm3505 = vcmp.gt.s32.totalorder %v3414, 0
        %v3506 = vsel %vm3505, %v3414, 0
        %vm3507 = vcmp.gt.s32.totalorder %v3415, 0
        %v3508 = vsel %vm3507, %v3415, 0
        %vm3509 = vcmp.gt.s32.totalorder %v3416, 0
        %v3510 = vsel %vm3509, %v3416, 0
        %vm3511 = vcmp.gt.s32.totalorder %v3417, 0
        %v3512 = vsel %vm3511, %v3417, 0
        %vm3513 = vcmp.gt.s32.totalorder %v3418, 0
        %v3514 = vsel %vm3513, %v3418, 0
        %vm3515 = vcmp.gt.s32.totalorder %v3419, 0
        %v3516 = vsel %vm3515, %v3419, 0
        %vm3517 = vcmp.gt.s32.totalorder %v3420, 0
        %v3518 = vsel %vm3517, %v3420, 0
        %vm3519 = vcmp.gt.s32.totalorder %v3421, 0
        %v3520 = vsel %vm3519, %v3421, 0
        %vm3521 = vcmp.gt.s32.totalorder %v3422, 0
        %v3522 = vsel %vm3521, %v3422, 0
        %vm3523 = vcmp.gt.s32.totalorder %v3423, 0
        %v3524 = vsel %vm3523, %v3423, 0
        %vm3525 = vcmp.gt.s32.totalorder %v3424, 0
        %v3526 = vsel %vm3525, %v3424, 0
        %vm3527 = vcmp.gt.s32.totalorder %v3425, 0
        %v3528 = vsel %vm3527, %v3425, 0
        %vm3529 = vcmp.gt.s32.totalorder %v3426, 0
        %v3530 = vsel %vm3529, %v3426, 0
        %vm3531 = vcmp.gt.s32.totalorder %v3427, 0
        %v3532 = vsel %vm3531, %v3427, 0
        %vm3533 = vcmp.gt.s32.totalorder %v3428, 0
        %v3534 = vsel %vm3533, %v3428, 0
        %vm3535 = vcmp.gt.s32.totalorder %v3429, 0
        %v3536 = vsel %vm3535, %v3429, 0
        %vm3537 = vcmp.gt.s32.totalorder %v3430, 0
        %v3538 = vsel %vm3537, %v3430, 0
        %vm3539 = vcmp.gt.s32.totalorder %v3431, 0
        %v3540 = vsel %vm3539, %v3431, 0
        %vm3541 = vcmp.gt.s32.totalorder %v3432, 0
        %v3542 = vsel %vm3541, %v3432, 0
        %vm3543 = vcmp.gt.s32.totalorder %v3433, 0
        %v3544 = vsel %vm3543, %v3433, 0
        %vm3545 = vcmp.gt.s32.totalorder %v3434, 0
        %v3546 = vsel %vm3545, %v3434, 0
        %vm3547 = vcmp.gt.s32.totalorder %v3435, 0
        %v3548 = vsel %vm3547, %v3435, 0
        %vm3549 = vcmp.gt.s32.totalorder %v3436, 0
        %v3550 = vsel %vm3549, %v3436, 0
        %vm3551 = vcmp.gt.s32.totalorder %v3437, 0
        %v3552 = vsel %vm3551, %v3437, 0
        %vm3553 = vcmp.gt.s32.totalorder %v3438, 0
        %v3554 = vsel %vm3553, %v3438, 0
        %vm3555 = vcmp.gt.s32.totalorder %v3439, 0
        %v3556 = vsel %vm3555, %v3439, 0
        %vm3557 = vcmp.gt.s32.totalorder %v3440, 0
        %v3558 = vsel %vm3557, %v3440, 0
        %vm3559 = vcmp.gt.s32.totalorder %v3441, 0
        %v3560 = vsel %vm3559, %v3441, 0
        %vm3561 = vcmp.gt.s32.totalorder %v3442, 0
        %v3562 = vsel %vm3561, %v3442, 0
        %vm3563 = vcmp.gt.s32.totalorder %v3443, 0
        %v3564 = vsel %vm3563, %v3443, 0
        %vm3565 = vcmp.gt.s32.totalorder %v3444, 0
        %v3566 = vsel %vm3565, %v3444, 0
        %vm3567 = vcmp.gt.s32.totalorder %v3445, 0
        %v3568 = vsel %vm3567, %v3445, 0
        %vm3569 = vcmp.gt.s32.totalorder %v3446, 0
        %v3570 = vsel %vm3569, %v3446, 0
        %vm3571 = vcmp.gt.s32.totalorder %v3447, 0
        %v3572 = vsel %vm3571, %v3447, 0
        %vm3573 = vcmp.gt.s32.totalorder %v3448, 0
        %v3574 = vsel %vm3573, %v3448, 0
        %vm3575 = vcmp.gt.s32.totalorder %v3449, 0
        %v3576 = vsel %vm3575, %v3449, 0
        %vm3577 = vcmp.gt.s32.totalorder %v3450, 0
        %v3578 = vsel %vm3577, %v3450, 0
        %vm3579 = vcmp.lt.s32.totalorder %v3452, 3
        %v3580 = vsel %vm3579, %v3452, 3
        %vm3581 = vcmp.lt.s32.totalorder %v3454, 3
        %v3582 = vsel %vm3581, %v3454, 3
        %vm3583 = vcmp.lt.s32.totalorder %v3456, 3
        %v3584 = vsel %vm3583, %v3456, 3
        %vm3585 = vcmp.lt.s32.totalorder %v3458, 3
        %v3586 = vsel %vm3585, %v3458, 3
        %vm3587 = vcmp.lt.s32.totalorder %v3460, 3
        %v3588 = vsel %vm3587, %v3460, 3
        %vm3589 = vcmp.lt.s32.totalorder %v3462, 3
        %v3590 = vsel %vm3589, %v3462, 3
        %vm3591 = vcmp.lt.s32.totalorder %v3464, 3
        %v3592 = vsel %vm3591, %v3464, 3
        %vm3593 = vcmp.lt.s32.totalorder %v3466, 3
        %v3594 = vsel %vm3593, %v3466, 3
        %vm3595 = vcmp.lt.s32.totalorder %v3468, 3
        %v3596 = vsel %vm3595, %v3468, 3
        %vm3597 = vcmp.lt.s32.totalorder %v3470, 3
        %v3598 = vsel %vm3597, %v3470, 3
        %vm3599 = vcmp.lt.s32.totalorder %v3472, 3
        %v3600 = vsel %vm3599, %v3472, 3
        %vm3601 = vcmp.lt.s32.totalorder %v3474, 3
        %v3602 = vsel %vm3601, %v3474, 3
        %vm3603 = vcmp.lt.s32.totalorder %v3476, 3
        %v3604 = vsel %vm3603, %v3476, 3
        %vm3605 = vcmp.lt.s32.totalorder %v3478, 3
        %v3606 = vsel %vm3605, %v3478, 3
        %vm3607 = vcmp.lt.s32.totalorder %v3480, 3
        %v3608 = vsel %vm3607, %v3480, 3
        %vm3609 = vcmp.lt.s32.totalorder %v3482, 3
        %v3610 = vsel %vm3609, %v3482, 3
        %vm3611 = vcmp.lt.s32.totalorder %v3484, 3
        %v3612 = vsel %vm3611, %v3484, 3
        %vm3613 = vcmp.lt.s32.totalorder %v3486, 3
        %v3614 = vsel %vm3613, %v3486, 3
        %vm3615 = vcmp.lt.s32.totalorder %v3488, 3
        %v3616 = vsel %vm3615, %v3488, 3
        %vm3617 = vcmp.lt.s32.totalorder %v3490, 3
        %v3618 = vsel %vm3617, %v3490, 3
        %vm3619 = vcmp.lt.s32.totalorder %v3492, 3
        %v3620 = vsel %vm3619, %v3492, 3
        %vm3621 = vcmp.lt.s32.totalorder %v3494, 3
        %v3622 = vsel %vm3621, %v3494, 3
        %vm3623 = vcmp.lt.s32.totalorder %v3496, 3
        %v3624 = vsel %vm3623, %v3496, 3
        %vm3625 = vcmp.lt.s32.totalorder %v3498, 3
        %v3626 = vsel %vm3625, %v3498, 3
        %vm3627 = vcmp.lt.s32.totalorder %v3500, 3
        %v3628 = vsel %vm3627, %v3500, 3
        %vm3629 = vcmp.lt.s32.totalorder %v3502, 3
        %v3630 = vsel %vm3629, %v3502, 3
        %vm3631 = vcmp.lt.s32.totalorder %v3504, 3
        %v3632 = vsel %vm3631, %v3504, 3
        %vm3633 = vcmp.lt.s32.totalorder %v3506, 3
        %v3634 = vsel %vm3633, %v3506, 3
        %vm3635 = vcmp.lt.s32.totalorder %v3508, 3
        %v3636 = vsel %vm3635, %v3508, 3
        %vm3637 = vcmp.lt.s32.totalorder %v3510, 3
        %v3638 = vsel %vm3637, %v3510, 3
        %vm3639 = vcmp.lt.s32.totalorder %v3512, 3
        %v3640 = vsel %vm3639, %v3512, 3
        %vm3641 = vcmp.lt.s32.totalorder %v3514, 3
        %v3642 = vsel %vm3641, %v3514, 3
        %vm3643 = vcmp.lt.s32.totalorder %v3516, 3
        %v3644 = vsel %vm3643, %v3516, 3
        %vm3645 = vcmp.lt.s32.totalorder %v3518, 3
        %v3646 = vsel %vm3645, %v3518, 3
        %vm3647 = vcmp.lt.s32.totalorder %v3520, 3
        %v3648 = vsel %vm3647, %v3520, 3
        %vm3649 = vcmp.lt.s32.totalorder %v3522, 3
        %v3650 = vsel %vm3649, %v3522, 3
        %vm3651 = vcmp.lt.s32.totalorder %v3524, 3
        %v3652 = vsel %vm3651, %v3524, 3
        %vm3653 = vcmp.lt.s32.totalorder %v3526, 3
        %v3654 = vsel %vm3653, %v3526, 3
        %vm3655 = vcmp.lt.s32.totalorder %v3528, 3
        %v3656 = vsel %vm3655, %v3528, 3
        %vm3657 = vcmp.lt.s32.totalorder %v3530, 3
        %v3658 = vsel %vm3657, %v3530, 3
        %vm3659 = vcmp.lt.s32.totalorder %v3532, 3
        %v3660 = vsel %vm3659, %v3532, 3
        %vm3661 = vcmp.lt.s32.totalorder %v3534, 3
        %v3662 = vsel %vm3661, %v3534, 3
        %vm3663 = vcmp.lt.s32.totalorder %v3536, 3
        %v3664 = vsel %vm3663, %v3536, 3
        %vm3665 = vcmp.lt.s32.totalorder %v3538, 3
        %v3666 = vsel %vm3665, %v3538, 3
        %vm3667 = vcmp.lt.s32.totalorder %v3540, 3
        %v3668 = vsel %vm3667, %v3540, 3
        %vm3669 = vcmp.lt.s32.totalorder %v3542, 3
        %v3670 = vsel %vm3669, %v3542, 3
        %vm3671 = vcmp.lt.s32.totalorder %v3544, 3
        %v3672 = vsel %vm3671, %v3544, 3
        %vm3673 = vcmp.lt.s32.totalorder %v3546, 3
        %v3674 = vsel %vm3673, %v3546, 3
        %vm3675 = vcmp.lt.s32.totalorder %v3548, 3
        %v3676 = vsel %vm3675, %v3548, 3
        %vm3677 = vcmp.lt.s32.totalorder %v3550, 3
        %v3678 = vsel %vm3677, %v3550, 3
        %vm3679 = vcmp.lt.s32.totalorder %v3552, 3
        %v3680 = vsel %vm3679, %v3552, 3
        %vm3681 = vcmp.lt.s32.totalorder %v3554, 3
        %v3682 = vsel %vm3681, %v3554, 3
        %vm3683 = vcmp.lt.s32.totalorder %v3556, 3
        %v3684 = vsel %vm3683, %v3556, 3
        %vm3685 = vcmp.lt.s32.totalorder %v3558, 3
        %v3686 = vsel %vm3685, %v3558, 3
        %vm3687 = vcmp.lt.s32.totalorder %v3560, 3
        %v3688 = vsel %vm3687, %v3560, 3
        %vm3689 = vcmp.lt.s32.totalorder %v3562, 3
        %v3690 = vsel %vm3689, %v3562, 3
        %vm3691 = vcmp.lt.s32.totalorder %v3564, 3
        %v3692 = vsel %vm3691, %v3564, 3
        %vm3693 = vcmp.lt.s32.totalorder %v3566, 3
        %v3694 = vsel %vm3693, %v3566, 3
        %vm3695 = vcmp.lt.s32.totalorder %v3568, 3
        %v3696 = vsel %vm3695, %v3568, 3
        %vm3697 = vcmp.lt.s32.totalorder %v3570, 3
        %v3698 = vsel %vm3697, %v3570, 3
        %vm3699 = vcmp.lt.s32.totalorder %v3572, 3
        %v3700 = vsel %vm3699, %v3572, 3
        %vm3701 = vcmp.lt.s32.totalorder %v3574, 3
        %v3702 = vsel %vm3701, %v3574, 3
        %vm3703 = vcmp.lt.s32.totalorder %v3576, 3
        %v3704 = vsel %vm3703, %v3576, 3
        %vm3705 = vcmp.lt.s32.totalorder %v3578, 3
        %v3706 = vsel %vm3705, %v3578, 3
        %v3707 = vld [vmem:[%s3] sm:$0xf]
        %vm3708 = vcmp.eq.s32.totalorder %v3580, 0
        %vm3709 = vcmp.eq.s32.totalorder %v3582, 0
        %vm3710 = vcmp.eq.s32.totalorder %v3584, 0
        %vm3711 = vcmp.eq.s32.totalorder %v3586, 0
        %vm3712 = vcmp.eq.s32.totalorder %v3588, 0
        %vm3713 = vcmp.eq.s32.totalorder %v3590, 0
        %vm3714 = vcmp.eq.s32.totalorder %v3592, 0
        %vm3715 = vcmp.eq.s32.totalorder %v3594, 0
        %vm3716 = vcmp.eq.s32.totalorder %v3596, 0
        %vm3717 = vcmp.eq.s32.totalorder %v3598, 0
        %vm3718 = vcmp.eq.s32.totalorder %v3600, 0
        %vm3719 = vcmp.eq.s32.totalorder %v3602, 0
        %vm3720 = vcmp.eq.s32.totalorder %v3604, 0
        %vm3721 = vcmp.eq.s32.totalorder %v3606, 0
        %vm3722 = vcmp.eq.s32.totalorder %v3608, 0
        %vm3723 = vcmp.eq.s32.totalorder %v3610, 0
        %vm3724 = vcmp.eq.s32.totalorder %v3612, 0
        %vm3725 = vcmp.eq.s32.totalorder %v3614, 0
        %vm3726 = vcmp.eq.s32.totalorder %v3616, 0
        %vm3727 = vcmp.eq.s32.totalorder %v3618, 0
        %vm3728 = vcmp.eq.s32.totalorder %v3620, 0
        %vm3729 = vcmp.eq.s32.totalorder %v3622, 0
        %vm3730 = vcmp.eq.s32.totalorder %v3624, 0
        %vm3731 = vcmp.eq.s32.totalorder %v3626, 0
        %vm3732 = vcmp.eq.s32.totalorder %v3628, 0
        %vm3733 = vcmp.eq.s32.totalorder %v3630, 0
        %vm3734 = vcmp.eq.s32.totalorder %v3632, 0
        %vm3735 = vcmp.eq.s32.totalorder %v3634, 0
        %vm3736 = vcmp.eq.s32.totalorder %v3636, 0
        %vm3737 = vcmp.eq.s32.totalorder %v3638, 0
        %vm3738 = vcmp.eq.s32.totalorder %v3640, 0
        %vm3739 = vcmp.eq.s32.totalorder %v3642, 0
        %vm3740 = vcmp.eq.s32.totalorder %v3644, 0
        %vm3741 = vcmp.eq.s32.totalorder %v3646, 0
        %vm3742 = vcmp.eq.s32.totalorder %v3648, 0
        %vm3743 = vcmp.eq.s32.totalorder %v3650, 0
        %vm3744 = vcmp.eq.s32.totalorder %v3652, 0
        %vm3745 = vcmp.eq.s32.totalorder %v3654, 0
        %vm3746 = vcmp.eq.s32.totalorder %v3656, 0
        %vm3747 = vcmp.eq.s32.totalorder %v3658, 0
        %vm3748 = vcmp.eq.s32.totalorder %v3660, 0
        %vm3749 = vcmp.eq.s32.totalorder %v3662, 0
        %vm3750 = vcmp.eq.s32.totalorder %v3664, 0
        %vm3751 = vcmp.eq.s32.totalorder %v3666, 0
        %vm3752 = vcmp.eq.s32.totalorder %v3668, 0
        %vm3753 = vcmp.eq.s32.totalorder %v3670, 0
        %vm3754 = vcmp.eq.s32.totalorder %v3672, 0
        %vm3755 = vcmp.eq.s32.totalorder %v3674, 0
        %vm3756 = vcmp.eq.s32.totalorder %v3676, 0
        %vm3757 = vcmp.eq.s32.totalorder %v3678, 0
        %vm3758 = vcmp.eq.s32.totalorder %v3680, 0
        %vm3759 = vcmp.eq.s32.totalorder %v3682, 0
        %vm3760 = vcmp.eq.s32.totalorder %v3684, 0
        %vm3761 = vcmp.eq.s32.totalorder %v3686, 0
        %vm3762 = vcmp.eq.s32.totalorder %v3688, 0
        %vm3763 = vcmp.eq.s32.totalorder %v3690, 0
        %vm3764 = vcmp.eq.s32.totalorder %v3692, 0
        %vm3765 = vcmp.eq.s32.totalorder %v3694, 0
        %vm3766 = vcmp.eq.s32.totalorder %v3696, 0
        %vm3767 = vcmp.eq.s32.totalorder %v3698, 0
        %vm3768 = vcmp.eq.s32.totalorder %v3700, 0
        %vm3769 = vcmp.eq.s32.totalorder %v3702, 0
        %vm3770 = vcmp.eq.s32.totalorder %v3704, 0
        %vm3771 = vcmp.eq.s32.totalorder %v3706, 0
        %v3772 = vsel %vm3708, 1.0, 0.0
        %v3773 = vsel %vm3709, 1.0, 0.0
        %v3774 = vsel %vm3710, 1.0, 0.0
        %v3775 = vsel %vm3711, 1.0, 0.0
        %v3776 = vsel %vm3712, 1.0, 0.0
        %v3777 = vsel %vm3713, 1.0, 0.0
        %v3778 = vsel %vm3714, 1.0, 0.0
        %v3779 = vsel %vm3715, 1.0, 0.0
        %v3780 = vsel %vm3716, 1.0, 0.0
        %v3781 = vsel %vm3717, 1.0, 0.0
        %v3782 = vsel %vm3718, 1.0, 0.0
        %v3783 = vsel %vm3719, 1.0, 0.0
        %v3784 = vsel %vm3720, 1.0, 0.0
        %v3785 = vsel %vm3721, 1.0, 0.0
        %v3786 = vsel %vm3722, 1.0, 0.0
        %v3787 = vsel %vm3723, 1.0, 0.0
        %v3788 = vsel %vm3724, 1.0, 0.0
        %v3789 = vsel %vm3725, 1.0, 0.0
        %v3790 = vsel %vm3726, 1.0, 0.0
        %v3791 = vsel %vm3727, 1.0, 0.0
        %v3792 = vsel %vm3728, 1.0, 0.0
        %v3793 = vsel %vm3729, 1.0, 0.0
        %v3794 = vsel %vm3730, 1.0, 0.0
        %v3795 = vsel %vm3731, 1.0, 0.0
        %v3796 = vsel %vm3732, 1.0, 0.0
        %v3797 = vsel %vm3733, 1.0, 0.0
        %v3798 = vsel %vm3734, 1.0, 0.0
        %v3799 = vsel %vm3735, 1.0, 0.0
        %v3800 = vsel %vm3736, 1.0, 0.0
        %v3801 = vsel %vm3737, 1.0, 0.0
        %v3802 = vsel %vm3738, 1.0, 0.0
        %v3803 = vsel %vm3739, 1.0, 0.0
        %v3804 = vsel %vm3740, 1.0, 0.0
        %v3805 = vsel %vm3741, 1.0, 0.0
        %v3806 = vsel %vm3742, 1.0, 0.0
        %v3807 = vsel %vm3743, 1.0, 0.0
        %v3808 = vsel %vm3744, 1.0, 0.0
        %v3809 = vsel %vm3745, 1.0, 0.0
        %v3810 = vsel %vm3746, 1.0, 0.0
        %v3811 = vsel %vm3747, 1.0, 0.0
        %v3812 = vsel %vm3748, 1.0, 0.0
        %v3813 = vsel %vm3749, 1.0, 0.0
        %v3814 = vsel %vm3750, 1.0, 0.0
        %v3815 = vsel %vm3751, 1.0, 0.0
        %v3816 = vsel %vm3752, 1.0, 0.0
        %v3817 = vsel %vm3753, 1.0, 0.0
        %v3818 = vsel %vm3754, 1.0, 0.0
        %v3819 = vsel %vm3755, 1.0, 0.0
        %v3820 = vsel %vm3756, 1.0, 0.0
        %v3821 = vsel %vm3757, 1.0, 0.0
        %v3822 = vsel %vm3758, 1.0, 0.0
        %v3823 = vsel %vm3759, 1.0, 0.0
        %v3824 = vsel %vm3760, 1.0, 0.0
        %v3825 = vsel %vm3761, 1.0, 0.0
        %v3826 = vsel %vm3762, 1.0, 0.0
        %v3827 = vsel %vm3763, 1.0, 0.0
        %v3828 = vsel %vm3764, 1.0, 0.0
        %v3829 = vsel %vm3765, 1.0, 0.0
        %v3830 = vsel %vm3766, 1.0, 0.0
        %v3831 = vsel %vm3767, 1.0, 0.0
        %v3832 = vsel %vm3768, 1.0, 0.0
        %v3833 = vsel %vm3769, 1.0, 0.0
        %v3834 = vsel %vm3770, 1.0, 0.0
        %v3835 = vsel %vm3771, 1.0, 0.0
        %3837 = vset.pattern.permute.xlu0 1
        %3838 = vperm.xlu0 %3837, %v3772
        %v3839 = vpop.permute.xlu0 %3838
        %3842 = vset.pattern.permute.xlu0 1
        %3843 = vperm.xlu0 %3842, %v3773
        %v3844 = vpop.permute.xlu0 %3843
        %3847 = vset.pattern.permute.xlu0 1
        %3848 = vperm.xlu0 %3847, %v3774
        %v3849 = vpop.permute.xlu0 %3848
        %3852 = vset.pattern.permute.xlu0 1
        %3853 = vperm.xlu0 %3852, %v3775
        %v3854 = vpop.permute.xlu0 %3853
        %3857 = vset.pattern.permute.xlu0 1
        %3858 = vperm.xlu0 %3857, %v3776
        %v3859 = vpop.permute.xlu0 %3858
        %3862 = vset.pattern.permute.xlu0 1
        %3863 = vperm.xlu0 %3862, %v3777
        %v3864 = vpop.permute.xlu0 %3863
        %3867 = vset.pattern.permute.xlu0 1
        %3868 = vperm.xlu0 %3867, %v3778
        %v3869 = vpop.permute.xlu0 %3868
        %3872 = vset.pattern.permute.xlu0 1
        %3873 = vperm.xlu0 %3872, %v3779
        %v3874 = vpop.permute.xlu0 %3873
        %3877 = vset.pattern.permute.xlu0 1
        %3878 = vperm.xlu0 %3877, %v3780
        %v3879 = vpop.permute.xlu0 %3878
        %3882 = vset.pattern.permute.xlu0 1
        %3883 = vperm.xlu0 %3882, %v3781
        %v3884 = vpop.permute.xlu0 %3883
        %3887 = vset.pattern.permute.xlu0 1
        %3888 = vperm.xlu0 %3887, %v3782
        %v3889 = vpop.permute.xlu0 %3888
        %3892 = vset.pattern.permute.xlu0 1
        %3893 = vperm.xlu0 %3892, %v3783
        %v3894 = vpop.permute.xlu0 %3893
        %3897 = vset.pattern.permute.xlu0 1
        %3898 = vperm.xlu0 %3897, %v3784
        %v3899 = vpop.permute.xlu0 %3898
        %3902 = vset.pattern.permute.xlu0 1
        %3903 = vperm.xlu0 %3902, %v3785
        %v3904 = vpop.permute.xlu0 %3903
        %3907 = vset.pattern.permute.xlu0 1
        %3908 = vperm.xlu0 %3907, %v3786
        %v3909 = vpop.permute.xlu0 %3908
        %3912 = vset.pattern.permute.xlu0 1
        %3913 = vperm.xlu0 %3912, %v3787
        %v3914 = vpop.permute.xlu0 %3913
        %3917 = vset.pattern.permute.xlu0 1
        %3918 = vperm.xlu0 %3917, %v3788
        %v3919 = vpop.permute.xlu0 %3918
        %3922 = vset.pattern.permute.xlu0 1
        %3923 = vperm.xlu0 %3922, %v3789
        %v3924 = vpop.permute.xlu0 %3923
        %3927 = vset.pattern.permute.xlu0 1
        %3928 = vperm.xlu0 %3927, %v3790
        %v3929 = vpop.permute.xlu0 %3928
        %3932 = vset.pattern.permute.xlu0 1
        %3933 = vperm.xlu0 %3932, %v3791
        %v3934 = vpop.permute.xlu0 %3933
        %3937 = vset.pattern.permute.xlu0 1
        %3938 = vperm.xlu0 %3937, %v3792
        %v3939 = vpop.permute.xlu0 %3938
        %3942 = vset.pattern.permute.xlu0 1
        %3943 = vperm.xlu0 %3942, %v3793
        %v3944 = vpop.permute.xlu0 %3943
        %3947 = vset.pattern.permute.xlu0 1
        %3948 = vperm.xlu0 %3947, %v3794
        %v3949 = vpop.permute.xlu0 %3948
        %3952 = vset.pattern.permute.xlu0 1
        %3953 = vperm.xlu0 %3952, %v3795
        %v3954 = vpop.permute.xlu0 %3953
        %3957 = vset.pattern.permute.xlu0 1
        %3958 = vperm.xlu0 %3957, %v3796
        %v3959 = vpop.permute.xlu0 %3958
        %3962 = vset.pattern.permute.xlu0 1
        %3963 = vperm.xlu0 %3962, %v3797
        %v3964 = vpop.permute.xlu0 %3963
        %3967 = vset.pattern.permute.xlu0 1
        %3968 = vperm.xlu0 %3967, %v3798
        %v3969 = vpop.permute.xlu0 %3968
        %3972 = vset.pattern.permute.xlu0 1
        %3973 = vperm.xlu0 %3972, %v3799
        %v3974 = vpop.permute.xlu0 %3973
        %3977 = vset.pattern.permute.xlu0 1
        %3978 = vperm.xlu0 %3977, %v3800
        %v3979 = vpop.permute.xlu0 %3978
        %3982 = vset.pattern.permute.xlu0 1
        %3983 = vperm.xlu0 %3982, %v3801
        %v3984 = vpop.permute.xlu0 %3983
        %3987 = vset.pattern.permute.xlu0 1
        %3988 = vperm.xlu0 %3987, %v3802
        %v3989 = vpop.permute.xlu0 %3988
        %3992 = vset.pattern.permute.xlu0 1
        %3993 = vperm.xlu0 %3992, %v3803
        %v3994 = vpop.permute.xlu0 %3993
        %3997 = vset.pattern.permute.xlu0 1
        %3998 = vperm.xlu0 %3997, %v3804
        %v3999 = vpop.permute.xlu0 %3998
        %4002 = vset.pattern.permute.xlu0 1
        %4003 = vperm.xlu0 %4002, %v3805
        %v4004 = vpop.permute.xlu0 %4003
        %4007 = vset.pattern.permute.xlu0 1
        %4008 = vperm.xlu0 %4007, %v3806
        %v4009 = vpop.permute.xlu0 %4008
        %4012 = vset.pattern.permute.xlu0 1
        %4013 = vperm.xlu0 %4012, %v3807
        %v4014 = vpop.permute.xlu0 %4013
        %4017 = vset.pattern.permute.xlu0 1
        %4018 = vperm.xlu0 %4017, %v3808
        %v4019 = vpop.permute.xlu0 %4018
        %4022 = vset.pattern.permute.xlu0 1
        %4023 = vperm.xlu0 %4022, %v3809
        %v4024 = vpop.permute.xlu0 %4023
        %4027 = vset.pattern.permute.xlu0 1
        %4028 = vperm.xlu0 %4027, %v3810
        %v4029 = vpop.permute.xlu0 %4028
        %4032 = vset.pattern.permute.xlu0 1
        %4033 = vperm.xlu0 %4032, %v3811
        %v4034 = vpop.permute.xlu0 %4033
        %4037 = vset.pattern.permute.xlu0 1
        %4038 = vperm.xlu0 %4037, %v3812
        %v4039 = vpop.permute.xlu0 %4038
        %4042 = vset.pattern.permute.xlu0 1
        %4043 = vperm.xlu0 %4042, %v3813
        %v4044 = vpop.permute.xlu0 %4043
        %4047 = vset.pattern.permute.xlu0 1
        %4048 = vperm.xlu0 %4047, %v3814
        %v4049 = vpop.permute.xlu0 %4048
        %4052 = vset.pattern.permute.xlu0 1
        %4053 = vperm.xlu0 %4052, %v3815
        %v4054 = vpop.permute.xlu0 %4053
        %4057 = vset.pattern.permute.xlu0 1
        %4058 = vperm.xlu0 %4057, %v3816
        %v4059 = vpop.permute.xlu0 %4058
        %4062 = vset.pattern.permute.xlu0 1
        %4063 = vperm.xlu0 %4062, %v3817
        %v4064 = vpop.permute.xlu0 %4063
        %4067 = vset.pattern.permute.xlu0 1
        %4068 = vperm.xlu0 %4067, %v3818
        %v4069 = vpop.permute.xlu0 %4068
        %4072 = vset.pattern.permute.xlu0 1
        %4073 = vperm.xlu0 %4072, %v3819
        %v4074 = vpop.permute.xlu0 %4073
        %4077 = vset.pattern.permute.xlu0 1
        %4078 = vperm.xlu0 %4077, %v3820
        %v4079 = vpop.permute.xlu0 %4078
        %4082 = vset.pattern.permute.xlu0 1
        %4083 = vperm.xlu0 %4082, %v3821
        %v4084 = vpop.permute.xlu0 %4083
        %4087 = vset.pattern.permute.xlu0 1
        %4088 = vperm.xlu0 %4087, %v3822
        %v4089 = vpop.permute.xlu0 %4088
        %4092 = vset.pattern.permute.xlu0 1
        %4093 = vperm.xlu0 %4092, %v3823
        %v4094 = vpop.permute.xlu0 %4093
        %4097 = vset.pattern.permute.xlu0 1
        %4098 = vperm.xlu0 %4097, %v3824
        %v4099 = vpop.permute.xlu0 %4098
        %4102 = vset.pattern.permute.xlu0 1
        %4103 = vperm.xlu0 %4102, %v3825
        %v4104 = vpop.permute.xlu0 %4103
        %4107 = vset.pattern.permute.xlu0 1
        %4108 = vperm.xlu0 %4107, %v3826
        %v4109 = vpop.permute.xlu0 %4108
        %4112 = vset.pattern.permute.xlu0 1
        %4113 = vperm.xlu0 %4112, %v3827
        %v4114 = vpop.permute.xlu0 %4113
        %4117 = vset.pattern.permute.xlu0 1
        %4118 = vperm.xlu0 %4117, %v3828
        %v4119 = vpop.permute.xlu0 %4118
        %4122 = vset.pattern.permute.xlu0 1
        %4123 = vperm.xlu0 %4122, %v3829
        %v4124 = vpop.permute.xlu0 %4123
        %4127 = vset.pattern.permute.xlu0 1
        %4128 = vperm.xlu0 %4127, %v3830
        %v4129 = vpop.permute.xlu0 %4128
        %4132 = vset.pattern.permute.xlu0 1
        %4133 = vperm.xlu0 %4132, %v3831
        %v4134 = vpop.permute.xlu0 %4133
        %4137 = vset.pattern.permute.xlu0 1
        %4138 = vperm.xlu0 %4137, %v3832
        %v4139 = vpop.permute.xlu0 %4138
        %4142 = vset.pattern.permute.xlu0 1
        %4143 = vperm.xlu0 %4142, %v3833
        %v4144 = vpop.permute.xlu0 %4143
        %4147 = vset.pattern.permute.xlu0 1
        %4148 = vperm.xlu0 %4147, %v3834
        %v4149 = vpop.permute.xlu0 %4148
        %4152 = vset.pattern.permute.xlu0 1
        %4153 = vperm.xlu0 %4152, %v3835
        %v4154 = vpop.permute.xlu0 %4153
        %v4156 = vperm.slane %v3707, 0
        %v4157 = vmul.f32 %v3839, %v4156
        %v4158 = vmul.f32 %v3844, %v4156
        %v4159 = vmul.f32 %v3849, %v4156
        %v4160 = vmul.f32 %v3854, %v4156
        %v4161 = vmul.f32 %v3859, %v4156
        %v4162 = vmul.f32 %v3864, %v4156
        %v4163 = vmul.f32 %v3869, %v4156
        %v4164 = vmul.f32 %v3874, %v4156
        %v4165 = vmul.f32 %v3879, %v4156
        %v4166 = vmul.f32 %v3884, %v4156
        %v4167 = vmul.f32 %v3889, %v4156
        %v4168 = vmul.f32 %v3894, %v4156
        %v4169 = vmul.f32 %v3899, %v4156
        %v4170 = vmul.f32 %v3904, %v4156
        %v4171 = vmul.f32 %v3909, %v4156
        %v4172 = vmul.f32 %v3914, %v4156
        %v4173 = vmul.f32 %v3919, %v4156
        %v4174 = vmul.f32 %v3924, %v4156
        %v4175 = vmul.f32 %v3929, %v4156
        %v4176 = vmul.f32 %v3934, %v4156
        %v4177 = vmul.f32 %v3939, %v4156
        %v4178 = vmul.f32 %v3944, %v4156
        %v4179 = vmul.f32 %v3949, %v4156
        %v4180 = vmul.f32 %v3954, %v4156
        %v4181 = vmul.f32 %v3959, %v4156
        %v4182 = vmul.f32 %v3964, %v4156
        %v4183 = vmul.f32 %v3969, %v4156
        %v4184 = vmul.f32 %v3974, %v4156
        %v4185 = vmul.f32 %v3979, %v4156
        %v4186 = vmul.f32 %v3984, %v4156
        %v4187 = vmul.f32 %v3989, %v4156
        %v4188 = vmul.f32 %v3994, %v4156
        %v4189 = vmul.f32 %v3999, %v4156
        %v4190 = vmul.f32 %v4004, %v4156
        %v4191 = vmul.f32 %v4009, %v4156
        %v4192 = vmul.f32 %v4014, %v4156
        %v4193 = vmul.f32 %v4019, %v4156
        %v4194 = vmul.f32 %v4024, %v4156
        %v4195 = vmul.f32 %v4029, %v4156
        %v4196 = vmul.f32 %v4034, %v4156
        %v4197 = vmul.f32 %v4039, %v4156
        %v4198 = vmul.f32 %v4044, %v4156
        %v4199 = vmul.f32 %v4049, %v4156
        %v4200 = vmul.f32 %v4054, %v4156
        %v4201 = vmul.f32 %v4059, %v4156
        %v4202 = vmul.f32 %v4064, %v4156
        %v4203 = vmul.f32 %v4069, %v4156
        %v4204 = vmul.f32 %v4074, %v4156
        %v4205 = vmul.f32 %v4079, %v4156
        %v4206 = vmul.f32 %v4084, %v4156
        %v4207 = vmul.f32 %v4089, %v4156
        %v4208 = vmul.f32 %v4094, %v4156
        %v4209 = vmul.f32 %v4099, %v4156
        %v4210 = vmul.f32 %v4104, %v4156
        %v4211 = vmul.f32 %v4109, %v4156
        %v4212 = vmul.f32 %v4114, %v4156
        %v4213 = vmul.f32 %v4119, %v4156
        %v4214 = vmul.f32 %v4124, %v4156
        %v4215 = vmul.f32 %v4129, %v4156
        %v4216 = vmul.f32 %v4134, %v4156
        %v4217 = vmul.f32 %v4139, %v4156
        %v4218 = vmul.f32 %v4144, %v4156
        %v4219 = vmul.f32 %v4149, %v4156
        %v4220 = vmul.f32 %v4154, %v4156
        %v4221 = vadd.f32 %v4157, 0.0
        %v4222 = vadd.f32 %v4158, 0.0
        %v4223 = vadd.f32 %v4159, 0.0
        %v4224 = vadd.f32 %v4160, 0.0
        %v4225 = vadd.f32 %v4161, 0.0
        %v4226 = vadd.f32 %v4162, 0.0
        %v4227 = vadd.f32 %v4163, 0.0
        %v4228 = vadd.f32 %v4164, 0.0
        %v4229 = vadd.f32 %v4165, 0.0
        %v4230 = vadd.f32 %v4166, 0.0
        %v4231 = vadd.f32 %v4167, 0.0
        %v4232 = vadd.f32 %v4168, 0.0
        %v4233 = vadd.f32 %v4169, 0.0
        %v4234 = vadd.f32 %v4170, 0.0
        %v4235 = vadd.f32 %v4171, 0.0
        %v4236 = vadd.f32 %v4172, 0.0
        %v4237 = vadd.f32 %v4173, 0.0
        %v4238 = vadd.f32 %v4174, 0.0
        %v4239 = vadd.f32 %v4175, 0.0
        %v4240 = vadd.f32 %v4176, 0.0
        %v4241 = vadd.f32 %v4177, 0.0
        %v4242 = vadd.f32 %v4178, 0.0
        %v4243 = vadd.f32 %v4179, 0.0
        %v4244 = vadd.f32 %v4180, 0.0
        %v4245 = vadd.f32 %v4181, 0.0
        %v4246 = vadd.f32 %v4182, 0.0
        %v4247 = vadd.f32 %v4183, 0.0
        %v4248 = vadd.f32 %v4184, 0.0
        %v4249 = vadd.f32 %v4185, 0.0
        %v4250 = vadd.f32 %v4186, 0.0
        %v4251 = vadd.f32 %v4187, 0.0
        %v4252 = vadd.f32 %v4188, 0.0
        %v4253 = vadd.f32 %v4189, 0.0
        %v4254 = vadd.f32 %v4190, 0.0
        %v4255 = vadd.f32 %v4191, 0.0
        %v4256 = vadd.f32 %v4192, 0.0
        %v4257 = vadd.f32 %v4193, 0.0
        %v4258 = vadd.f32 %v4194, 0.0
        %v4259 = vadd.f32 %v4195, 0.0
        %v4260 = vadd.f32 %v4196, 0.0
        %v4261 = vadd.f32 %v4197, 0.0
        %v4262 = vadd.f32 %v4198, 0.0
        %v4263 = vadd.f32 %v4199, 0.0
        %v4264 = vadd.f32 %v4200, 0.0
        %v4265 = vadd.f32 %v4201, 0.0
        %v4266 = vadd.f32 %v4202, 0.0
        %v4267 = vadd.f32 %v4203, 0.0
        %v4268 = vadd.f32 %v4204, 0.0
        %v4269 = vadd.f32 %v4205, 0.0
        %v4270 = vadd.f32 %v4206, 0.0
        %v4271 = vadd.f32 %v4207, 0.0
        %v4272 = vadd.f32 %v4208, 0.0
        %v4273 = vadd.f32 %v4209, 0.0
        %v4274 = vadd.f32 %v4210, 0.0
        %v4275 = vadd.f32 %v4211, 0.0
        %v4276 = vadd.f32 %v4212, 0.0
        %v4277 = vadd.f32 %v4213, 0.0
        %v4278 = vadd.f32 %v4214, 0.0
        %v4279 = vadd.f32 %v4215, 0.0
        %v4280 = vadd.f32 %v4216, 0.0
        %v4281 = vadd.f32 %v4217, 0.0
        %v4282 = vadd.f32 %v4218, 0.0
        %v4283 = vadd.f32 %v4219, 0.0
        %v4284 = vadd.f32 %v4220, 0.0
        %vm4285 = vcmp.eq.s32.totalorder %v3580, 1
        %vm4286 = vcmp.eq.s32.totalorder %v3582, 1
        %vm4287 = vcmp.eq.s32.totalorder %v3584, 1
        %vm4288 = vcmp.eq.s32.totalorder %v3586, 1
        %vm4289 = vcmp.eq.s32.totalorder %v3588, 1
        %vm4290 = vcmp.eq.s32.totalorder %v3590, 1
        %vm4291 = vcmp.eq.s32.totalorder %v3592, 1
        %vm4292 = vcmp.eq.s32.totalorder %v3594, 1
        %vm4293 = vcmp.eq.s32.totalorder %v3596, 1
        %vm4294 = vcmp.eq.s32.totalorder %v3598, 1
        %vm4295 = vcmp.eq.s32.totalorder %v3600, 1
        %vm4296 = vcmp.eq.s32.totalorder %v3602, 1
        %vm4297 = vcmp.eq.s32.totalorder %v3604, 1
        %vm4298 = vcmp.eq.s32.totalorder %v3606, 1
        %vm4299 = vcmp.eq.s32.totalorder %v3608, 1
        %vm4300 = vcmp.eq.s32.totalorder %v3610, 1
        %vm4301 = vcmp.eq.s32.totalorder %v3612, 1
        %vm4302 = vcmp.eq.s32.totalorder %v3614, 1
        %vm4303 = vcmp.eq.s32.totalorder %v3616, 1
        %vm4304 = vcmp.eq.s32.totalorder %v3618, 1
        %vm4305 = vcmp.eq.s32.totalorder %v3620, 1
        %vm4306 = vcmp.eq.s32.totalorder %v3622, 1
        %vm4307 = vcmp.eq.s32.totalorder %v3624, 1
        %vm4308 = vcmp.eq.s32.totalorder %v3626, 1
        %vm4309 = vcmp.eq.s32.totalorder %v3628, 1
        %vm4310 = vcmp.eq.s32.totalorder %v3630, 1
        %vm4311 = vcmp.eq.s32.totalorder %v3632, 1
        %vm4312 = vcmp.eq.s32.totalorder %v3634, 1
        %vm4313 = vcmp.eq.s32.totalorder %v3636, 1
        %vm4314 = vcmp.eq.s32.totalorder %v3638, 1
        %vm4315 = vcmp.eq.s32.totalorder %v3640, 1
        %vm4316 = vcmp.eq.s32.totalorder %v3642, 1
        %vm4317 = vcmp.eq.s32.totalorder %v3644, 1
        %vm4318 = vcmp.eq.s32.totalorder %v3646, 1
        %vm4319 = vcmp.eq.s32.totalorder %v3648, 1
        %vm4320 = vcmp.eq.s32.totalorder %v3650, 1
        %vm4321 = vcmp.eq.s32.totalorder %v3652, 1
        %vm4322 = vcmp.eq.s32.totalorder %v3654, 1
        %vm4323 = vcmp.eq.s32.totalorder %v3656, 1
        %vm4324 = vcmp.eq.s32.totalorder %v3658, 1
        %vm4325 = vcmp.eq.s32.totalorder %v3660, 1
        %vm4326 = vcmp.eq.s32.totalorder %v3662, 1
        %vm4327 = vcmp.eq.s32.totalorder %v3664, 1
        %vm4328 = vcmp.eq.s32.totalorder %v3666, 1
        %vm4329 = vcmp.eq.s32.totalorder %v3668, 1
        %vm4330 = vcmp.eq.s32.totalorder %v3670, 1
        %vm4331 = vcmp.eq.s32.totalorder %v3672, 1
        %vm4332 = vcmp.eq.s32.totalorder %v3674, 1
        %vm4333 = vcmp.eq.s32.totalorder %v3676, 1
        %vm4334 = vcmp.eq.s32.totalorder %v3678, 1
        %vm4335 = vcmp.eq.s32.totalorder %v3680, 1
        %vm4336 = vcmp.eq.s32.totalorder %v3682, 1
        %vm4337 = vcmp.eq.s32.totalorder %v3684, 1
        %vm4338 = vcmp.eq.s32.totalorder %v3686, 1
        %vm4339 = vcmp.eq.s32.totalorder %v3688, 1
        %vm4340 = vcmp.eq.s32.totalorder %v3690, 1
        %vm4341 = vcmp.eq.s32.totalorder %v3692, 1
        %vm4342 = vcmp.eq.s32.totalorder %v3694, 1
        %vm4343 = vcmp.eq.s32.totalorder %v3696, 1
        %vm4344 = vcmp.eq.s32.totalorder %v3698, 1
        %vm4345 = vcmp.eq.s32.totalorder %v3700, 1
        %vm4346 = vcmp.eq.s32.totalorder %v3702, 1
        %vm4347 = vcmp.eq.s32.totalorder %v3704, 1
        %vm4348 = vcmp.eq.s32.totalorder %v3706, 1
        %v4349 = vsel %vm4285, 1.0, 0.0
        %v4350 = vsel %vm4286, 1.0, 0.0
        %v4351 = vsel %vm4287, 1.0, 0.0
        %v4352 = vsel %vm4288, 1.0, 0.0
        %v4353 = vsel %vm4289, 1.0, 0.0
        %v4354 = vsel %vm4290, 1.0, 0.0
        %v4355 = vsel %vm4291, 1.0, 0.0
        %v4356 = vsel %vm4292, 1.0, 0.0
        %v4357 = vsel %vm4293, 1.0, 0.0
        %v4358 = vsel %vm4294, 1.0, 0.0
        %v4359 = vsel %vm4295, 1.0, 0.0
        %v4360 = vsel %vm4296, 1.0, 0.0
        %v4361 = vsel %vm4297, 1.0, 0.0
        %v4362 = vsel %vm4298, 1.0, 0.0
        %v4363 = vsel %vm4299, 1.0, 0.0
        %v4364 = vsel %vm4300, 1.0, 0.0
        %v4365 = vsel %vm4301, 1.0, 0.0
        %v4366 = vsel %vm4302, 1.0, 0.0
        %v4367 = vsel %vm4303, 1.0, 0.0
        %v4368 = vsel %vm4304, 1.0, 0.0
        %v4369 = vsel %vm4305, 1.0, 0.0
        %v4370 = vsel %vm4306, 1.0, 0.0
        %v4371 = vsel %vm4307, 1.0, 0.0
        %v4372 = vsel %vm4308, 1.0, 0.0
        %v4373 = vsel %vm4309, 1.0, 0.0
        %v4374 = vsel %vm4310, 1.0, 0.0
        %v4375 = vsel %vm4311, 1.0, 0.0
        %v4376 = vsel %vm4312, 1.0, 0.0
        %v4377 = vsel %vm4313, 1.0, 0.0
        %v4378 = vsel %vm4314, 1.0, 0.0
        %v4379 = vsel %vm4315, 1.0, 0.0
        %v4380 = vsel %vm4316, 1.0, 0.0
        %v4381 = vsel %vm4317, 1.0, 0.0
        %v4382 = vsel %vm4318, 1.0, 0.0
        %v4383 = vsel %vm4319, 1.0, 0.0
        %v4384 = vsel %vm4320, 1.0, 0.0
        %v4385 = vsel %vm4321, 1.0, 0.0
        %v4386 = vsel %vm4322, 1.0, 0.0
        %v4387 = vsel %vm4323, 1.0, 0.0
        %v4388 = vsel %vm4324, 1.0, 0.0
        %v4389 = vsel %vm4325, 1.0, 0.0
        %v4390 = vsel %vm4326, 1.0, 0.0
        %v4391 = vsel %vm4327, 1.0, 0.0
        %v4392 = vsel %vm4328, 1.0, 0.0
        %v4393 = vsel %vm4329, 1.0, 0.0
        %v4394 = vsel %vm4330, 1.0, 0.0
        %v4395 = vsel %vm4331, 1.0, 0.0
        %v4396 = vsel %vm4332, 1.0, 0.0
        %v4397 = vsel %vm4333, 1.0, 0.0
        %v4398 = vsel %vm4334, 1.0, 0.0
        %v4399 = vsel %vm4335, 1.0, 0.0
        %v4400 = vsel %vm4336, 1.0, 0.0
        %v4401 = vsel %vm4337, 1.0, 0.0
        %v4402 = vsel %vm4338, 1.0, 0.0
        %v4403 = vsel %vm4339, 1.0, 0.0
        %v4404 = vsel %vm4340, 1.0, 0.0
        %v4405 = vsel %vm4341, 1.0, 0.0
        %v4406 = vsel %vm4342, 1.0, 0.0
        %v4407 = vsel %vm4343, 1.0, 0.0
        %v4408 = vsel %vm4344, 1.0, 0.0
        %v4409 = vsel %vm4345, 1.0, 0.0
        %v4410 = vsel %vm4346, 1.0, 0.0
        %v4411 = vsel %vm4347, 1.0, 0.0
        %v4412 = vsel %vm4348, 1.0, 0.0
        %4414 = vset.pattern.permute.xlu0 1
        %4415 = vperm.xlu0 %4414, %v4349
        %v4416 = vpop.permute.xlu0 %4415
        %4419 = vset.pattern.permute.xlu0 1
        %4420 = vperm.xlu0 %4419, %v4350
        %v4421 = vpop.permute.xlu0 %4420
        %4424 = vset.pattern.permute.xlu0 1
        %4425 = vperm.xlu0 %4424, %v4351
        %v4426 = vpop.permute.xlu0 %4425
        %4429 = vset.pattern.permute.xlu0 1
        %4430 = vperm.xlu0 %4429, %v4352
        %v4431 = vpop.permute.xlu0 %4430
        %4434 = vset.pattern.permute.xlu0 1
        %4435 = vperm.xlu0 %4434, %v4353
        %v4436 = vpop.permute.xlu0 %4435
        %4439 = vset.pattern.permute.xlu0 1
        %4440 = vperm.xlu0 %4439, %v4354
        %v4441 = vpop.permute.xlu0 %4440
        %4444 = vset.pattern.permute.xlu0 1
        %4445 = vperm.xlu0 %4444, %v4355
        %v4446 = vpop.permute.xlu0 %4445
        %4449 = vset.pattern.permute.xlu0 1
        %4450 = vperm.xlu0 %4449, %v4356
        %v4451 = vpop.permute.xlu0 %4450
        %4454 = vset.pattern.permute.xlu0 1
        %4455 = vperm.xlu0 %4454, %v4357
        %v4456 = vpop.permute.xlu0 %4455
        %4459 = vset.pattern.permute.xlu0 1
        %4460 = vperm.xlu0 %4459, %v4358
        %v4461 = vpop.permute.xlu0 %4460
        %4464 = vset.pattern.permute.xlu0 1
        %4465 = vperm.xlu0 %4464, %v4359
        %v4466 = vpop.permute.xlu0 %4465
        %4469 = vset.pattern.permute.xlu0 1
        %4470 = vperm.xlu0 %4469, %v4360
        %v4471 = vpop.permute.xlu0 %4470
        %4474 = vset.pattern.permute.xlu0 1
        %4475 = vperm.xlu0 %4474, %v4361
        %v4476 = vpop.permute.xlu0 %4475
        %4479 = vset.pattern.permute.xlu0 1
        %4480 = vperm.xlu0 %4479, %v4362
        %v4481 = vpop.permute.xlu0 %4480
        %4484 = vset.pattern.permute.xlu0 1
        %4485 = vperm.xlu0 %4484, %v4363
        %v4486 = vpop.permute.xlu0 %4485
        %4489 = vset.pattern.permute.xlu0 1
        %4490 = vperm.xlu0 %4489, %v4364
        %v4491 = vpop.permute.xlu0 %4490
        %4494 = vset.pattern.permute.xlu0 1
        %4495 = vperm.xlu0 %4494, %v4365
        %v4496 = vpop.permute.xlu0 %4495
        %4499 = vset.pattern.permute.xlu0 1
        %4500 = vperm.xlu0 %4499, %v4366
        %v4501 = vpop.permute.xlu0 %4500
        %4504 = vset.pattern.permute.xlu0 1
        %4505 = vperm.xlu0 %4504, %v4367
        %v4506 = vpop.permute.xlu0 %4505
        %4509 = vset.pattern.permute.xlu0 1
        %4510 = vperm.xlu0 %4509, %v4368
        %v4511 = vpop.permute.xlu0 %4510
        %4514 = vset.pattern.permute.xlu0 1
        %4515 = vperm.xlu0 %4514, %v4369
        %v4516 = vpop.permute.xlu0 %4515
        %4519 = vset.pattern.permute.xlu0 1
        %4520 = vperm.xlu0 %4519, %v4370
        %v4521 = vpop.permute.xlu0 %4520
        %4524 = vset.pattern.permute.xlu0 1
        %4525 = vperm.xlu0 %4524, %v4371
        %v4526 = vpop.permute.xlu0 %4525
        %4529 = vset.pattern.permute.xlu0 1
        %4530 = vperm.xlu0 %4529, %v4372
        %v4531 = vpop.permute.xlu0 %4530
        %4534 = vset.pattern.permute.xlu0 1
        %4535 = vperm.xlu0 %4534, %v4373
        %v4536 = vpop.permute.xlu0 %4535
        %4539 = vset.pattern.permute.xlu0 1
        %4540 = vperm.xlu0 %4539, %v4374
        %v4541 = vpop.permute.xlu0 %4540
        %4544 = vset.pattern.permute.xlu0 1
        %4545 = vperm.xlu0 %4544, %v4375
        %v4546 = vpop.permute.xlu0 %4545
        %4549 = vset.pattern.permute.xlu0 1
        %4550 = vperm.xlu0 %4549, %v4376
        %v4551 = vpop.permute.xlu0 %4550
        %4554 = vset.pattern.permute.xlu0 1
        %4555 = vperm.xlu0 %4554, %v4377
        %v4556 = vpop.permute.xlu0 %4555
        %4559 = vset.pattern.permute.xlu0 1
        %4560 = vperm.xlu0 %4559, %v4378
        %v4561 = vpop.permute.xlu0 %4560
        %4564 = vset.pattern.permute.xlu0 1
        %4565 = vperm.xlu0 %4564, %v4379
        %v4566 = vpop.permute.xlu0 %4565
        %4569 = vset.pattern.permute.xlu0 1
        %4570 = vperm.xlu0 %4569, %v4380
        %v4571 = vpop.permute.xlu0 %4570
        %4574 = vset.pattern.permute.xlu0 1
        %4575 = vperm.xlu0 %4574, %v4381
        %v4576 = vpop.permute.xlu0 %4575
        %4579 = vset.pattern.permute.xlu0 1
        %4580 = vperm.xlu0 %4579, %v4382
        %v4581 = vpop.permute.xlu0 %4580
        %4584 = vset.pattern.permute.xlu0 1
        %4585 = vperm.xlu0 %4584, %v4383
        %v4586 = vpop.permute.xlu0 %4585
        %4589 = vset.pattern.permute.xlu0 1
        %4590 = vperm.xlu0 %4589, %v4384
        %v4591 = vpop.permute.xlu0 %4590
        %4594 = vset.pattern.permute.xlu0 1
        %4595 = vperm.xlu0 %4594, %v4385
        %v4596 = vpop.permute.xlu0 %4595
        %4599 = vset.pattern.permute.xlu0 1
        %4600 = vperm.xlu0 %4599, %v4386
        %v4601 = vpop.permute.xlu0 %4600
        %4604 = vset.pattern.permute.xlu0 1
        %4605 = vperm.xlu0 %4604, %v4387
        %v4606 = vpop.permute.xlu0 %4605
        %4609 = vset.pattern.permute.xlu0 1
        %4610 = vperm.xlu0 %4609, %v4388
        %v4611 = vpop.permute.xlu0 %4610
        %4614 = vset.pattern.permute.xlu0 1
        %4615 = vperm.xlu0 %4614, %v4389
        %v4616 = vpop.permute.xlu0 %4615
        %4619 = vset.pattern.permute.xlu0 1
        %4620 = vperm.xlu0 %4619, %v4390
        %v4621 = vpop.permute.xlu0 %4620
        %4624 = vset.pattern.permute.xlu0 1
        %4625 = vperm.xlu0 %4624, %v4391
        %v4626 = vpop.permute.xlu0 %4625
        %4629 = vset.pattern.permute.xlu0 1
        %4630 = vperm.xlu0 %4629, %v4392
        %v4631 = vpop.permute.xlu0 %4630
        %4634 = vset.pattern.permute.xlu0 1
        %4635 = vperm.xlu0 %4634, %v4393
        %v4636 = vpop.permute.xlu0 %4635
        %4639 = vset.pattern.permute.xlu0 1
        %4640 = vperm.xlu0 %4639, %v4394
        %v4641 = vpop.permute.xlu0 %4640
        %4644 = vset.pattern.permute.xlu0 1
        %4645 = vperm.xlu0 %4644, %v4395
        %v4646 = vpop.permute.xlu0 %4645
        %4649 = vset.pattern.permute.xlu0 1
        %4650 = vperm.xlu0 %4649, %v4396
        %v4651 = vpop.permute.xlu0 %4650
        %4654 = vset.pattern.permute.xlu0 1
        %4655 = vperm.xlu0 %4654, %v4397
        %v4656 = vpop.permute.xlu0 %4655
        %4659 = vset.pattern.permute.xlu0 1
        %4660 = vperm.xlu0 %4659, %v4398
        %v4661 = vpop.permute.xlu0 %4660
        %4664 = vset.pattern.permute.xlu0 1
        %4665 = vperm.xlu0 %4664, %v4399
        %v4666 = vpop.permute.xlu0 %4665
        %4669 = vset.pattern.permute.xlu0 1
        %4670 = vperm.xlu0 %4669, %v4400
        %v4671 = vpop.permute.xlu0 %4670
        %4674 = vset.pattern.permute.xlu0 1
        %4675 = vperm.xlu0 %4674, %v4401
        %v4676 = vpop.permute.xlu0 %4675
        %4679 = vset.pattern.permute.xlu0 1
        %4680 = vperm.xlu0 %4679, %v4402
        %v4681 = vpop.permute.xlu0 %4680
        %4684 = vset.pattern.permute.xlu0 1
        %4685 = vperm.xlu0 %4684, %v4403
        %v4686 = vpop.permute.xlu0 %4685
        %4689 = vset.pattern.permute.xlu0 1
        %4690 = vperm.xlu0 %4689, %v4404
        %v4691 = vpop.permute.xlu0 %4690
        %4694 = vset.pattern.permute.xlu0 1
        %4695 = vperm.xlu0 %4694, %v4405
        %v4696 = vpop.permute.xlu0 %4695
        %4699 = vset.pattern.permute.xlu0 1
        %4700 = vperm.xlu0 %4699, %v4406
        %v4701 = vpop.permute.xlu0 %4700
        %4704 = vset.pattern.permute.xlu0 1
        %4705 = vperm.xlu0 %4704, %v4407
        %v4706 = vpop.permute.xlu0 %4705
        %4709 = vset.pattern.permute.xlu0 1
        %4710 = vperm.xlu0 %4709, %v4408
        %v4711 = vpop.permute.xlu0 %4710
        %4714 = vset.pattern.permute.xlu0 1
        %4715 = vperm.xlu0 %4714, %v4409
        %v4716 = vpop.permute.xlu0 %4715
        %4719 = vset.pattern.permute.xlu0 1
        %4720 = vperm.xlu0 %4719, %v4410
        %v4721 = vpop.permute.xlu0 %4720
        %4724 = vset.pattern.permute.xlu0 1
        %4725 = vperm.xlu0 %4724, %v4411
        %v4726 = vpop.permute.xlu0 %4725
        %4729 = vset.pattern.permute.xlu0 1
        %4730 = vperm.xlu0 %4729, %v4412
        %v4731 = vpop.permute.xlu0 %4730
        %v4733 = vperm.slane %v3707, 1
        %v4734 = vmul.f32 %v4416, %v4733
        %v4735 = vmul.f32 %v4421, %v4733
        %v4736 = vmul.f32 %v4426, %v4733
        %v4737 = vmul.f32 %v4431, %v4733
        %v4738 = vmul.f32 %v4436, %v4733
        %v4739 = vmul.f32 %v4441, %v4733
        %v4740 = vmul.f32 %v4446, %v4733
        %v4741 = vmul.f32 %v4451, %v4733
        %v4742 = vmul.f32 %v4456, %v4733
        %v4743 = vmul.f32 %v4461, %v4733
        %v4744 = vmul.f32 %v4466, %v4733
        %v4745 = vmul.f32 %v4471, %v4733
        %v4746 = vmul.f32 %v4476, %v4733
        %v4747 = vmul.f32 %v4481, %v4733
        %v4748 = vmul.f32 %v4486, %v4733
        %v4749 = vmul.f32 %v4491, %v4733
        %v4750 = vmul.f32 %v4496, %v4733
        %v4751 = vmul.f32 %v4501, %v4733
        %v4752 = vmul.f32 %v4506, %v4733
        %v4753 = vmul.f32 %v4511, %v4733
        %v4754 = vmul.f32 %v4516, %v4733
        %v4755 = vmul.f32 %v4521, %v4733
        %v4756 = vmul.f32 %v4526, %v4733
        %v4757 = vmul.f32 %v4531, %v4733
        %v4758 = vmul.f32 %v4536, %v4733
        %v4759 = vmul.f32 %v4541, %v4733
        %v4760 = vmul.f32 %v4546, %v4733
        %v4761 = vmul.f32 %v4551, %v4733
        %v4762 = vmul.f32 %v4556, %v4733
        %v4763 = vmul.f32 %v4561, %v4733
        %v4764 = vmul.f32 %v4566, %v4733
        %v4765 = vmul.f32 %v4571, %v4733
        %v4766 = vmul.f32 %v4576, %v4733
        %v4767 = vmul.f32 %v4581, %v4733
        %v4768 = vmul.f32 %v4586, %v4733
        %v4769 = vmul.f32 %v4591, %v4733
        %v4770 = vmul.f32 %v4596, %v4733
        %v4771 = vmul.f32 %v4601, %v4733
        %v4772 = vmul.f32 %v4606, %v4733
        %v4773 = vmul.f32 %v4611, %v4733
        %v4774 = vmul.f32 %v4616, %v4733
        %v4775 = vmul.f32 %v4621, %v4733
        %v4776 = vmul.f32 %v4626, %v4733
        %v4777 = vmul.f32 %v4631, %v4733
        %v4778 = vmul.f32 %v4636, %v4733
        %v4779 = vmul.f32 %v4641, %v4733
        %v4780 = vmul.f32 %v4646, %v4733
        %v4781 = vmul.f32 %v4651, %v4733
        %v4782 = vmul.f32 %v4656, %v4733
        %v4783 = vmul.f32 %v4661, %v4733
        %v4784 = vmul.f32 %v4666, %v4733
        %v4785 = vmul.f32 %v4671, %v4733
        %v4786 = vmul.f32 %v4676, %v4733
        %v4787 = vmul.f32 %v4681, %v4733
        %v4788 = vmul.f32 %v4686, %v4733
        %v4789 = vmul.f32 %v4691, %v4733
        %v4790 = vmul.f32 %v4696, %v4733
        %v4791 = vmul.f32 %v4701, %v4733
        %v4792 = vmul.f32 %v4706, %v4733
        %v4793 = vmul.f32 %v4711, %v4733
        %v4794 = vmul.f32 %v4716, %v4733
        %v4795 = vmul.f32 %v4721, %v4733
        %v4796 = vmul.f32 %v4726, %v4733
        %v4797 = vmul.f32 %v4731, %v4733
        %v4798 = vadd.f32 %v4221, %v4734
        %v4799 = vadd.f32 %v4222, %v4735
        %v4800 = vadd.f32 %v4223, %v4736
        %v4801 = vadd.f32 %v4224, %v4737
        %v4802 = vadd.f32 %v4225, %v4738
        %v4803 = vadd.f32 %v4226, %v4739
        %v4804 = vadd.f32 %v4227, %v4740
        %v4805 = vadd.f32 %v4228, %v4741
        %v4806 = vadd.f32 %v4229, %v4742
        %v4807 = vadd.f32 %v4230, %v4743
        %v4808 = vadd.f32 %v4231, %v4744
        %v4809 = vadd.f32 %v4232, %v4745
        %v4810 = vadd.f32 %v4233, %v4746
        %v4811 = vadd.f32 %v4234, %v4747
        %v4812 = vadd.f32 %v4235, %v4748
        %v4813 = vadd.f32 %v4236, %v4749
        %v4814 = vadd.f32 %v4237, %v4750
        %v4815 = vadd.f32 %v4238, %v4751
        %v4816 = vadd.f32 %v4239, %v4752
        %v4817 = vadd.f32 %v4240, %v4753
        %v4818 = vadd.f32 %v4241, %v4754
        %v4819 = vadd.f32 %v4242, %v4755
        %v4820 = vadd.f32 %v4243, %v4756
        %v4821 = vadd.f32 %v4244, %v4757
        %v4822 = vadd.f32 %v4245, %v4758
        %v4823 = vadd.f32 %v4246, %v4759
        %v4824 = vadd.f32 %v4247, %v4760
        %v4825 = vadd.f32 %v4248, %v4761
        %v4826 = vadd.f32 %v4249, %v4762
        %v4827 = vadd.f32 %v4250, %v4763
        %v4828 = vadd.f32 %v4251, %v4764
        %v4829 = vadd.f32 %v4252, %v4765
        %v4830 = vadd.f32 %v4253, %v4766
        %v4831 = vadd.f32 %v4254, %v4767
        %v4832 = vadd.f32 %v4255, %v4768
        %v4833 = vadd.f32 %v4256, %v4769
        %v4834 = vadd.f32 %v4257, %v4770
        %v4835 = vadd.f32 %v4258, %v4771
        %v4836 = vadd.f32 %v4259, %v4772
        %v4837 = vadd.f32 %v4260, %v4773
        %v4838 = vadd.f32 %v4261, %v4774
        %v4839 = vadd.f32 %v4262, %v4775
        %v4840 = vadd.f32 %v4263, %v4776
        %v4841 = vadd.f32 %v4264, %v4777
        %v4842 = vadd.f32 %v4265, %v4778
        %v4843 = vadd.f32 %v4266, %v4779
        %v4844 = vadd.f32 %v4267, %v4780
        %v4845 = vadd.f32 %v4268, %v4781
        %v4846 = vadd.f32 %v4269, %v4782
        %v4847 = vadd.f32 %v4270, %v4783
        %v4848 = vadd.f32 %v4271, %v4784
        %v4849 = vadd.f32 %v4272, %v4785
        %v4850 = vadd.f32 %v4273, %v4786
        %v4851 = vadd.f32 %v4274, %v4787
        %v4852 = vadd.f32 %v4275, %v4788
        %v4853 = vadd.f32 %v4276, %v4789
        %v4854 = vadd.f32 %v4277, %v4790
        %v4855 = vadd.f32 %v4278, %v4791
        %v4856 = vadd.f32 %v4279, %v4792
        %v4857 = vadd.f32 %v4280, %v4793
        %v4858 = vadd.f32 %v4281, %v4794
        %v4859 = vadd.f32 %v4282, %v4795
        %v4860 = vadd.f32 %v4283, %v4796
        %v4861 = vadd.f32 %v4284, %v4797
        %vm4862 = vcmp.eq.s32.totalorder %v3580, 2
        %vm4863 = vcmp.eq.s32.totalorder %v3582, 2
        %vm4864 = vcmp.eq.s32.totalorder %v3584, 2
        %vm4865 = vcmp.eq.s32.totalorder %v3586, 2
        %vm4866 = vcmp.eq.s32.totalorder %v3588, 2
        %vm4867 = vcmp.eq.s32.totalorder %v3590, 2
        %vm4868 = vcmp.eq.s32.totalorder %v3592, 2
        %vm4869 = vcmp.eq.s32.totalorder %v3594, 2
        %vm4870 = vcmp.eq.s32.totalorder %v3596, 2
        %vm4871 = vcmp.eq.s32.totalorder %v3598, 2
        %vm4872 = vcmp.eq.s32.totalorder %v3600, 2
        %vm4873 = vcmp.eq.s32.totalorder %v3602, 2
        %vm4874 = vcmp.eq.s32.totalorder %v3604, 2
        %vm4875 = vcmp.eq.s32.totalorder %v3606, 2
        %vm4876 = vcmp.eq.s32.totalorder %v3608, 2
        %vm4877 = vcmp.eq.s32.totalorder %v3610, 2
        %vm4878 = vcmp.eq.s32.totalorder %v3612, 2
        %vm4879 = vcmp.eq.s32.totalorder %v3614, 2
        %vm4880 = vcmp.eq.s32.totalorder %v3616, 2
        %vm4881 = vcmp.eq.s32.totalorder %v3618, 2
        %vm4882 = vcmp.eq.s32.totalorder %v3620, 2
        %vm4883 = vcmp.eq.s32.totalorder %v3622, 2
        %vm4884 = vcmp.eq.s32.totalorder %v3624, 2
        %vm4885 = vcmp.eq.s32.totalorder %v3626, 2
        %vm4886 = vcmp.eq.s32.totalorder %v3628, 2
        %vm4887 = vcmp.eq.s32.totalorder %v3630, 2
        %vm4888 = vcmp.eq.s32.totalorder %v3632, 2
        %vm4889 = vcmp.eq.s32.totalorder %v3634, 2
        %vm4890 = vcmp.eq.s32.totalorder %v3636, 2
        %vm4891 = vcmp.eq.s32.totalorder %v3638, 2
        %vm4892 = vcmp.eq.s32.totalorder %v3640, 2
        %vm4893 = vcmp.eq.s32.totalorder %v3642, 2
        %vm4894 = vcmp.eq.s32.totalorder %v3644, 2
        %vm4895 = vcmp.eq.s32.totalorder %v3646, 2
        %vm4896 = vcmp.eq.s32.totalorder %v3648, 2
        %vm4897 = vcmp.eq.s32.totalorder %v3650, 2
        %vm4898 = vcmp.eq.s32.totalorder %v3652, 2
        %vm4899 = vcmp.eq.s32.totalorder %v3654, 2
        %vm4900 = vcmp.eq.s32.totalorder %v3656, 2
        %vm4901 = vcmp.eq.s32.totalorder %v3658, 2
        %vm4902 = vcmp.eq.s32.totalorder %v3660, 2
        %vm4903 = vcmp.eq.s32.totalorder %v3662, 2
        %vm4904 = vcmp.eq.s32.totalorder %v3664, 2
        %vm4905 = vcmp.eq.s32.totalorder %v3666, 2
        %vm4906 = vcmp.eq.s32.totalorder %v3668, 2
        %vm4907 = vcmp.eq.s32.totalorder %v3670, 2
        %vm4908 = vcmp.eq.s32.totalorder %v3672, 2
        %vm4909 = vcmp.eq.s32.totalorder %v3674, 2
        %vm4910 = vcmp.eq.s32.totalorder %v3676, 2
        %vm4911 = vcmp.eq.s32.totalorder %v3678, 2
        %vm4912 = vcmp.eq.s32.totalorder %v3680, 2
        %vm4913 = vcmp.eq.s32.totalorder %v3682, 2
        %vm4914 = vcmp.eq.s32.totalorder %v3684, 2
        %vm4915 = vcmp.eq.s32.totalorder %v3686, 2
        %vm4916 = vcmp.eq.s32.totalorder %v3688, 2
        %vm4917 = vcmp.eq.s32.totalorder %v3690, 2
        %vm4918 = vcmp.eq.s32.totalorder %v3692, 2
        %vm4919 = vcmp.eq.s32.totalorder %v3694, 2
        %vm4920 = vcmp.eq.s32.totalorder %v3696, 2
        %vm4921 = vcmp.eq.s32.totalorder %v3698, 2
        %vm4922 = vcmp.eq.s32.totalorder %v3700, 2
        %vm4923 = vcmp.eq.s32.totalorder %v3702, 2
        %vm4924 = vcmp.eq.s32.totalorder %v3704, 2
        %vm4925 = vcmp.eq.s32.totalorder %v3706, 2
        %v4926 = vsel %vm4862, 1.0, 0.0
        %v4927 = vsel %vm4863, 1.0, 0.0
        %v4928 = vsel %vm4864, 1.0, 0.0
        %v4929 = vsel %vm4865, 1.0, 0.0
        %v4930 = vsel %vm4866, 1.0, 0.0
        %v4931 = vsel %vm4867, 1.0, 0.0
        %v4932 = vsel %vm4868, 1.0, 0.0
        %v4933 = vsel %vm4869, 1.0, 0.0
        %v4934 = vsel %vm4870, 1.0, 0.0
        %v4935 = vsel %vm4871, 1.0, 0.0
        %v4936 = vsel %vm4872, 1.0, 0.0
        %v4937 = vsel %vm4873, 1.0, 0.0
        %v4938 = vsel %vm4874, 1.0, 0.0
        %v4939 = vsel %vm4875, 1.0, 0.0
        %v4940 = vsel %vm4876, 1.0, 0.0
        %v4941 = vsel %vm4877, 1.0, 0.0
        %v4942 = vsel %vm4878, 1.0, 0.0
        %v4943 = vsel %vm4879, 1.0, 0.0
        %v4944 = vsel %vm4880, 1.0, 0.0
        %v4945 = vsel %vm4881, 1.0, 0.0
        %v4946 = vsel %vm4882, 1.0, 0.0
        %v4947 = vsel %vm4883, 1.0, 0.0
        %v4948 = vsel %vm4884, 1.0, 0.0
        %v4949 = vsel %vm4885, 1.0, 0.0
        %v4950 = vsel %vm4886, 1.0, 0.0
        %v4951 = vsel %vm4887, 1.0, 0.0
        %v4952 = vsel %vm4888, 1.0, 0.0
        %v4953 = vsel %vm4889, 1.0, 0.0
        %v4954 = vsel %vm4890, 1.0, 0.0
        %v4955 = vsel %vm4891, 1.0, 0.0
        %v4956 = vsel %vm4892, 1.0, 0.0
        %v4957 = vsel %vm4893, 1.0, 0.0
        %v4958 = vsel %vm4894, 1.0, 0.0
        %v4959 = vsel %vm4895, 1.0, 0.0
        %v4960 = vsel %vm4896, 1.0, 0.0
        %v4961 = vsel %vm4897, 1.0, 0.0
        %v4962 = vsel %vm4898, 1.0, 0.0
        %v4963 = vsel %vm4899, 1.0, 0.0
        %v4964 = vsel %vm4900, 1.0, 0.0
        %v4965 = vsel %vm4901, 1.0, 0.0
        %v4966 = vsel %vm4902, 1.0, 0.0
        %v4967 = vsel %vm4903, 1.0, 0.0
        %v4968 = vsel %vm4904, 1.0, 0.0
        %v4969 = vsel %vm4905, 1.0, 0.0
        %v4970 = vsel %vm4906, 1.0, 0.0
        %v4971 = vsel %vm4907, 1.0, 0.0
        %v4972 = vsel %vm4908, 1.0, 0.0
        %v4973 = vsel %vm4909, 1.0, 0.0
        %v4974 = vsel %vm4910, 1.0, 0.0
        %v4975 = vsel %vm4911, 1.0, 0.0
        %v4976 = vsel %vm4912, 1.0, 0.0
        %v4977 = vsel %vm4913, 1.0, 0.0
        %v4978 = vsel %vm4914, 1.0, 0.0
        %v4979 = vsel %vm4915, 1.0, 0.0
        %v4980 = vsel %vm4916, 1.0, 0.0
        %v4981 = vsel %vm4917, 1.0, 0.0
        %v4982 = vsel %vm4918, 1.0, 0.0
        %v4983 = vsel %vm4919, 1.0, 0.0
        %v4984 = vsel %vm4920, 1.0, 0.0
        %v4985 = vsel %vm4921, 1.0, 0.0
        %v4986 = vsel %vm4922, 1.0, 0.0
        %v4987 = vsel %vm4923, 1.0, 0.0
        %v4988 = vsel %vm4924, 1.0, 0.0
        %v4989 = vsel %vm4925, 1.0, 0.0
        %4991 = vset.pattern.permute.xlu0 1
        %4992 = vperm.xlu0 %4991, %v4926
        %v4993 = vpop.permute.xlu0 %4992
        %4996 = vset.pattern.permute.xlu0 1
        %4997 = vperm.xlu0 %4996, %v4927
        %v4998 = vpop.permute.xlu0 %4997
        %5001 = vset.pattern.permute.xlu0 1
        %5002 = vperm.xlu0 %5001, %v4928
        %v5003 = vpop.permute.xlu0 %5002
        %5006 = vset.pattern.permute.xlu0 1
        %5007 = vperm.xlu0 %5006, %v4929
        %v5008 = vpop.permute.xlu0 %5007
        %5011 = vset.pattern.permute.xlu0 1
        %5012 = vperm.xlu0 %5011, %v4930
        %v5013 = vpop.permute.xlu0 %5012
        %5016 = vset.pattern.permute.xlu0 1
        %5017 = vperm.xlu0 %5016, %v4931
        %v5018 = vpop.permute.xlu0 %5017
        %5021 = vset.pattern.permute.xlu0 1
        %5022 = vperm.xlu0 %5021, %v4932
        %v5023 = vpop.permute.xlu0 %5022
        %5026 = vset.pattern.permute.xlu0 1
        %5027 = vperm.xlu0 %5026, %v4933
        %v5028 = vpop.permute.xlu0 %5027
        %5031 = vset.pattern.permute.xlu0 1
        %5032 = vperm.xlu0 %5031, %v4934
        %v5033 = vpop.permute.xlu0 %5032
        %5036 = vset.pattern.permute.xlu0 1
        %5037 = vperm.xlu0 %5036, %v4935
        %v5038 = vpop.permute.xlu0 %5037
        %5041 = vset.pattern.permute.xlu0 1
        %5042 = vperm.xlu0 %5041, %v4936
        %v5043 = vpop.permute.xlu0 %5042
        %5046 = vset.pattern.permute.xlu0 1
        %5047 = vperm.xlu0 %5046, %v4937
        %v5048 = vpop.permute.xlu0 %5047
        %5051 = vset.pattern.permute.xlu0 1
        %5052 = vperm.xlu0 %5051, %v4938
        %v5053 = vpop.permute.xlu0 %5052
        %5056 = vset.pattern.permute.xlu0 1
        %5057 = vperm.xlu0 %5056, %v4939
        %v5058 = vpop.permute.xlu0 %5057
        %5061 = vset.pattern.permute.xlu0 1
        %5062 = vperm.xlu0 %5061, %v4940
        %v5063 = vpop.permute.xlu0 %5062
        %5066 = vset.pattern.permute.xlu0 1
        %5067 = vperm.xlu0 %5066, %v4941
        %v5068 = vpop.permute.xlu0 %5067
        %5071 = vset.pattern.permute.xlu0 1
        %5072 = vperm.xlu0 %5071, %v4942
        %v5073 = vpop.permute.xlu0 %5072
        %5076 = vset.pattern.permute.xlu0 1
        %5077 = vperm.xlu0 %5076, %v4943
        %v5078 = vpop.permute.xlu0 %5077
        %5081 = vset.pattern.permute.xlu0 1
        %5082 = vperm.xlu0 %5081, %v4944
        %v5083 = vpop.permute.xlu0 %5082
        %5086 = vset.pattern.permute.xlu0 1
        %5087 = vperm.xlu0 %5086, %v4945
        %v5088 = vpop.permute.xlu0 %5087
        %5091 = vset.pattern.permute.xlu0 1
        %5092 = vperm.xlu0 %5091, %v4946
        %v5093 = vpop.permute.xlu0 %5092
        %5096 = vset.pattern.permute.xlu0 1
        %5097 = vperm.xlu0 %5096, %v4947
        %v5098 = vpop.permute.xlu0 %5097
        %5101 = vset.pattern.permute.xlu0 1
        %5102 = vperm.xlu0 %5101, %v4948
        %v5103 = vpop.permute.xlu0 %5102
        %5106 = vset.pattern.permute.xlu0 1
        %5107 = vperm.xlu0 %5106, %v4949
        %v5108 = vpop.permute.xlu0 %5107
        %5111 = vset.pattern.permute.xlu0 1
        %5112 = vperm.xlu0 %5111, %v4950
        %v5113 = vpop.permute.xlu0 %5112
        %5116 = vset.pattern.permute.xlu0 1
        %5117 = vperm.xlu0 %5116, %v4951
        %v5118 = vpop.permute.xlu0 %5117
        %5121 = vset.pattern.permute.xlu0 1
        %5122 = vperm.xlu0 %5121, %v4952
        %v5123 = vpop.permute.xlu0 %5122
        %5126 = vset.pattern.permute.xlu0 1
        %5127 = vperm.xlu0 %5126, %v4953
        %v5128 = vpop.permute.xlu0 %5127
        %5131 = vset.pattern.permute.xlu0 1
        %5132 = vperm.xlu0 %5131, %v4954
        %v5133 = vpop.permute.xlu0 %5132
        %5136 = vset.pattern.permute.xlu0 1
        %5137 = vperm.xlu0 %5136, %v4955
        %v5138 = vpop.permute.xlu0 %5137
        %5141 = vset.pattern.permute.xlu0 1
        %5142 = vperm.xlu0 %5141, %v4956
        %v5143 = vpop.permute.xlu0 %5142
        %5146 = vset.pattern.permute.xlu0 1
        %5147 = vperm.xlu0 %5146, %v4957
        %v5148 = vpop.permute.xlu0 %5147
        %5151 = vset.pattern.permute.xlu0 1
        %5152 = vperm.xlu0 %5151, %v4958
        %v5153 = vpop.permute.xlu0 %5152
        %5156 = vset.pattern.permute.xlu0 1
        %5157 = vperm.xlu0 %5156, %v4959
        %v5158 = vpop.permute.xlu0 %5157
        %5161 = vset.pattern.permute.xlu0 1
        %5162 = vperm.xlu0 %5161, %v4960
        %v5163 = vpop.permute.xlu0 %5162
        %5166 = vset.pattern.permute.xlu0 1
        %5167 = vperm.xlu0 %5166, %v4961
        %v5168 = vpop.permute.xlu0 %5167
        %5171 = vset.pattern.permute.xlu0 1
        %5172 = vperm.xlu0 %5171, %v4962
        %v5173 = vpop.permute.xlu0 %5172
        %5176 = vset.pattern.permute.xlu0 1
        %5177 = vperm.xlu0 %5176, %v4963
        %v5178 = vpop.permute.xlu0 %5177
        %5181 = vset.pattern.permute.xlu0 1
        %5182 = vperm.xlu0 %5181, %v4964
        %v5183 = vpop.permute.xlu0 %5182
        %5186 = vset.pattern.permute.xlu0 1
        %5187 = vperm.xlu0 %5186, %v4965
        %v5188 = vpop.permute.xlu0 %5187
        %5191 = vset.pattern.permute.xlu0 1
        %5192 = vperm.xlu0 %5191, %v4966
        %v5193 = vpop.permute.xlu0 %5192
        %5196 = vset.pattern.permute.xlu0 1
        %5197 = vperm.xlu0 %5196, %v4967
        %v5198 = vpop.permute.xlu0 %5197
        %5201 = vset.pattern.permute.xlu0 1
        %5202 = vperm.xlu0 %5201, %v4968
        %v5203 = vpop.permute.xlu0 %5202
        %5206 = vset.pattern.permute.xlu0 1
        %5207 = vperm.xlu0 %5206, %v4969
        %v5208 = vpop.permute.xlu0 %5207
        %5211 = vset.pattern.permute.xlu0 1
        %5212 = vperm.xlu0 %5211, %v4970
        %v5213 = vpop.permute.xlu0 %5212
        %5216 = vset.pattern.permute.xlu0 1
        %5217 = vperm.xlu0 %5216, %v4971
        %v5218 = vpop.permute.xlu0 %5217
        %5221 = vset.pattern.permute.xlu0 1
        %5222 = vperm.xlu0 %5221, %v4972
        %v5223 = vpop.permute.xlu0 %5222
        %5226 = vset.pattern.permute.xlu0 1
        %5227 = vperm.xlu0 %5226, %v4973
        %v5228 = vpop.permute.xlu0 %5227
        %5231 = vset.pattern.permute.xlu0 1
        %5232 = vperm.xlu0 %5231, %v4974
        %v5233 = vpop.permute.xlu0 %5232
        %5236 = vset.pattern.permute.xlu0 1
        %5237 = vperm.xlu0 %5236, %v4975
        %v5238 = vpop.permute.xlu0 %5237
        %5241 = vset.pattern.permute.xlu0 1
        %5242 = vperm.xlu0 %5241, %v4976
        %v5243 = vpop.permute.xlu0 %5242
        %5246 = vset.pattern.permute.xlu0 1
        %5247 = vperm.xlu0 %5246, %v4977
        %v5248 = vpop.permute.xlu0 %5247
        %5251 = vset.pattern.permute.xlu0 1
        %5252 = vperm.xlu0 %5251, %v4978
        %v5253 = vpop.permute.xlu0 %5252
        %5256 = vset.pattern.permute.xlu0 1
        %5257 = vperm.xlu0 %5256, %v4979
        %v5258 = vpop.permute.xlu0 %5257
        %5261 = vset.pattern.permute.xlu0 1
        %5262 = vperm.xlu0 %5261, %v4980
        %v5263 = vpop.permute.xlu0 %5262
        %5266 = vset.pattern.permute.xlu0 1
        %5267 = vperm.xlu0 %5266, %v4981
        %v5268 = vpop.permute.xlu0 %5267
        %5271 = vset.pattern.permute.xlu0 1
        %5272 = vperm.xlu0 %5271, %v4982
        %v5273 = vpop.permute.xlu0 %5272
        %5276 = vset.pattern.permute.xlu0 1
        %5277 = vperm.xlu0 %5276, %v4983
        %v5278 = vpop.permute.xlu0 %5277
        %5281 = vset.pattern.permute.xlu0 1
        %5282 = vperm.xlu0 %5281, %v4984
        %v5283 = vpop.permute.xlu0 %5282
        %5286 = vset.pattern.permute.xlu0 1
        %5287 = vperm.xlu0 %5286, %v4985
        %v5288 = vpop.permute.xlu0 %5287
        %5291 = vset.pattern.permute.xlu0 1
        %5292 = vperm.xlu0 %5291, %v4986
        %v5293 = vpop.permute.xlu0 %5292
        %5296 = vset.pattern.permute.xlu0 1
        %5297 = vperm.xlu0 %5296, %v4987
        %v5298 = vpop.permute.xlu0 %5297
        %5301 = vset.pattern.permute.xlu0 1
        %5302 = vperm.xlu0 %5301, %v4988
        %v5303 = vpop.permute.xlu0 %5302
        %5306 = vset.pattern.permute.xlu0 1
        %5307 = vperm.xlu0 %5306, %v4989
        %v5308 = vpop.permute.xlu0 %5307
        %v5310 = vperm.slane %v3707, 2
        %v5311 = vmul.f32 %v4993, %v5310
        %v5312 = vmul.f32 %v4998, %v5310
        %v5313 = vmul.f32 %v5003, %v5310
        %v5314 = vmul.f32 %v5008, %v5310
        %v5315 = vmul.f32 %v5013, %v5310
        %v5316 = vmul.f32 %v5018, %v5310
        %v5317 = vmul.f32 %v5023, %v5310
        %v5318 = vmul.f32 %v5028, %v5310
        %v5319 = vmul.f32 %v5033, %v5310
        %v5320 = vmul.f32 %v5038, %v5310
        %v5321 = vmul.f32 %v5043, %v5310
        %v5322 = vmul.f32 %v5048, %v5310
        %v5323 = vmul.f32 %v5053, %v5310
        %v5324 = vmul.f32 %v5058, %v5310
        %v5325 = vmul.f32 %v5063, %v5310
        %v5326 = vmul.f32 %v5068, %v5310
        %v5327 = vmul.f32 %v5073, %v5310
        %v5328 = vmul.f32 %v5078, %v5310
        %v5329 = vmul.f32 %v5083, %v5310
        %v5330 = vmul.f32 %v5088, %v5310
        %v5331 = vmul.f32 %v5093, %v5310
        %v5332 = vmul.f32 %v5098, %v5310
        %v5333 = vmul.f32 %v5103, %v5310
        %v5334 = vmul.f32 %v5108, %v5310
        %v5335 = vmul.f32 %v5113, %v5310
        %v5336 = vmul.f32 %v5118, %v5310
        %v5337 = vmul.f32 %v5123, %v5310
        %v5338 = vmul.f32 %v5128, %v5310
        %v5339 = vmul.f32 %v5133, %v5310
        %v5340 = vmul.f32 %v5138, %v5310
        %v5341 = vmul.f32 %v5143, %v5310
        %v5342 = vmul.f32 %v5148, %v5310
        %v5343 = vmul.f32 %v5153, %v5310
        %v5344 = vmul.f32 %v5158, %v5310
        %v5345 = vmul.f32 %v5163, %v5310
        %v5346 = vmul.f32 %v5168, %v5310
        %v5347 = vmul.f32 %v5173, %v5310
        %v5348 = vmul.f32 %v5178, %v5310
        %v5349 = vmul.f32 %v5183, %v5310
        %v5350 = vmul.f32 %v5188, %v5310
        %v5351 = vmul.f32 %v5193, %v5310
        %v5352 = vmul.f32 %v5198, %v5310
        %v5353 = vmul.f32 %v5203, %v5310
        %v5354 = vmul.f32 %v5208, %v5310
        %v5355 = vmul.f32 %v5213, %v5310
        %v5356 = vmul.f32 %v5218, %v5310
        %v5357 = vmul.f32 %v5223, %v5310
        %v5358 = vmul.f32 %v5228, %v5310
        %v5359 = vmul.f32 %v5233, %v5310
        %v5360 = vmul.f32 %v5238, %v5310
        %v5361 = vmul.f32 %v5243, %v5310
        %v5362 = vmul.f32 %v5248, %v5310
        %v5363 = vmul.f32 %v5253, %v5310
        %v5364 = vmul.f32 %v5258, %v5310
        %v5365 = vmul.f32 %v5263, %v5310
        %v5366 = vmul.f32 %v5268, %v5310
        %v5367 = vmul.f32 %v5273, %v5310
        %v5368 = vmul.f32 %v5278, %v5310
        %v5369 = vmul.f32 %v5283, %v5310
        %v5370 = vmul.f32 %v5288, %v5310
        %v5371 = vmul.f32 %v5293, %v5310
        %v5372 = vmul.f32 %v5298, %v5310
        %v5373 = vmul.f32 %v5303, %v5310
        %v5374 = vmul.f32 %v5308, %v5310
        %v5375 = vadd.f32 %v4798, %v5311
        %v5376 = vadd.f32 %v4799, %v5312
        %v5377 = vadd.f32 %v4800, %v5313
        %v5378 = vadd.f32 %v4801, %v5314
        %v5379 = vadd.f32 %v4802, %v5315
        %v5380 = vadd.f32 %v4803, %v5316
        %v5381 = vadd.f32 %v4804, %v5317
        %v5382 = vadd.f32 %v4805, %v5318
        %v5383 = vadd.f32 %v4806, %v5319
        %v5384 = vadd.f32 %v4807, %v5320
        %v5385 = vadd.f32 %v4808, %v5321
        %v5386 = vadd.f32 %v4809, %v5322
        %v5387 = vadd.f32 %v4810, %v5323
        %v5388 = vadd.f32 %v4811, %v5324
        %v5389 = vadd.f32 %v4812, %v5325
        %v5390 = vadd.f32 %v4813, %v5326
        %v5391 = vadd.f32 %v4814, %v5327
        %v5392 = vadd.f32 %v4815, %v5328
        %v5393 = vadd.f32 %v4816, %v5329
        %v5394 = vadd.f32 %v4817, %v5330
        %v5395 = vadd.f32 %v4818, %v5331
        %v5396 = vadd.f32 %v4819, %v5332
        %v5397 = vadd.f32 %v4820, %v5333
        %v5398 = vadd.f32 %v4821, %v5334
        %v5399 = vadd.f32 %v4822, %v5335
        %v5400 = vadd.f32 %v4823, %v5336
        %v5401 = vadd.f32 %v4824, %v5337
        %v5402 = vadd.f32 %v4825, %v5338
        %v5403 = vadd.f32 %v4826, %v5339
        %v5404 = vadd.f32 %v4827, %v5340
        %v5405 = vadd.f32 %v4828, %v5341
        %v5406 = vadd.f32 %v4829, %v5342
        %v5407 = vadd.f32 %v4830, %v5343
        %v5408 = vadd.f32 %v4831, %v5344
        %v5409 = vadd.f32 %v4832, %v5345
        %v5410 = vadd.f32 %v4833, %v5346
        %v5411 = vadd.f32 %v4834, %v5347
        %v5412 = vadd.f32 %v4835, %v5348
        %v5413 = vadd.f32 %v4836, %v5349
        %v5414 = vadd.f32 %v4837, %v5350
        %v5415 = vadd.f32 %v4838, %v5351
        %v5416 = vadd.f32 %v4839, %v5352
        %v5417 = vadd.f32 %v4840, %v5353
        %v5418 = vadd.f32 %v4841, %v5354
        %v5419 = vadd.f32 %v4842, %v5355
        %v5420 = vadd.f32 %v4843, %v5356
        %v5421 = vadd.f32 %v4844, %v5357
        %v5422 = vadd.f32 %v4845, %v5358
        %v5423 = vadd.f32 %v4846, %v5359
        %v5424 = vadd.f32 %v4847, %v5360
        %v5425 = vadd.f32 %v4848, %v5361
        %v5426 = vadd.f32 %v4849, %v5362
        %v5427 = vadd.f32 %v4850, %v5363
        %v5428 = vadd.f32 %v4851, %v5364
        %v5429 = vadd.f32 %v4852, %v5365
        %v5430 = vadd.f32 %v4853, %v5366
        %v5431 = vadd.f32 %v4854, %v5367
        %v5432 = vadd.f32 %v4855, %v5368
        %v5433 = vadd.f32 %v4856, %v5369
        %v5434 = vadd.f32 %v4857, %v5370
        %v5435 = vadd.f32 %v4858, %v5371
        %v5436 = vadd.f32 %v4859, %v5372
        %v5437 = vadd.f32 %v4860, %v5373
        %v5438 = vadd.f32 %v4861, %v5374
        %vm5439 = vcmp.eq.s32.totalorder %v3580, 3
        %vm5440 = vcmp.eq.s32.totalorder %v3582, 3
        %vm5441 = vcmp.eq.s32.totalorder %v3584, 3
        %vm5442 = vcmp.eq.s32.totalorder %v3586, 3
        %vm5443 = vcmp.eq.s32.totalorder %v3588, 3
        %vm5444 = vcmp.eq.s32.totalorder %v3590, 3
        %vm5445 = vcmp.eq.s32.totalorder %v3592, 3
        %vm5446 = vcmp.eq.s32.totalorder %v3594, 3
        %vm5447 = vcmp.eq.s32.totalorder %v3596, 3
        %vm5448 = vcmp.eq.s32.totalorder %v3598, 3
        %vm5449 = vcmp.eq.s32.totalorder %v3600, 3
        %vm5450 = vcmp.eq.s32.totalorder %v3602, 3
        %vm5451 = vcmp.eq.s32.totalorder %v3604, 3
        %vm5452 = vcmp.eq.s32.totalorder %v3606, 3
        %vm5453 = vcmp.eq.s32.totalorder %v3608, 3
        %vm5454 = vcmp.eq.s32.totalorder %v3610, 3
        %vm5455 = vcmp.eq.s32.totalorder %v3612, 3
        %vm5456 = vcmp.eq.s32.totalorder %v3614, 3
        %vm5457 = vcmp.eq.s32.totalorder %v3616, 3
        %vm5458 = vcmp.eq.s32.totalorder %v3618, 3
        %vm5459 = vcmp.eq.s32.totalorder %v3620, 3
        %vm5460 = vcmp.eq.s32.totalorder %v3622, 3
        %vm5461 = vcmp.eq.s32.totalorder %v3624, 3
        %vm5462 = vcmp.eq.s32.totalorder %v3626, 3
        %vm5463 = vcmp.eq.s32.totalorder %v3628, 3
        %vm5464 = vcmp.eq.s32.totalorder %v3630, 3
        %vm5465 = vcmp.eq.s32.totalorder %v3632, 3
        %vm5466 = vcmp.eq.s32.totalorder %v3634, 3
        %vm5467 = vcmp.eq.s32.totalorder %v3636, 3
        %vm5468 = vcmp.eq.s32.totalorder %v3638, 3
        %vm5469 = vcmp.eq.s32.totalorder %v3640, 3
        %vm5470 = vcmp.eq.s32.totalorder %v3642, 3
        %vm5471 = vcmp.eq.s32.totalorder %v3644, 3
        %vm5472 = vcmp.eq.s32.totalorder %v3646, 3
        %vm5473 = vcmp.eq.s32.totalorder %v3648, 3
        %vm5474 = vcmp.eq.s32.totalorder %v3650, 3
        %vm5475 = vcmp.eq.s32.totalorder %v3652, 3
        %vm5476 = vcmp.eq.s32.totalorder %v3654, 3
        %vm5477 = vcmp.eq.s32.totalorder %v3656, 3
        %vm5478 = vcmp.eq.s32.totalorder %v3658, 3
        %vm5479 = vcmp.eq.s32.totalorder %v3660, 3
        %vm5480 = vcmp.eq.s32.totalorder %v3662, 3
        %vm5481 = vcmp.eq.s32.totalorder %v3664, 3
        %vm5482 = vcmp.eq.s32.totalorder %v3666, 3
        %vm5483 = vcmp.eq.s32.totalorder %v3668, 3
        %vm5484 = vcmp.eq.s32.totalorder %v3670, 3
        %vm5485 = vcmp.eq.s32.totalorder %v3672, 3
        %vm5486 = vcmp.eq.s32.totalorder %v3674, 3
        %vm5487 = vcmp.eq.s32.totalorder %v3676, 3
        %vm5488 = vcmp.eq.s32.totalorder %v3678, 3
        %vm5489 = vcmp.eq.s32.totalorder %v3680, 3
        %vm5490 = vcmp.eq.s32.totalorder %v3682, 3
        %vm5491 = vcmp.eq.s32.totalorder %v3684, 3
        %vm5492 = vcmp.eq.s32.totalorder %v3686, 3
        %vm5493 = vcmp.eq.s32.totalorder %v3688, 3
        %vm5494 = vcmp.eq.s32.totalorder %v3690, 3
        %vm5495 = vcmp.eq.s32.totalorder %v3692, 3
        %vm5496 = vcmp.eq.s32.totalorder %v3694, 3
        %vm5497 = vcmp.eq.s32.totalorder %v3696, 3
        %vm5498 = vcmp.eq.s32.totalorder %v3698, 3
        %vm5499 = vcmp.eq.s32.totalorder %v3700, 3
        %vm5500 = vcmp.eq.s32.totalorder %v3702, 3
        %vm5501 = vcmp.eq.s32.totalorder %v3704, 3
        %vm5502 = vcmp.eq.s32.totalorder %v3706, 3
        %v5503 = vsel %vm5439, 1.0, 0.0
        %v5504 = vsel %vm5440, 1.0, 0.0
        %v5505 = vsel %vm5441, 1.0, 0.0
        %v5506 = vsel %vm5442, 1.0, 0.0
        %v5507 = vsel %vm5443, 1.0, 0.0
        %v5508 = vsel %vm5444, 1.0, 0.0
        %v5509 = vsel %vm5445, 1.0, 0.0
        %v5510 = vsel %vm5446, 1.0, 0.0
        %v5511 = vsel %vm5447, 1.0, 0.0
        %v5512 = vsel %vm5448, 1.0, 0.0
        %v5513 = vsel %vm5449, 1.0, 0.0
        %v5514 = vsel %vm5450, 1.0, 0.0
        %v5515 = vsel %vm5451, 1.0, 0.0
        %v5516 = vsel %vm5452, 1.0, 0.0
        %v5517 = vsel %vm5453, 1.0, 0.0
        %v5518 = vsel %vm5454, 1.0, 0.0
        %v5519 = vsel %vm5455, 1.0, 0.0
        %v5520 = vsel %vm5456, 1.0, 0.0
        %v5521 = vsel %vm5457, 1.0, 0.0
        %v5522 = vsel %vm5458, 1.0, 0.0
        %v5523 = vsel %vm5459, 1.0, 0.0
        %v5524 = vsel %vm5460, 1.0, 0.0
        %v5525 = vsel %vm5461, 1.0, 0.0
        %v5526 = vsel %vm5462, 1.0, 0.0
        %v5527 = vsel %vm5463, 1.0, 0.0
        %v5528 = vsel %vm5464, 1.0, 0.0
        %v5529 = vsel %vm5465, 1.0, 0.0
        %v5530 = vsel %vm5466, 1.0, 0.0
        %v5531 = vsel %vm5467, 1.0, 0.0
        %v5532 = vsel %vm5468, 1.0, 0.0
        %v5533 = vsel %vm5469, 1.0, 0.0
        %v5534 = vsel %vm5470, 1.0, 0.0
        %v5535 = vsel %vm5471, 1.0, 0.0
        %v5536 = vsel %vm5472, 1.0, 0.0
        %v5537 = vsel %vm5473, 1.0, 0.0
        %v5538 = vsel %vm5474, 1.0, 0.0
        %v5539 = vsel %vm5475, 1.0, 0.0
        %v5540 = vsel %vm5476, 1.0, 0.0
        %v5541 = vsel %vm5477, 1.0, 0.0
        %v5542 = vsel %vm5478, 1.0, 0.0
        %v5543 = vsel %vm5479, 1.0, 0.0
        %v5544 = vsel %vm5480, 1.0, 0.0
        %v5545 = vsel %vm5481, 1.0, 0.0
        %v5546 = vsel %vm5482, 1.0, 0.0
        %v5547 = vsel %vm5483, 1.0, 0.0
        %v5548 = vsel %vm5484, 1.0, 0.0
        %v5549 = vsel %vm5485, 1.0, 0.0
        %v5550 = vsel %vm5486, 1.0, 0.0
        %v5551 = vsel %vm5487, 1.0, 0.0
        %v5552 = vsel %vm5488, 1.0, 0.0
        %v5553 = vsel %vm5489, 1.0, 0.0
        %v5554 = vsel %vm5490, 1.0, 0.0
        %v5555 = vsel %vm5491, 1.0, 0.0
        %v5556 = vsel %vm5492, 1.0, 0.0
        %v5557 = vsel %vm5493, 1.0, 0.0
        %v5558 = vsel %vm5494, 1.0, 0.0
        %v5559 = vsel %vm5495, 1.0, 0.0
        %v5560 = vsel %vm5496, 1.0, 0.0
        %v5561 = vsel %vm5497, 1.0, 0.0
        %v5562 = vsel %vm5498, 1.0, 0.0
        %v5563 = vsel %vm5499, 1.0, 0.0
        %v5564 = vsel %vm5500, 1.0, 0.0
        %v5565 = vsel %vm5501, 1.0, 0.0
        %v5566 = vsel %vm5502, 1.0, 0.0
        %5568 = vset.pattern.permute.xlu0 1
        %5569 = vperm.xlu0 %5568, %v5503
        %v5570 = vpop.permute.xlu0 %5569
        %5573 = vset.pattern.permute.xlu0 1
        %5574 = vperm.xlu0 %5573, %v5504
        %v5575 = vpop.permute.xlu0 %5574
        %5578 = vset.pattern.permute.xlu0 1
        %5579 = vperm.xlu0 %5578, %v5505
        %v5580 = vpop.permute.xlu0 %5579
        %5583 = vset.pattern.permute.xlu0 1
        %5584 = vperm.xlu0 %5583, %v5506
        %v5585 = vpop.permute.xlu0 %5584
        %5588 = vset.pattern.permute.xlu0 1
        %5589 = vperm.xlu0 %5588, %v5507
        %v5590 = vpop.permute.xlu0 %5589
        %5593 = vset.pattern.permute.xlu0 1
        %5594 = vperm.xlu0 %5593, %v5508
        %v5595 = vpop.permute.xlu0 %5594
        %5598 = vset.pattern.permute.xlu0 1
        %5599 = vperm.xlu0 %5598, %v5509
        %v5600 = vpop.permute.xlu0 %5599
        %5603 = vset.pattern.permute.xlu0 1
        %5604 = vperm.xlu0 %5603, %v5510
        %v5605 = vpop.permute.xlu0 %5604
        %5608 = vset.pattern.permute.xlu0 1
        %5609 = vperm.xlu0 %5608, %v5511
        %v5610 = vpop.permute.xlu0 %5609
        %5613 = vset.pattern.permute.xlu0 1
        %5614 = vperm.xlu0 %5613, %v5512
        %v5615 = vpop.permute.xlu0 %5614
        %5618 = vset.pattern.permute.xlu0 1
        %5619 = vperm.xlu0 %5618, %v5513
        %v5620 = vpop.permute.xlu0 %5619
        %5623 = vset.pattern.permute.xlu0 1
        %5624 = vperm.xlu0 %5623, %v5514
        %v5625 = vpop.permute.xlu0 %5624
        %5628 = vset.pattern.permute.xlu0 1
        %5629 = vperm.xlu0 %5628, %v5515
        %v5630 = vpop.permute.xlu0 %5629
        %5633 = vset.pattern.permute.xlu0 1
        %5634 = vperm.xlu0 %5633, %v5516
        %v5635 = vpop.permute.xlu0 %5634
        %5638 = vset.pattern.permute.xlu0 1
        %5639 = vperm.xlu0 %5638, %v5517
        %v5640 = vpop.permute.xlu0 %5639
        %5643 = vset.pattern.permute.xlu0 1
        %5644 = vperm.xlu0 %5643, %v5518
        %v5645 = vpop.permute.xlu0 %5644
        %5648 = vset.pattern.permute.xlu0 1
        %5649 = vperm.xlu0 %5648, %v5519
        %v5650 = vpop.permute.xlu0 %5649
        %5653 = vset.pattern.permute.xlu0 1
        %5654 = vperm.xlu0 %5653, %v5520
        %v5655 = vpop.permute.xlu0 %5654
        %5658 = vset.pattern.permute.xlu0 1
        %5659 = vperm.xlu0 %5658, %v5521
        %v5660 = vpop.permute.xlu0 %5659
        %5663 = vset.pattern.permute.xlu0 1
        %5664 = vperm.xlu0 %5663, %v5522
        %v5665 = vpop.permute.xlu0 %5664
        %5668 = vset.pattern.permute.xlu0 1
        %5669 = vperm.xlu0 %5668, %v5523
        %v5670 = vpop.permute.xlu0 %5669
        %5673 = vset.pattern.permute.xlu0 1
        %5674 = vperm.xlu0 %5673, %v5524
        %v5675 = vpop.permute.xlu0 %5674
        %5678 = vset.pattern.permute.xlu0 1
        %5679 = vperm.xlu0 %5678, %v5525
        %v5680 = vpop.permute.xlu0 %5679
        %5683 = vset.pattern.permute.xlu0 1
        %5684 = vperm.xlu0 %5683, %v5526
        %v5685 = vpop.permute.xlu0 %5684
        %5688 = vset.pattern.permute.xlu0 1
        %5689 = vperm.xlu0 %5688, %v5527
        %v5690 = vpop.permute.xlu0 %5689
        %5693 = vset.pattern.permute.xlu0 1
        %5694 = vperm.xlu0 %5693, %v5528
        %v5695 = vpop.permute.xlu0 %5694
        %5698 = vset.pattern.permute.xlu0 1
        %5699 = vperm.xlu0 %5698, %v5529
        %v5700 = vpop.permute.xlu0 %5699
        %5703 = vset.pattern.permute.xlu0 1
        %5704 = vperm.xlu0 %5703, %v5530
        %v5705 = vpop.permute.xlu0 %5704
        %5708 = vset.pattern.permute.xlu0 1
        %5709 = vperm.xlu0 %5708, %v5531
        %v5710 = vpop.permute.xlu0 %5709
        %5713 = vset.pattern.permute.xlu0 1
        %5714 = vperm.xlu0 %5713, %v5532
        %v5715 = vpop.permute.xlu0 %5714
        %5718 = vset.pattern.permute.xlu0 1
        %5719 = vperm.xlu0 %5718, %v5533
        %v5720 = vpop.permute.xlu0 %5719
        %5723 = vset.pattern.permute.xlu0 1
        %5724 = vperm.xlu0 %5723, %v5534
        %v5725 = vpop.permute.xlu0 %5724
        %5728 = vset.pattern.permute.xlu0 1
        %5729 = vperm.xlu0 %5728, %v5535
        %v5730 = vpop.permute.xlu0 %5729
        %5733 = vset.pattern.permute.xlu0 1
        %5734 = vperm.xlu0 %5733, %v5536
        %v5735 = vpop.permute.xlu0 %5734
        %5738 = vset.pattern.permute.xlu0 1
        %5739 = vperm.xlu0 %5738, %v5537
        %v5740 = vpop.permute.xlu0 %5739
        %5743 = vset.pattern.permute.xlu0 1
        %5744 = vperm.xlu0 %5743, %v5538
        %v5745 = vpop.permute.xlu0 %5744
        %5748 = vset.pattern.permute.xlu0 1
        %5749 = vperm.xlu0 %5748, %v5539
        %v5750 = vpop.permute.xlu0 %5749
        %5753 = vset.pattern.permute.xlu0 1
        %5754 = vperm.xlu0 %5753, %v5540
        %v5755 = vpop.permute.xlu0 %5754
        %5758 = vset.pattern.permute.xlu0 1
        %5759 = vperm.xlu0 %5758, %v5541
        %v5760 = vpop.permute.xlu0 %5759
        %5763 = vset.pattern.permute.xlu0 1
        %5764 = vperm.xlu0 %5763, %v5542
        %v5765 = vpop.permute.xlu0 %5764
        %5768 = vset.pattern.permute.xlu0 1
        %5769 = vperm.xlu0 %5768, %v5543
        %v5770 = vpop.permute.xlu0 %5769
        %5773 = vset.pattern.permute.xlu0 1
        %5774 = vperm.xlu0 %5773, %v5544
        %v5775 = vpop.permute.xlu0 %5774
        %5778 = vset.pattern.permute.xlu0 1
        %5779 = vperm.xlu0 %5778, %v5545
        %v5780 = vpop.permute.xlu0 %5779
        %5783 = vset.pattern.permute.xlu0 1
        %5784 = vperm.xlu0 %5783, %v5546
        %v5785 = vpop.permute.xlu0 %5784
        %5788 = vset.pattern.permute.xlu0 1
        %5789 = vperm.xlu0 %5788, %v5547
        %v5790 = vpop.permute.xlu0 %5789
        %5793 = vset.pattern.permute.xlu0 1
        %5794 = vperm.xlu0 %5793, %v5548
        %v5795 = vpop.permute.xlu0 %5794
        %5798 = vset.pattern.permute.xlu0 1
        %5799 = vperm.xlu0 %5798, %v5549
        %v5800 = vpop.permute.xlu0 %5799
        %5803 = vset.pattern.permute.xlu0 1
        %5804 = vperm.xlu0 %5803, %v5550
        %v5805 = vpop.permute.xlu0 %5804
        %5808 = vset.pattern.permute.xlu0 1
        %5809 = vperm.xlu0 %5808, %v5551
        %v5810 = vpop.permute.xlu0 %5809
        %5813 = vset.pattern.permute.xlu0 1
        %5814 = vperm.xlu0 %5813, %v5552
        %v5815 = vpop.permute.xlu0 %5814
        %5818 = vset.pattern.permute.xlu0 1
        %5819 = vperm.xlu0 %5818, %v5553
        %v5820 = vpop.permute.xlu0 %5819
        %5823 = vset.pattern.permute.xlu0 1
        %5824 = vperm.xlu0 %5823, %v5554
        %v5825 = vpop.permute.xlu0 %5824
        %5828 = vset.pattern.permute.xlu0 1
        %5829 = vperm.xlu0 %5828, %v5555
        %v5830 = vpop.permute.xlu0 %5829
        %5833 = vset.pattern.permute.xlu0 1
        %5834 = vperm.xlu0 %5833, %v5556
        %v5835 = vpop.permute.xlu0 %5834
        %5838 = vset.pattern.permute.xlu0 1
        %5839 = vperm.xlu0 %5838, %v5557
        %v5840 = vpop.permute.xlu0 %5839
        %5843 = vset.pattern.permute.xlu0 1
        %5844 = vperm.xlu0 %5843, %v5558
        %v5845 = vpop.permute.xlu0 %5844
        %5848 = vset.pattern.permute.xlu0 1
        %5849 = vperm.xlu0 %5848, %v5559
        %v5850 = vpop.permute.xlu0 %5849
        %5853 = vset.pattern.permute.xlu0 1
        %5854 = vperm.xlu0 %5853, %v5560
        %v5855 = vpop.permute.xlu0 %5854
        %5858 = vset.pattern.permute.xlu0 1
        %5859 = vperm.xlu0 %5858, %v5561
        %v5860 = vpop.permute.xlu0 %5859
        %5863 = vset.pattern.permute.xlu0 1
        %5864 = vperm.xlu0 %5863, %v5562
        %v5865 = vpop.permute.xlu0 %5864
        %5868 = vset.pattern.permute.xlu0 1
        %5869 = vperm.xlu0 %5868, %v5563
        %v5870 = vpop.permute.xlu0 %5869
        %5873 = vset.pattern.permute.xlu0 1
        %5874 = vperm.xlu0 %5873, %v5564
        %v5875 = vpop.permute.xlu0 %5874
        %5878 = vset.pattern.permute.xlu0 1
        %5879 = vperm.xlu0 %5878, %v5565
        %v5880 = vpop.permute.xlu0 %5879
        %5883 = vset.pattern.permute.xlu0 1
        %5884 = vperm.xlu0 %5883, %v5566
        %v5885 = vpop.permute.xlu0 %5884
        %v5887 = vperm.slane %v3707, 3
        %v5888 = vmul.f32 %v5570, %v5887
        %v5889 = vmul.f32 %v5575, %v5887
        %v5890 = vmul.f32 %v5580, %v5887
        %v5891 = vmul.f32 %v5585, %v5887
        %v5892 = vmul.f32 %v5590, %v5887
        %v5893 = vmul.f32 %v5595, %v5887
        %v5894 = vmul.f32 %v5600, %v5887
        %v5895 = vmul.f32 %v5605, %v5887
        %v5896 = vmul.f32 %v5610, %v5887
        %v5897 = vmul.f32 %v5615, %v5887
        %v5898 = vmul.f32 %v5620, %v5887
        %v5899 = vmul.f32 %v5625, %v5887
        %v5900 = vmul.f32 %v5630, %v5887
        %v5901 = vmul.f32 %v5635, %v5887
        %v5902 = vmul.f32 %v5640, %v5887
        %v5903 = vmul.f32 %v5645, %v5887
        %v5904 = vmul.f32 %v5650, %v5887
        %v5905 = vmul.f32 %v5655, %v5887
        %v5906 = vmul.f32 %v5660, %v5887
        %v5907 = vmul.f32 %v5665, %v5887
        %v5908 = vmul.f32 %v5670, %v5887
        %v5909 = vmul.f32 %v5675, %v5887
        %v5910 = vmul.f32 %v5680, %v5887
        %v5911 = vmul.f32 %v5685, %v5887
        %v5912 = vmul.f32 %v5690, %v5887
        %v5913 = vmul.f32 %v5695, %v5887
        %v5914 = vmul.f32 %v5700, %v5887
        %v5915 = vmul.f32 %v5705, %v5887
        %v5916 = vmul.f32 %v5710, %v5887
        %v5917 = vmul.f32 %v5715, %v5887
        %v5918 = vmul.f32 %v5720, %v5887
        %v5919 = vmul.f32 %v5725, %v5887
        %v5920 = vmul.f32 %v5730, %v5887
        %v5921 = vmul.f32 %v5735, %v5887
        %v5922 = vmul.f32 %v5740, %v5887
        %v5923 = vmul.f32 %v5745, %v5887
        %v5924 = vmul.f32 %v5750, %v5887
        %v5925 = vmul.f32 %v5755, %v5887
        %v5926 = vmul.f32 %v5760, %v5887
        %v5927 = vmul.f32 %v5765, %v5887
        %v5928 = vmul.f32 %v5770, %v5887
        %v5929 = vmul.f32 %v5775, %v5887
        %v5930 = vmul.f32 %v5780, %v5887
        %v5931 = vmul.f32 %v5785, %v5887
        %v5932 = vmul.f32 %v5790, %v5887
        %v5933 = vmul.f32 %v5795, %v5887
        %v5934 = vmul.f32 %v5800, %v5887
        %v5935 = vmul.f32 %v5805, %v5887
        %v5936 = vmul.f32 %v5810, %v5887
        %v5937 = vmul.f32 %v5815, %v5887
        %v5938 = vmul.f32 %v5820, %v5887
        %v5939 = vmul.f32 %v5825, %v5887
        %v5940 = vmul.f32 %v5830, %v5887
        %v5941 = vmul.f32 %v5835, %v5887
        %v5942 = vmul.f32 %v5840, %v5887
        %v5943 = vmul.f32 %v5845, %v5887
        %v5944 = vmul.f32 %v5850, %v5887
        %v5945 = vmul.f32 %v5855, %v5887
        %v5946 = vmul.f32 %v5860, %v5887
        %v5947 = vmul.f32 %v5865, %v5887
        %v5948 = vmul.f32 %v5870, %v5887
        %v5949 = vmul.f32 %v5875, %v5887
        %v5950 = vmul.f32 %v5880, %v5887
        %v5951 = vmul.f32 %v5885, %v5887
        %v5952 = vadd.f32 %v5375, %v5888
        %v5953 = vadd.f32 %v5376, %v5889
        %v5954 = vadd.f32 %v5377, %v5890
        %v5955 = vadd.f32 %v5378, %v5891
        %v5956 = vadd.f32 %v5379, %v5892
        %v5957 = vadd.f32 %v5380, %v5893
        %v5958 = vadd.f32 %v5381, %v5894
        %v5959 = vadd.f32 %v5382, %v5895
        %v5960 = vadd.f32 %v5383, %v5896
        %v5961 = vadd.f32 %v5384, %v5897
        %v5962 = vadd.f32 %v5385, %v5898
        %v5963 = vadd.f32 %v5386, %v5899
        %v5964 = vadd.f32 %v5387, %v5900
        %v5965 = vadd.f32 %v5388, %v5901
        %v5966 = vadd.f32 %v5389, %v5902
        %v5967 = vadd.f32 %v5390, %v5903
        %v5968 = vadd.f32 %v5391, %v5904
        %v5969 = vadd.f32 %v5392, %v5905
        %v5970 = vadd.f32 %v5393, %v5906
        %v5971 = vadd.f32 %v5394, %v5907
        %v5972 = vadd.f32 %v5395, %v5908
        %v5973 = vadd.f32 %v5396, %v5909
        %v5974 = vadd.f32 %v5397, %v5910
        %v5975 = vadd.f32 %v5398, %v5911
        %v5976 = vadd.f32 %v5399, %v5912
        %v5977 = vadd.f32 %v5400, %v5913
        %v5978 = vadd.f32 %v5401, %v5914
        %v5979 = vadd.f32 %v5402, %v5915
        %v5980 = vadd.f32 %v5403, %v5916
        %v5981 = vadd.f32 %v5404, %v5917
        %v5982 = vadd.f32 %v5405, %v5918
        %v5983 = vadd.f32 %v5406, %v5919
        %v5984 = vadd.f32 %v5407, %v5920
        %v5985 = vadd.f32 %v5408, %v5921
        %v5986 = vadd.f32 %v5409, %v5922
        %v5987 = vadd.f32 %v5410, %v5923
        %v5988 = vadd.f32 %v5411, %v5924
        %v5989 = vadd.f32 %v5412, %v5925
        %v5990 = vadd.f32 %v5413, %v5926
        %v5991 = vadd.f32 %v5414, %v5927
        %v5992 = vadd.f32 %v5415, %v5928
        %v5993 = vadd.f32 %v5416, %v5929
        %v5994 = vadd.f32 %v5417, %v5930
        %v5995 = vadd.f32 %v5418, %v5931
        %v5996 = vadd.f32 %v5419, %v5932
        %v5997 = vadd.f32 %v5420, %v5933
        %v5998 = vadd.f32 %v5421, %v5934
        %v5999 = vadd.f32 %v5422, %v5935
        %v6000 = vadd.f32 %v5423, %v5936
        %v6001 = vadd.f32 %v5424, %v5937
        %v6002 = vadd.f32 %v5425, %v5938
        %v6003 = vadd.f32 %v5426, %v5939
        %v6004 = vadd.f32 %v5427, %v5940
        %v6005 = vadd.f32 %v5428, %v5941
        %v6006 = vadd.f32 %v5429, %v5942
        %v6007 = vadd.f32 %v5430, %v5943
        %v6008 = vadd.f32 %v5431, %v5944
        %v6009 = vadd.f32 %v5432, %v5945
        %v6010 = vadd.f32 %v5433, %v5946
        %v6011 = vadd.f32 %v5434, %v5947
        %v6012 = vadd.f32 %v5435, %v5948
        %v6013 = vadd.f32 %v5436, %v5949
        %v6014 = vadd.f32 %v5437, %v5950
        %v6015 = vadd.f32 %v5438, %v5951
        %v6032 = vunpack.c.l.b16 %v262
        %v6033 = vunpack.c.l.b16 %v263
        %v6034 = vunpack.c.l.b16 %v264
        %v6035 = vunpack.c.l.b16 %v265
        %v6036 = vunpack.c.l.b16 %v266
        %v6037 = vunpack.c.l.b16 %v267
        %v6038 = vunpack.c.l.b16 %v268
        %v6039 = vunpack.c.l.b16 %v269
        %v6040 = vunpack.c.l.b16 %v270
        %v6041 = vunpack.c.l.b16 %v271
        %v6042 = vunpack.c.l.b16 %v272
        %v6043 = vunpack.c.l.b16 %v273
        %v6044 = vunpack.c.l.b16 %v274
        %v6045 = vunpack.c.l.b16 %v275
        %v6046 = vunpack.c.l.b16 %v276
        %v6047 = vunpack.c.l.b16 %v277
        %v6048 = vpack.c.b16 %v6033, %v6032
        %v6049 = vpack.c.b16 %v6035, %v6034
        %v6050 = vpack.c.b16 %v6037, %v6036
        %v6051 = vpack.c.b16 %v6039, %v6038
        %v6052 = vpack.c.b16 %v6041, %v6040
        %v6053 = vpack.c.b16 %v6043, %v6042
        %v6054 = vpack.c.b16 %v6045, %v6044
        %v6055 = vpack.c.b16 %v6047, %v6046
        %6064 = vmatpush.bf16.msra.mxu0 %v6055
        %6065 = vmatpush.bf16.msra.mxu0 %v6054
        %6066 = vmatpush.bf16.msra.mxu0 %v6053
        %6067 = vmatpush.bf16.msra.mxu0 %v6052
        %6068 = vmatpush.bf16.msra.mxu0 %v6051
        %6069 = vmatpush.bf16.msra.mxu0 %v6050
        %6070 = vmatpush.bf16.msra.mxu0 %v6049
        %6071 = vmatpush.bf16.msra.mxu0 %v6048
        %6072 = vmatmul.bf16.gmra.mxu0 %v3227
        %v6073 = vpop.f32.mrf.mxu0
        %v6074 = vadd.f32 %v5952, %v6073
        %v6075 = vpop.f32.mrf.mxu0
        %v6076 = vadd.f32 %v5953, %v6075
        %6077 = vmatmul.bf16.gmra.mxu0 %v3228
        %v6078 = vpop.f32.mrf.mxu0
        %v6079 = vadd.f32 %v5954, %v6078
        %v6080 = vpop.f32.mrf.mxu0
        %v6081 = vadd.f32 %v5955, %v6080
        %6082 = vmatmul.bf16.gmra.mxu0 %v3229
        %v6083 = vpop.f32.mrf.mxu0
        %v6084 = vadd.f32 %v5956, %v6083
        %v6085 = vpop.f32.mrf.mxu0
        %v6086 = vadd.f32 %v5957, %v6085
        %6087 = vmatmul.bf16.gmra.mxu0 %v3230
        %v6088 = vpop.f32.mrf.mxu0
        %v6089 = vadd.f32 %v5958, %v6088
        %v6090 = vpop.f32.mrf.mxu0
        %v6091 = vadd.f32 %v5959, %v6090
        %6092 = vmatmul.bf16.gmra.mxu0 %v3231
        %v6093 = vpop.f32.mrf.mxu0
        %v6094 = vadd.f32 %v5960, %v6093
        %v6095 = vpop.f32.mrf.mxu0
        %v6096 = vadd.f32 %v5961, %v6095
        %6097 = vmatmul.bf16.gmra.mxu0 %v3232
        %v6098 = vpop.f32.mrf.mxu0
        %v6099 = vadd.f32 %v5962, %v6098
        %v6100 = vpop.f32.mrf.mxu0
        %v6101 = vadd.f32 %v5963, %v6100
        %6102 = vmatmul.bf16.gmra.mxu0 %v3233
        %v6103 = vpop.f32.mrf.mxu0
        %v6104 = vadd.f32 %v5964, %v6103
        %v6105 = vpop.f32.mrf.mxu0
        %v6106 = vadd.f32 %v5965, %v6105
        %6107 = vmatmul.bf16.gmra.mxu0 %v3234
        %v6108 = vpop.f32.mrf.mxu0
        %v6109 = vadd.f32 %v5966, %v6108
        %v6110 = vpop.f32.mrf.mxu0
        %v6111 = vadd.f32 %v5967, %v6110
        %6112 = vmatmul.bf16.gmra.mxu0 %v3235
        %v6113 = vpop.f32.mrf.mxu0
        %v6114 = vadd.f32 %v5968, %v6113
        %v6115 = vpop.f32.mrf.mxu0
        %v6116 = vadd.f32 %v5969, %v6115
        %6117 = vmatmul.bf16.gmra.mxu0 %v3236
        %v6118 = vpop.f32.mrf.mxu0
        %v6119 = vadd.f32 %v5970, %v6118
        %v6120 = vpop.f32.mrf.mxu0
        %v6121 = vadd.f32 %v5971, %v6120
        %6122 = vmatmul.bf16.gmra.mxu0 %v3237
        %v6123 = vpop.f32.mrf.mxu0
        %v6124 = vadd.f32 %v5972, %v6123
        %v6125 = vpop.f32.mrf.mxu0
        %v6126 = vadd.f32 %v5973, %v6125
        %6127 = vmatmul.bf16.gmra.mxu0 %v3238
        %v6128 = vpop.f32.mrf.mxu0
        %v6129 = vadd.f32 %v5974, %v6128
        %v6130 = vpop.f32.mrf.mxu0
        %v6131 = vadd.f32 %v5975, %v6130
        %6132 = vmatmul.bf16.gmra.mxu0 %v3239
        %v6133 = vpop.f32.mrf.mxu0
        %v6134 = vadd.f32 %v5976, %v6133
        %v6135 = vpop.f32.mrf.mxu0
        %v6136 = vadd.f32 %v5977, %v6135
        %6137 = vmatmul.bf16.gmra.mxu0 %v3240
        %v6138 = vpop.f32.mrf.mxu0
        %v6139 = vadd.f32 %v5978, %v6138
        %v6140 = vpop.f32.mrf.mxu0
        %v6141 = vadd.f32 %v5979, %v6140
        %6142 = vmatmul.bf16.gmra.mxu0 %v3241
        %v6143 = vpop.f32.mrf.mxu0
        %v6144 = vadd.f32 %v5980, %v6143
        %v6145 = vpop.f32.mrf.mxu0
        %v6146 = vadd.f32 %v5981, %v6145
        %6147 = vmatmul.bf16.gmra.mxu0 %v3242
        %v6148 = vpop.f32.mrf.mxu0
        %v6149 = vadd.f32 %v5982, %v6148
        %v6150 = vpop.f32.mrf.mxu0
        %v6151 = vadd.f32 %v5983, %v6150
        %6152 = vmatmul.bf16.gmra.mxu0 %v3243
        %v6153 = vpop.f32.mrf.mxu0
        %v6154 = vadd.f32 %v5984, %v6153
        %v6155 = vpop.f32.mrf.mxu0
        %v6156 = vadd.f32 %v5985, %v6155
        %6157 = vmatmul.bf16.gmra.mxu0 %v3244
        %v6158 = vpop.f32.mrf.mxu0
        %v6159 = vadd.f32 %v5986, %v6158
        %v6160 = vpop.f32.mrf.mxu0
        %v6161 = vadd.f32 %v5987, %v6160
        %6162 = vmatmul.bf16.gmra.mxu0 %v3245
        %v6163 = vpop.f32.mrf.mxu0
        %v6164 = vadd.f32 %v5988, %v6163
        %v6165 = vpop.f32.mrf.mxu0
        %v6166 = vadd.f32 %v5989, %v6165
        %6167 = vmatmul.bf16.gmra.mxu0 %v3246
        %v6168 = vpop.f32.mrf.mxu0
        %v6169 = vadd.f32 %v5990, %v6168
        %v6170 = vpop.f32.mrf.mxu0
        %v6171 = vadd.f32 %v5991, %v6170
        %6172 = vmatmul.bf16.gmra.mxu0 %v3247
        %v6173 = vpop.f32.mrf.mxu0
        %v6174 = vadd.f32 %v5992, %v6173
        %v6175 = vpop.f32.mrf.mxu0
        %v6176 = vadd.f32 %v5993, %v6175
        %6177 = vmatmul.bf16.gmra.mxu0 %v3248
        %v6178 = vpop.f32.mrf.mxu0
        %v6179 = vadd.f32 %v5994, %v6178
        %v6180 = vpop.f32.mrf.mxu0
        %v6181 = vadd.f32 %v5995, %v6180
        %6182 = vmatmul.bf16.gmra.mxu0 %v3249
        %v6183 = vpop.f32.mrf.mxu0
        %v6184 = vadd.f32 %v5996, %v6183
        %v6185 = vpop.f32.mrf.mxu0
        %v6186 = vadd.f32 %v5997, %v6185
        %6187 = vmatmul.bf16.gmra.mxu0 %v3250
        %v6188 = vpop.f32.mrf.mxu0
        %v6189 = vadd.f32 %v5998, %v6188
        %v6190 = vpop.f32.mrf.mxu0
        %v6191 = vadd.f32 %v5999, %v6190
        %6192 = vmatmul.bf16.gmra.mxu0 %v3251
        %v6193 = vpop.f32.mrf.mxu0
        %v6194 = vadd.f32 %v6000, %v6193
        %v6195 = vpop.f32.mrf.mxu0
        %v6196 = vadd.f32 %v6001, %v6195
        %6197 = vmatmul.bf16.gmra.mxu0 %v3252
        %v6198 = vpop.f32.mrf.mxu0
        %v6199 = vadd.f32 %v6002, %v6198
        %v6200 = vpop.f32.mrf.mxu0
        %v6201 = vadd.f32 %v6003, %v6200
        %6202 = vmatmul.bf16.gmra.mxu0 %v3253
        %v6203 = vpop.f32.mrf.mxu0
        %v6204 = vadd.f32 %v6004, %v6203
        %v6205 = vpop.f32.mrf.mxu0
        %v6206 = vadd.f32 %v6005, %v6205
        %6207 = vmatmul.bf16.gmra.mxu0 %v3254
        %v6208 = vpop.f32.mrf.mxu0
        %v6209 = vadd.f32 %v6006, %v6208
        %v6210 = vpop.f32.mrf.mxu0
        %v6211 = vadd.f32 %v6007, %v6210
        %6212 = vmatmul.bf16.gmra.mxu0 %v3255
        %v6213 = vpop.f32.mrf.mxu0
        %v6214 = vadd.f32 %v6008, %v6213
        %v6215 = vpop.f32.mrf.mxu0
        %v6216 = vadd.f32 %v6009, %v6215
        %6217 = vmatmul.bf16.gmra.mxu0 %v3256
        %v6218 = vpop.f32.mrf.mxu0
        %v6219 = vadd.f32 %v6010, %v6218
        %v6220 = vpop.f32.mrf.mxu0
        %v6221 = vadd.f32 %v6011, %v6220
        %6222 = vmatmul.bf16.gmra.mxu0 %v3257
        %v6223 = vpop.f32.mrf.mxu0
        %v6224 = vadd.f32 %v6012, %v6223
        %v6225 = vpop.f32.mrf.mxu0
        %v6226 = vadd.f32 %v6013, %v6225
        %6227 = vmatmul.bf16.gmra.mxu0 %v3258
        %v6228 = vpop.f32.mrf.mxu0
        %v6229 = vadd.f32 %v6014, %v6228
        %v6230 = vpop.f32.mrf.mxu0
        %v6231 = vadd.f32 %v6015, %v6230
        %6232 = vdwg.mxu0
        %v6233 = vmax.f32 %v6074, 0.0
        %v6234 = vmax.f32 %v6076, 0.0
        %v6235 = vmax.f32 %v6079, 0.0
        %v6236 = vmax.f32 %v6081, 0.0
        %v6237 = vmax.f32 %v6084, 0.0
        %v6238 = vmax.f32 %v6086, 0.0
        %v6239 = vmax.f32 %v6089, 0.0
        %v6240 = vmax.f32 %v6091, 0.0
        %v6241 = vmax.f32 %v6094, 0.0
        %v6242 = vmax.f32 %v6096, 0.0
        %v6243 = vmax.f32 %v6099, 0.0
        %v6244 = vmax.f32 %v6101, 0.0
        %v6245 = vmax.f32 %v6104, 0.0
        %v6246 = vmax.f32 %v6106, 0.0
        %v6247 = vmax.f32 %v6109, 0.0
        %v6248 = vmax.f32 %v6111, 0.0
        %v6249 = vmax.f32 %v6114, 0.0
        %v6250 = vmax.f32 %v6116, 0.0
        %v6251 = vmax.f32 %v6119, 0.0
        %v6252 = vmax.f32 %v6121, 0.0
        %v6253 = vmax.f32 %v6124, 0.0
        %v6254 = vmax.f32 %v6126, 0.0
        %v6255 = vmax.f32 %v6129, 0.0
        %v6256 = vmax.f32 %v6131, 0.0
        %v6257 = vmax.f32 %v6134, 0.0
        %v6258 = vmax.f32 %v6136, 0.0
        %v6259 = vmax.f32 %v6139, 0.0
        %v6260 = vmax.f32 %v6141, 0.0
        %v6261 = vmax.f32 %v6144, 0.0
        %v6262 = vmax.f32 %v6146, 0.0
        %v6263 = vmax.f32 %v6149, 0.0
        %v6264 = vmax.f32 %v6151, 0.0
        %v6265 = vmax.f32 %v6154, 0.0
        %v6266 = vmax.f32 %v6156, 0.0
        %v6267 = vmax.f32 %v6159, 0.0
        %v6268 = vmax.f32 %v6161, 0.0
        %v6269 = vmax.f32 %v6164, 0.0
        %v6270 = vmax.f32 %v6166, 0.0
        %v6271 = vmax.f32 %v6169, 0.0
        %v6272 = vmax.f32 %v6171, 0.0
        %v6273 = vmax.f32 %v6174, 0.0
        %v6274 = vmax.f32 %v6176, 0.0
        %v6275 = vmax.f32 %v6179, 0.0
        %v6276 = vmax.f32 %v6181, 0.0
        %v6277 = vmax.f32 %v6184, 0.0
        %v6278 = vmax.f32 %v6186, 0.0
        %v6279 = vmax.f32 %v6189, 0.0
        %v6280 = vmax.f32 %v6191, 0.0
        %v6281 = vmax.f32 %v6194, 0.0
        %v6282 = vmax.f32 %v6196, 0.0
        %v6283 = vmax.f32 %v6199, 0.0
        %v6284 = vmax.f32 %v6201, 0.0
        %v6285 = vmax.f32 %v6204, 0.0
        %v6286 = vmax.f32 %v6206, 0.0
        %v6287 = vmax.f32 %v6209, 0.0
        %v6288 = vmax.f32 %v6211, 0.0
        %v6289 = vmax.f32 %v6214, 0.0
        %v6290 = vmax.f32 %v6216, 0.0
        %v6291 = vmax.f32 %v6219, 0.0
        %v6292 = vmax.f32 %v6221, 0.0
        %v6293 = vmax.f32 %v6224, 0.0
        %v6294 = vmax.f32 %v6226, 0.0
        %v6295 = vmax.f32 %v6229, 0.0
        %v6296 = vmax.f32 %v6231, 0.0
        %6297 = vst [vmem:[%s241] sm:$0xff] %v6233
        %6298 = vst [vmem:[%s241 + $0x8] sm:$0xff] %v6234
        %6299 = vst [vmem:[%s241 + $0x10] sm:$0xff] %v6235
        %6300 = vst [vmem:[%s241 + $0x18] sm:$0xff] %v6236
        %6301 = vst [vmem:[%s241 + $0x20] sm:$0xff] %v6237
        %6302 = vst [vmem:[%s241 + $0x28] sm:$0xff] %v6238
        %6303 = vst [vmem:[%s241 + $0x30] sm:$0xff] %v6239
        %6304 = vst [vmem:[%s241 + $0x38] sm:$0xff] %v6240
        %6305 = vst [vmem:[%s241 + $0x40] sm:$0xff] %v6241
        %6306 = vst [vmem:[%s241 + $0x48] sm:$0xff] %v6242
        %6307 = vst [vmem:[%s241 + $0x50] sm:$0xff] %v6243
        %6308 = vst [vmem:[%s241 + $0x58] sm:$0xff] %v6244
        %6309 = vst [vmem:[%s241 + $0x60] sm:$0xff] %v6245
        %6310 = vst [vmem:[%s241 + $0x68] sm:$0xff] %v6246
        %6311 = vst [vmem:[%s241 + $0x70] sm:$0xff] %v6247
        %6312 = vst [vmem:[%s241 + $0x78] sm:$0xff] %v6248
        %6313 = vst [vmem:[%s241 + $0x80] sm:$0xff] %v6249
        %6314 = vst [vmem:[%s241 + $0x88] sm:$0xff] %v6250
        %6315 = vst [vmem:[%s241 + $0x90] sm:$0xff] %v6251
        %6316 = vst [vmem:[%s241 + $0x98] sm:$0xff] %v6252
        %6317 = vst [vmem:[%s241 + $0xa0] sm:$0xff] %v6253
        %6318 = vst [vmem:[%s241 + $0xa8] sm:$0xff] %v6254
        %6319 = vst [vmem:[%s241 + $0xb0] sm:$0xff] %v6255
        %6320 = vst [vmem:[%s241 + $0xb8] sm:$0xff] %v6256
        %6321 = vst [vmem:[%s241 + $0xc0] sm:$0xff] %v6257
        %6322 = vst [vmem:[%s241 + $0xc8] sm:$0xff] %v6258
        %6323 = vst [vmem:[%s241 + $0xd0] sm:$0xff] %v6259
        %6324 = vst [vmem:[%s241 + $0xd8] sm:$0xff] %v6260
        %6325 = vst [vmem:[%s241 + $0xe0] sm:$0xff] %v6261
        %6326 = vst [vmem:[%s241 + $0xe8] sm:$0xff] %v6262
        %6327 = vst [vmem:[%s241 + $0xf0] sm:$0xff] %v6263
        %6328 = vst [vmem:[%s241 + $0xf8] sm:$0xff] %v6264
        %6329 = vst [vmem:[%s241 + $0x100] sm:$0xff] %v6265
        %6330 = vst [vmem:[%s241 + $0x108] sm:$0xff] %v6266
        %6331 = vst [vmem:[%s241 + $0x110] sm:$0xff] %v6267
        %6332 = vst [vmem:[%s241 + $0x118] sm:$0xff] %v6268
        %6333 = vst [vmem:[%s241 + $0x120] sm:$0xff] %v6269
        %6334 = vst [vmem:[%s241 + $0x128] sm:$0xff] %v6270
        %6335 = vst [vmem:[%s241 + $0x130] sm:$0xff] %v6271
        %6336 = vst [vmem:[%s241 + $0x138] sm:$0xff] %v6272
        %6337 = vst [vmem:[%s241 + $0x140] sm:$0xff] %v6273
        %6338 = vst [vmem:[%s241 + $0x148] sm:$0xff] %v6274
        %6339 = vst [vmem:[%s241 + $0x150] sm:$0xff] %v6275
        %6340 = vst [vmem:[%s241 + $0x158] sm:$0xff] %v6276
        %6341 = vst [vmem:[%s241 + $0x160] sm:$0xff] %v6277
        %6342 = vst [vmem:[%s241 + $0x168] sm:$0xff] %v6278
        %6343 = vst [vmem:[%s241 + $0x170] sm:$0xff] %v6279
        %6344 = vst [vmem:[%s241 + $0x178] sm:$0xff] %v6280
        %6345 = vst [vmem:[%s241 + $0x180] sm:$0xff] %v6281
        %6346 = vst [vmem:[%s241 + $0x188] sm:$0xff] %v6282
        %6347 = vst [vmem:[%s241 + $0x190] sm:$0xff] %v6283
        %6348 = vst [vmem:[%s241 + $0x198] sm:$0xff] %v6284
        %6349 = vst [vmem:[%s241 + $0x1a0] sm:$0xff] %v6285
        %6350 = vst [vmem:[%s241 + $0x1a8] sm:$0xff] %v6286
        %6351 = vst [vmem:[%s241 + $0x1b0] sm:$0xff] %v6287
        %6352 = vst [vmem:[%s241 + $0x1b8] sm:$0xff] %v6288
        %6353 = vst [vmem:[%s241 + $0x1c0] sm:$0xff] %v6289
        %6354 = vst [vmem:[%s241 + $0x1c8] sm:$0xff] %v6290
        %6355 = vst [vmem:[%s241 + $0x1d0] sm:$0xff] %v6291
        %6356 = vst [vmem:[%s241 + $0x1d8] sm:$0xff] %v6292
        %6357 = vst [vmem:[%s241 + $0x1e0] sm:$0xff] %v6293
        %6358 = vst [vmem:[%s241 + $0x1e8] sm:$0xff] %v6294
        %6359 = vst [vmem:[%s241 + $0x1f0] sm:$0xff] %v6295
        %6360 = vst [vmem:[%s241 + $0x1f8] sm:$0xff] %v6296
        %s6361 = sand.u32 %s141, 1
        %s6362 = scalar_lea.sflag [#allocation3], %s6361
        %s6363 = sand.u32 %s141, 1
        %s6364 = smul.addr %s6363, 512
        %s6365 = scalar_lea.vmem [#allocation2], %s6364
        // Predicated region
        $region37: #{tpu_custom_call.1} parent=35 // pred_check
          %p6366 = pneg %p151
        $region38: #{tpu_custom_call.1} parent=35 // pred_check_branch
          %6368 = sbr.rel (%p6366) target = $region40
        $region39: #{tpu_custom_call.1} parent=35 // pred_region
          %s6369 = smul.u32 64, %s23
          %6371 = vsyncadd %s6362, 0
          %s6372 = smul.addr %s22, 64
          %s6373 = sadd.s32 %s6369, %s6372
          %s6374 = smul.addr %s6373, 8
          %s6375 = scalar_lea.hbm %s4, %s6374
          %s6376 = sshll.u32 %s6365, 4
          %s6377 = int_to_ptr.vmem [resolvable:$true] %s6376
          %s6378 = sshll.u32 %s6375, 4
          %s6379 = int_to_ptr.hbm [resolvable:$true] %s6378
          %6384 = dma.vmem_to_hbm [thread:$0]  %s6377, 8192, %s6379, %s6362, 128, 128, 8
        $region40: #{tpu_custom_call.1} parent=35 // pred_fallthru
          _
      $region36: #{tpu_custom_call.1} parent=5 // pred_fallthru
        _
      %p6385 = scmp.le.s32.totalorder 2, %s13
      // Predicated region
      $region41: #{tpu_custom_call.1} parent=5 // pred_check
        %p6386 = pneg %p6385
      $region42: #{tpu_custom_call.1} parent=5 // pred_check_branch
        %6388 = sbr.rel (%p6386) target = $region44
      $region43: #{tpu_custom_call.1} parent=5 // pred_region
        %s6389 = ssub.s32 %s13, 2
        // Predicated region
        $region45: #{tpu_custom_call.1} parent=43 // pred_check
          %p6390 = pneg %p157
        $region46: #{tpu_custom_call.1} parent=43 // pred_check_branch
          %6392 = sbr.rel (%p6390) target = $region48
        $region47: #{tpu_custom_call.1} parent=43 // pred_region
          %s6393 = sand.u32 %s142, 1
          %s6394 = scalar_lea.sflag [#allocation3], %s6393
          %s6395 = sand.u32 %s142, 1
          %s6396 = smul.addr %s6395, 512
          %s6397 = scalar_lea.vmem [#allocation2], %s6396
          %6399 = dma.done %s6394, 8192
        $region48: #{tpu_custom_call.1} parent=43 // pred_fallthru
          _
      $region44: #{tpu_custom_call.1} parent=5 // pred_fallthru
        _
    $region6: #{tpu_custom_call.1} parent=1 // loop_footer
      %s17 = sadd.s32 1, %s13
    $region7: #{tpu_custom_call.1} parent=1 // loop_footer_branch
      %12 = sbr.rel target = $region3
    $region8: #{tpu_custom_call.1} parent=1 // loop_exit
      _
    %6400 = vsyncpa [#allocation3], 1
    %s6401 = scalar_lea.sflag [#allocation3], 1
    %6402 = vsyncpa %s6401, 1

</llo_original>
